<compile_context>
chip_gen: v7x
topology: tpu7x:2x2x1
jax: 0.10.0
libtpu: 0.0.40
codegen_flags: <defaults>
</compile_context>

<pallas_src>
import functools

import jax
import jax.numpy as jnp
from jax import lax
from jax.experimental import pallas as pl
from jax.experimental.pallas import tpu as pltpu

N_BINS = 8          # unused by forward(), kept for parity with the module
IN_CHANNELS = 4
INPUT_DIM = 16      # 16 -> (conv 'same' + maxpool/2) x4 -> length 1
BATCH = 2

_KS = (3, 4, 5, 6)  # conv kernel sizes of the 4 cnn blocks


def _same_left(k):
    return (k - 1) // 2


def _valid_taps(k, l_in):
    """Taps of a 'same' conv that can ever touch an in-range input position."""
    left = _same_left(k)
    return tuple(j for j in range(k) if (left - l_in) < j < (left + l_in))


def _layer_plan(input_dim):
    """Static per-layer (kept taps, per-tap source offsets) plan."""
    plan = []
    l = input_dim
    for k in _KS:
        taps = _valid_taps(k, l)
        offs = tuple(j - _same_left(k) for j in taps)
        plan.append((taps, offs))
        l //= 2
    return tuple(plan)


# ----------------------------- kernel helpers ------------------------------

def _conv_pool_relu(h, w_ref, b_ref, tb, offsets):
    """[Conv1d 'same' -> MaxPool1d(2,2) -> ReLU] as one im2col GEMM.

    h:       (M, Cin) f32, M = tb * L (tb samples of length L stacked on rows)
    w_ref:   (len(offsets)*Cin, Cout) bf16 repacked conv weight (tap-major)
    b_ref:   (1, Cout) f32
    offsets: static tuple of per-tap source offsets (j - left)
    """
    M, cin = h.shape
    L = M // tb
    cout = w_ref.shape[1]
    pos = lax.broadcasted_iota(jnp.int32, (M, 1), 0) % L     # in-sample position

    views = []
    for off in offsets:
        if off == 0:
            views.append(h)
            continue
        # v[m] = h[m + off]  (pltpu.roll follows jnp.roll semantics; shift kept
        # non-negative).  Rows whose source position leaves [0, L) within their
        # own sample are zeroed, which implements per-sample 'same' padding and
        # also kills the rows that wrapped around the tile boundary.
        v = pltpu.roll(h, (-off) % M, 0)
        valid = (pos < (L - off)) if off > 0 else (pos >= (-off))
        views.append(jnp.where(valid, v, 0.0))
    cols = jnp.concatenate(views, axis=-1)                    # (M, len(offs)*Cin)

    y = jnp.dot(cols.astype(jnp.bfloat16), w_ref[...],
                preferred_element_type=jnp.float32) + b_ref[...]    # (M, Cout) f32
    y = jnp.max(y.reshape(M // 2, 2, cout), axis=1)           # MaxPool1d(2, 2)
    return jnp.maximum(y, 0.0)                                # ReLU


def decoder_kernel(xs_ref, xf_ref,
                   wc1, bc1, wc2, bc2, wc3, bc3, wc4, bc4,
                   wm1c, wres_f, bm1f, wm2p, bm2p,
                   out_ref, *, plan):
    tb = out_ref.shape[0]                  # samples in this batch tile

    # --- cnn branch: 4 x [conv 'same' -> maxpool(2) -> relu], one GEMM each ---
    h = xs_ref[...]                                      # (tb*16, 4) f32
    h = _conv_pool_relu(h, wc1, bc1, tb, plan[0][1])     # (tb*8, 64)
    h = _conv_pool_relu(h, wc2, bc2, tb, plan[1][1])     # (tb*4, 64)
    h = _conv_pool_relu(h, wc3, bc3, tb, plan[2][1])     # (tb*2, 64)
    h = _conv_pool_relu(h, wc4, bc4, tb, plan[3][1])     # (tb,   64)

    # --- MLP; the cnn_res branch and the (64|96) concat are folded into the
    #     first Linear via wres_f / bm1f (exact: no ReLU between res and wm1) ---
    hid = jnp.maximum(
        jnp.dot(h.astype(jnp.bfloat16), wm1c[...],
                preferred_element_type=jnp.float32)
        + jnp.dot(xf_ref[...], wres_f[...],
                  preferred_element_type=jnp.float32)
        + bm1f[...], 0.0)                                 # (tb, 256) f32
    out_ref[...] = (jnp.dot(hid.astype(jnp.bfloat16), wm2p[...],
                            preferred_element_type=jnp.float32) + bm2p[...])


# ------------------------------- wrapper ------------------------------------

def graphhist_decoder(x_ncl, p):
    """x_ncl: (N, C, L) float32, PyTorch layout.  Returns (N, 2) float32."""
    N, C, L = x_ncl.shape
    assert L == INPUT_DIM == 16 and C == IN_CHANNELS, \
        "kernel is specialized to in_channels=4, input_dim=16"
    plan = _layer_plan(L)

    # ---- batch tiling --------------------------------------------------------
    # Pad the batch to a multiple of 8 so every layer's stacked-row count stays
    # a multiple of 8.  For N >= 64 use >= 2 tiles so the ("parallel",) grid
    # axis can shard across both v7x TensorCores; cap TB at 512 for VMEM
    # headroom (the (TB*16, 4) x_stack tile lane-pads 4 -> 128).
    n8 = -(-N // 8) * 8
    if n8 < 64:
        TB = n8
    else:
        TB = min(512, -(-n8 // 16) * 8)            # ~n8/2, multiple of 8
    Np = -(-N // TB) * TB
    grid = (Np // TB,)

    xp = x_ncl.astype(jnp.float32)
    if Np != N:
        xp = jnp.pad(xp, ((0, Np - N), (0, 0), (0, 0)))
    x_lc = jnp.transpose(xp, (0, 2, 1))                      # (Np, L, C)
    x_stack = x_lc.reshape(Np * L, C)                        # cnn branch rows (f32)
    x_flat = x_lc.reshape(Np, L * C).astype(jnp.bfloat16)    # res branch rows (dot-only)

    # ---- weight repacking (wrapper-side, one time) ---------------------------
    def cw(w, taps=None, dtype=jnp.bfloat16):
        # (Cout, Cin, K) -> (K'*Cin, Cout), tap-major, optionally tap-pruned
        w = w.astype(jnp.float32)
        cout, cin, k = (int(s) for s in w.shape)
        if taps is not None and len(taps) != k:
            w = w[:, :, list(taps)]
            k = len(taps)
        return jnp.transpose(w, (2, 1, 0)).reshape(k * cin, cout).astype(dtype)

    def bb(b, width=None):
        b = b.astype(jnp.float32).reshape(1, -1)
        if width is not None and b.shape[1] != width:
            b = jnp.pad(b, ((0, 0), (0, width - b.shape[1])))
        return b

    wm1 = p['wm1'].astype(jnp.float32)                       # (256, 64 + 96)
    wm1c = jnp.transpose(wm1[:, :64])                        # (64, 256)
    wm1r = jnp.transpose(wm1[:, 64:])                        # (96, 256)
    # Fold the cnn_res conv (valid conv, kernel length == input length) into wm1:
    wres2d = cw(p['wres'], dtype=jnp.float32)                # (L*C, 96)
    wres_f = (wres2d @ wm1r).astype(jnp.bfloat16)            # (L*C, 256)
    bm1f = (p['bm1'].astype(jnp.float32)
            + p['bres'].astype(jnp.float32) @ wm1r).reshape(1, -1)   # (1, 256)
    # Lane-dense output: pad the final Linear to 128 columns.
    wm2p = jnp.zeros((256, 128), jnp.float32)
    wm2p = wm2p.at[:, :2].set(jnp.transpose(p['wm2']).astype(jnp.float32))
    wm2p = wm2p.astype(jnp.bfloat16)
    bm2p = bb(p['bm2'], width=128)

    weights = (cw(p['w1'], plan[0][0]), bb(p['b1']),
               cw(p['w2'], plan[1][0]), bb(p['b2']),
               cw(p['w3'], plan[2][0]), bb(p['b3']),
               cw(p['w4'], plan[3][0]), bb(p['b4']),      # layer-4 taps pruned 6->3
               wm1c.astype(jnp.bfloat16), wres_f, bm1f, wm2p, bm2p)

    def wspec(a):
        nd = a.ndim
        # constant index map: weights are DMA'd once and stay resident
        return pl.BlockSpec(a.shape, lambda b, _nd=nd: (0,) * _nd)

    in_specs = ([pl.BlockSpec((TB * L, C), lambda b: (b, 0)),
                 pl.BlockSpec((TB, L * C), lambda b: (b, 0))]
                + [wspec(a) for a in weights])

    # Advisory cost estimate for XLA's scheduler around this tiny custom call.
    flops = 2 * Np * (16 * len(plan[0][0]) * C * 64
                      + 8 * len(plan[1][0]) * 64 * 64
                      + 4 * len(plan[2][0]) * 64 * 64
                      + 2 * len(plan[3][0]) * 64 * 64
                      + 64 * 256 + 64 * 256 + 256 * 128)
    bytes_accessed = int(x_stack.size * 4 + x_flat.size * 2 + Np * 128 * 4
                         + sum(int(w.size) * w.dtype.itemsize for w in weights))

    out = pl.pallas_call(
        functools.partial(decoder_kernel, plan=plan),
        out_shape=jax.ShapeDtypeStruct((Np, 128), jnp.float32),
        grid_spec=pltpu.PrefetchScalarGridSpec(
            num_scalar_prefetch=0,
            grid=grid,
            in_specs=in_specs,
            out_specs=pl.BlockSpec((TB, 128), lambda b: (b, 0)),
        ),
        compiler_params=pltpu.CompilerParams(
            dimension_semantics=("parallel",),        # batch tiles -> both v7x TCs
            vmem_limit_bytes=40 * 1024 * 1024),       # headroom for TB up to 512
        cost_estimate=pl.CostEstimate(flops=int(flops), transcendentals=0,
                                      bytes_accessed=bytes_accessed),
    )(x_stack, x_flat, *weights)
    return out[:N, :2]


# --------------------------- pure-JAX reference ------------------------------

def ref_forward(x, p):
    def conv1d(h, w, b, pad):
        out = lax.conv_general_dilated(
            h, w, window_strides=(1,), padding=[pad],
            dimension_numbers=('NCH', 'OIH', 'NCH'),
            precision=lax.Precision.HIGHEST)
        return out + b[None, :, None]

    def pool_relu(h):
        n, c, l = h.shape
        h = jnp.max(h.reshape(n, c, l // 2, 2), axis=-1)
        return jnp.maximum(h, 0.0)

    def same_pad(k):
        left = (k - 1) // 2
        return (left, k - 1 - left)

    h = pool_relu(conv1d(x, p['w1'], p['b1'], same_pad(3)))
    h = pool_relu(conv1d(h, p['w2'], p['b2'], same_pad(4)))
    h = pool_relu(conv1d(h, p['w3'], p['b3'], same_pad(5)))
    h = pool_relu(conv1d(h, p['w4'], p['b4'], same_pad(6)))
    x1 = h.reshape(h.shape[0], -1)                      # (N, 64)
    r = conv1d(x, p['wres'], p['bres'], (0, 0))         # (N, 96, 1)
    x2 = r.reshape(r.shape[0], -1)                      # (N, 96)
    feat = jnp.concatenate([x1, x2], axis=1)            # (N, 160)
    hid = jnp.maximum(feat @ p['wm1'].T + p['bm1'], 0.0)
    return hid @ p['wm2'].T + p['bm2']


# ------------------------------ param init -----------------------------------

def init_params(key):
    ks = jax.random.split(key, 14)

    def nrm(k, shape, scale):
        return scale * jax.random.normal(k, shape, jnp.float32)

    p = {}
    p['w1'], p['b1'] = nrm(ks[0], (64, IN_CHANNELS, 3), 0.3), nrm(ks[1], (64,), 0.1)
    p['w2'], p['b2'] = nrm(ks[2], (64, 64, 4), 0.1), nrm(ks[3], (64,), 0.1)
    p['w3'], p['b3'] = nrm(ks[4], (64, 64, 5), 0.1), nrm(ks[5], (64,), 0.1)
    p['w4'], p['b4'] = nrm(ks[6], (64, 64, 6), 0.1), nrm(ks[7], (64,), 0.1)
    p['wres'], p['bres'] = (nrm(ks[8], (96, IN_CHANNELS, INPUT_DIM), 0.2),
                            nrm(ks[9], (96,), 0.1))
    p['wm1'], p['bm1'] = nrm(ks[10], (256, 64 + 96), 0.1), nrm(ks[11], (256,), 0.1)
    p['wm2'], p['bm2'] = nrm(ks[12], (2, 256), 0.1), nrm(ks[13], (2,), 0.1)
    return p


if __name__ == "__main__":
    key = jax.random.PRNGKey(0)
    kx, kp = jax.random.split(key)
    x = jax.random.normal(kx, (BATCH, IN_CHANNELS, INPUT_DIM), jnp.float32)
    params = init_params(kp)

    out = graphhist_decoder(x, params)
    out = jax.block_until_ready(out)
    assert out.shape == (BATCH, 2), out.shape

    ref = ref_forward(x, params)
    # bf16 MXU operands (f32 accumulation) -> allow ~2e-2; f32 reference.
    if not bool(jnp.allclose(out, ref, atol=2e-2, rtol=2e-2)):
        raise AssertionError(f"mismatch: pallas={out} ref={ref}")

    print("KERNEL_OK")
</pallas_src>

<mosaic_0001>
module attributes {stable_mosaic.version = 11 : i64} {
  func.func @decoder_kernel(%arg0: i32, %arg1: memref<128x4xf32, #tpu.memory_space<vmem>>, %arg2: memref<8x64xbf16, #tpu.memory_space<vmem>>, %arg3: memref<12x64xbf16, #tpu.memory_space<vmem>>, %arg4: memref<1x64xf32, #tpu.memory_space<vmem>>, %arg5: memref<256x64xbf16, #tpu.memory_space<vmem>>, %arg6: memref<1x64xf32, #tpu.memory_space<vmem>>, %arg7: memref<320x64xbf16, #tpu.memory_space<vmem>>, %arg8: memref<1x64xf32, #tpu.memory_space<vmem>>, %arg9: memref<192x64xbf16, #tpu.memory_space<vmem>>, %arg10: memref<1x64xf32, #tpu.memory_space<vmem>>, %arg11: memref<64x256xbf16, #tpu.memory_space<vmem>>, %arg12: memref<64x256xbf16, #tpu.memory_space<vmem>>, %arg13: memref<1x256xf32, #tpu.memory_space<vmem>>, %arg14: memref<256x128xbf16, #tpu.memory_space<vmem>>, %arg15: memref<1x128xf32, #tpu.memory_space<vmem>>, %arg16: memref<8x128xf32, #tpu.memory_space<vmem>>) attributes {dimension_semantics = [#tpu.dimension_semantics<parallel>], iteration_bounds = array<i64: 1>, scalar_prefetch = 0 : i64, scratch_operands = 0 : i64, tpu.core_type = #tpu.core_type<tc>, window_params = [{transform_indices = @transform_0, window_bounds = array<i64: 128, 4>}, {transform_indices = @transform_1, window_bounds = array<i64: 8, 64>}, {pipeline_mode = #tpu.pipeline_mode<synchronous>, transform_indices = @transform_2, window_bounds = array<i64: 12, 64>}, {pipeline_mode = #tpu.pipeline_mode<synchronous>, transform_indices = @transform_3, window_bounds = array<i64: 1, 64>}, {pipeline_mode = #tpu.pipeline_mode<synchronous>, transform_indices = @transform_4, window_bounds = array<i64: 256, 64>}, {pipeline_mode = #tpu.pipeline_mode<synchronous>, transform_indices = @transform_5, window_bounds = array<i64: 1, 64>}, {pipeline_mode = #tpu.pipeline_mode<synchronous>, transform_indices = @transform_6, window_bounds = array<i64: 320, 64>}, {pipeline_mode = #tpu.pipeline_mode<synchronous>, transform_indices = @transform_7, window_bounds = array<i64: 1, 64>}, {pipeline_mode = #tpu.pipeline_mode<synchronous>, transform_indices = @transform_8, window_bounds = array<i64: 192, 64>}, {pipeline_mode = #tpu.pipeline_mode<synchronous>, transform_indices = @transform_9, window_bounds = array<i64: 1, 64>}, {pipeline_mode = #tpu.pipeline_mode<synchronous>, transform_indices = @transform_10, window_bounds = array<i64: 64, 256>}, {pipeline_mode = #tpu.pipeline_mode<synchronous>, transform_indices = @transform_11, window_bounds = array<i64: 64, 256>}, {pipeline_mode = #tpu.pipeline_mode<synchronous>, transform_indices = @transform_12, window_bounds = array<i64: 1, 256>}, {pipeline_mode = #tpu.pipeline_mode<synchronous>, transform_indices = @transform_13, window_bounds = array<i64: 256, 128>}, {pipeline_mode = #tpu.pipeline_mode<synchronous>, transform_indices = @transform_14, window_bounds = array<i64: 1, 128>}, {transform_indices = @transform_15, window_bounds = array<i64: 8, 128>}]} {
    %c0 = arith.constant 0 : index
    %c0_0 = arith.constant 0 : index
    %0 = vector.load %arg1[%c0, %c0_0] : memref<128x4xf32, #tpu.memory_space<vmem>>, vector<128x4xf32>
    %1 = tpu.iota {dimensions = array<i32: 0>} : vector<128x1xi32>
    %c16_i32 = arith.constant 16 : i32
    %c0_i32 = arith.constant 0 : i32
    %2 = arith.cmpi eq, %c16_i32, %c0_i32 : i32
    %c1_i32 = arith.constant 1 : i32
    %3 = arith.select %2, %c1_i32, %c16_i32 : i32
    %4 = vector.broadcast %3 : i32 to vector<128x1xi32>
    %5 = arith.remsi %1, %4 : vector<128x1xi32>
    %c0_i32_1 = arith.constant 0 : i32
    %6 = vector.broadcast %c0_i32_1 : i32 to vector<128x1xi32>
    %7 = arith.cmpi ne, %5, %6 : vector<128x1xi32>
    %c0_i32_2 = arith.constant 0 : i32
    %8 = vector.broadcast %c0_i32_2 : i32 to vector<128x1xi32>
    %9 = arith.cmpi slt, %5, %8 : vector<128x1xi32>
    %c0_i32_3 = arith.constant 0 : i32
    %10 = arith.cmpi slt, %3, %c0_i32_3 : i32
    %11 = vector.broadcast %10 : i1 to vector<128x1xi1>
    %12 = vector.broadcast %11 : vector<128x1xi1> to vector<128x1xi1>
    %13 = arith.xori %9, %12 : vector<128x1xi1>
    %14 = arith.andi %13, %7 : vector<128x1xi1>
    %15 = vector.broadcast %3 : i32 to vector<128x1xi32>
    %16 = arith.addi %5, %15 : vector<128x1xi32>
    %17 = arith.select %14, %16, %5 : vector<128x1xi1>, vector<128x1xi32>
    %c1_i32_4 = arith.constant 1 : i32
    %18 = tpu.dynamic_rotate %0 by %c1_i32_4 dim 0 : vector<128x4xf32>, i32 -> vector<128x4xf32>
    %c1_i32_5 = arith.constant 1 : i32
    %19 = vector.broadcast %c1_i32_5 : i32 to vector<128x1xi32>
    %20 = arith.cmpi sge, %17, %19 : vector<128x1xi32>
    %cst = arith.constant 0.000000e+00 : f32
    %21 = vector.shape_cast %20 : vector<128x1xi1> to vector<128x1xi1>
    %22 = vector.broadcast %21 : vector<128x1xi1> to vector<128x4xi1>
    %23 = vector.broadcast %cst : f32 to vector<128x4xf32>
    %24 = arith.select %22, %18, %23 : vector<128x4xi1>, vector<128x4xf32>
    %c127_i32 = arith.constant 127 : i32
    %25 = tpu.dynamic_rotate %0 by %c127_i32 dim 0 : vector<128x4xf32>, i32 -> vector<128x4xf32>
    %c15_i32 = arith.constant 15 : i32
    %26 = vector.broadcast %c15_i32 : i32 to vector<128x1xi32>
    %27 = arith.cmpi slt, %17, %26 : vector<128x1xi32>
    %cst_6 = arith.constant 0.000000e+00 : f32
    %28 = vector.shape_cast %27 : vector<128x1xi1> to vector<128x1xi1>
    %29 = vector.broadcast %28 : vector<128x1xi1> to vector<128x4xi1>
    %30 = vector.broadcast %cst_6 : f32 to vector<128x4xf32>
    %31 = arith.select %29, %25, %30 : vector<128x4xi1>, vector<128x4xf32>
    %32 = tpu.concatenate %24, %0, %31 in 1 : vector<128x4xf32>, vector<128x4xf32>, vector<128x4xf32> -> vector<128x12xf32>
    %33 = arith.truncf %32 : vector<128x12xf32> to vector<128x12xbf16>
    %c0_7 = arith.constant 0 : index
    %c0_8 = arith.constant 0 : index
    %34 = vector.load %arg3[%c0_7, %c0_8] : memref<12x64xbf16, #tpu.memory_space<vmem>>, vector<12x64xbf16>
    %cst_9 = arith.constant dense<0.000000e+00> : vector<128x64xf32>
    %35 = tpu.matmul %33, %34, %cst_9 {dimension_numbers = #tpu.dot_dimension_numbers<[1], [0], [0], [1], [0, 0, 1, 1], [], []>} : vector<128x12xbf16>, vector<12x64xbf16>, vector<128x64xf32> -> vector<128x64xf32>
    %c0_10 = arith.constant 0 : index
    %c0_11 = arith.constant 0 : index
    %36 = vector.load %arg4[%c0_10, %c0_11] : memref<1x64xf32, #tpu.memory_space<vmem>>, vector<1x64xf32>
    %37 = vector.broadcast %36 : vector<1x64xf32> to vector<128x64xf32>
    %38 = arith.addf %35, %37 : vector<128x64xf32>
    %39 = vector.shape_cast %38 : vector<128x64xf32> to vector<64x2x64xf32>
    %cst_12 = arith.constant dense<0xFF800000> : vector<64x64xf32>
    %40 = vector.multi_reduction <maximumf>, %39, %cst_12 [1] : vector<64x2x64xf32> to vector<64x64xf32>
    %cst_13 = arith.constant 0.000000e+00 : f32
    %41 = vector.broadcast %cst_13 : f32 to vector<64x64xf32>
    %42 = arith.maximumf %40, %41 : vector<64x64xf32>
    %43 = tpu.iota {dimensions = array<i32: 0>} : vector<64x1xi32>
    %c8_i32 = arith.constant 8 : i32
    %c0_i32_14 = arith.constant 0 : i32
    %44 = arith.cmpi eq, %c8_i32, %c0_i32_14 : i32
    %c1_i32_15 = arith.constant 1 : i32
    %45 = arith.select %44, %c1_i32_15, %c8_i32 : i32
    %46 = vector.broadcast %45 : i32 to vector<64x1xi32>
    %47 = arith.remsi %43, %46 : vector<64x1xi32>
    %c0_i32_16 = arith.constant 0 : i32
    %48 = vector.broadcast %c0_i32_16 : i32 to vector<64x1xi32>
    %49 = arith.cmpi ne, %47, %48 : vector<64x1xi32>
    %c0_i32_17 = arith.constant 0 : i32
    %50 = vector.broadcast %c0_i32_17 : i32 to vector<64x1xi32>
    %51 = arith.cmpi slt, %47, %50 : vector<64x1xi32>
    %c0_i32_18 = arith.constant 0 : i32
    %52 = arith.cmpi slt, %45, %c0_i32_18 : i32
    %53 = vector.broadcast %52 : i1 to vector<64x1xi1>
    %54 = vector.broadcast %53 : vector<64x1xi1> to vector<64x1xi1>
    %55 = arith.xori %51, %54 : vector<64x1xi1>
    %56 = arith.andi %55, %49 : vector<64x1xi1>
    %57 = vector.broadcast %45 : i32 to vector<64x1xi32>
    %58 = arith.addi %47, %57 : vector<64x1xi32>
    %59 = arith.select %56, %58, %47 : vector<64x1xi1>, vector<64x1xi32>
    %c1_i32_19 = arith.constant 1 : i32
    %60 = tpu.dynamic_rotate %42 by %c1_i32_19 dim 0 : vector<64x64xf32>, i32 -> vector<64x64xf32>
    %c1_i32_20 = arith.constant 1 : i32
    %61 = vector.broadcast %c1_i32_20 : i32 to vector<64x1xi32>
    %62 = arith.cmpi sge, %59, %61 : vector<64x1xi32>
    %cst_21 = arith.constant 0.000000e+00 : f32
    %63 = vector.shape_cast %62 : vector<64x1xi1> to vector<64x1xi1>
    %64 = vector.broadcast %63 : vector<64x1xi1> to vector<64x64xi1>
    %65 = vector.broadcast %cst_21 : f32 to vector<64x64xf32>
    %66 = arith.select %64, %60, %65 : vector<64x64xi1>, vector<64x64xf32>
    %c63_i32 = arith.constant 63 : i32
    %67 = tpu.dynamic_rotate %42 by %c63_i32 dim 0 : vector<64x64xf32>, i32 -> vector<64x64xf32>
    %c7_i32 = arith.constant 7 : i32
    %68 = vector.broadcast %c7_i32 : i32 to vector<64x1xi32>
    %69 = arith.cmpi slt, %59, %68 : vector<64x1xi32>
    %cst_22 = arith.constant 0.000000e+00 : f32
    %70 = vector.shape_cast %69 : vector<64x1xi1> to vector<64x1xi1>
    %71 = vector.broadcast %70 : vector<64x1xi1> to vector<64x64xi1>
    %72 = vector.broadcast %cst_22 : f32 to vector<64x64xf32>
    %73 = arith.select %71, %67, %72 : vector<64x64xi1>, vector<64x64xf32>
    %c62_i32 = arith.constant 62 : i32
    %74 = tpu.dynamic_rotate %42 by %c62_i32 dim 0 : vector<64x64xf32>, i32 -> vector<64x64xf32>
    %c6_i32 = arith.constant 6 : i32
    %75 = vector.broadcast %c6_i32 : i32 to vector<64x1xi32>
    %76 = arith.cmpi slt, %59, %75 : vector<64x1xi32>
    %cst_23 = arith.constant 0.000000e+00 : f32
    %77 = vector.shape_cast %76 : vector<64x1xi1> to vector<64x1xi1>
    %78 = vector.broadcast %77 : vector<64x1xi1> to vector<64x64xi1>
    %79 = vector.broadcast %cst_23 : f32 to vector<64x64xf32>
    %80 = arith.select %78, %74, %79 : vector<64x64xi1>, vector<64x64xf32>
    %81 = tpu.concatenate %66, %42, %73, %80 in 1 : vector<64x64xf32>, vector<64x64xf32>, vector<64x64xf32>, vector<64x64xf32> -> vector<64x256xf32>
    %82 = arith.truncf %81 : vector<64x256xf32> to vector<64x256xbf16>
    %c0_24 = arith.constant 0 : index
    %c0_25 = arith.constant 0 : index
    %83 = vector.load %arg5[%c0_24, %c0_25] : memref<256x64xbf16, #tpu.memory_space<vmem>>, vector<256x64xbf16>
    %cst_26 = arith.constant dense<0.000000e+00> : vector<64x64xf32>
    %84 = tpu.matmul %82, %83, %cst_26 {dimension_numbers = #tpu.dot_dimension_numbers<[1], [0], [0], [1], [0, 0, 1, 1], [], []>} : vector<64x256xbf16>, vector<256x64xbf16>, vector<64x64xf32> -> vector<64x64xf32>
    %c0_27 = arith.constant 0 : index
    %c0_28 = arith.constant 0 : index
    %85 = vector.load %arg6[%c0_27, %c0_28] : memref<1x64xf32, #tpu.memory_space<vmem>>, vector<1x64xf32>
    %86 = vector.broadcast %85 : vector<1x64xf32> to vector<64x64xf32>
    %87 = arith.addf %84, %86 : vector<64x64xf32>
    %88 = vector.shape_cast %87 : vector<64x64xf32> to vector<32x2x64xf32>
    %cst_29 = arith.constant dense<0xFF800000> : vector<32x64xf32>
    %89 = vector.multi_reduction <maximumf>, %88, %cst_29 [1] : vector<32x2x64xf32> to vector<32x64xf32>
    %cst_30 = arith.constant 0.000000e+00 : f32
    %90 = vector.broadcast %cst_30 : f32 to vector<32x64xf32>
    %91 = arith.maximumf %89, %90 : vector<32x64xf32>
    %92 = tpu.iota {dimensions = array<i32: 0>} : vector<32x1xi32>
    %c4_i32 = arith.constant 4 : i32
    %c0_i32_31 = arith.constant 0 : i32
    %93 = arith.cmpi eq, %c4_i32, %c0_i32_31 : i32
    %c1_i32_32 = arith.constant 1 : i32
    %94 = arith.select %93, %c1_i32_32, %c4_i32 : i32
    %95 = vector.broadcast %94 : i32 to vector<32x1xi32>
    %96 = arith.remsi %92, %95 : vector<32x1xi32>
    %c0_i32_33 = arith.constant 0 : i32
    %97 = vector.broadcast %c0_i32_33 : i32 to vector<32x1xi32>
    %98 = arith.cmpi ne, %96, %97 : vector<32x1xi32>
    %c0_i32_34 = arith.constant 0 : i32
    %99 = vector.broadcast %c0_i32_34 : i32 to vector<32x1xi32>
    %100 = arith.cmpi slt, %96, %99 : vector<32x1xi32>
    %c0_i32_35 = arith.constant 0 : i32
    %101 = arith.cmpi slt, %94, %c0_i32_35 : i32
    %102 = vector.broadcast %101 : i1 to vector<32x1xi1>
    %103 = vector.broadcast %102 : vector<32x1xi1> to vector<32x1xi1>
    %104 = arith.xori %100, %103 : vector<32x1xi1>
    %105 = arith.andi %104, %98 : vector<32x1xi1>
    %106 = vector.broadcast %94 : i32 to vector<32x1xi32>
    %107 = arith.addi %96, %106 : vector<32x1xi32>
    %108 = arith.select %105, %107, %96 : vector<32x1xi1>, vector<32x1xi32>
    %c2_i32 = arith.constant 2 : i32
    %109 = tpu.dynamic_rotate %91 by %c2_i32 dim 0 : vector<32x64xf32>, i32 -> vector<32x64xf32>
    %c2_i32_36 = arith.constant 2 : i32
    %110 = vector.broadcast %c2_i32_36 : i32 to vector<32x1xi32>
    %111 = arith.cmpi sge, %108, %110 : vector<32x1xi32>
    %cst_37 = arith.constant 0.000000e+00 : f32
    %112 = vector.shape_cast %111 : vector<32x1xi1> to vector<32x1xi1>
    %113 = vector.broadcast %112 : vector<32x1xi1> to vector<32x64xi1>
    %114 = vector.broadcast %cst_37 : f32 to vector<32x64xf32>
    %115 = arith.select %113, %109, %114 : vector<32x64xi1>, vector<32x64xf32>
    %c1_i32_38 = arith.constant 1 : i32
    %116 = tpu.dynamic_rotate %91 by %c1_i32_38 dim 0 : vector<32x64xf32>, i32 -> vector<32x64xf32>
    %c1_i32_39 = arith.constant 1 : i32
    %117 = vector.broadcast %c1_i32_39 : i32 to vector<32x1xi32>
    %118 = arith.cmpi sge, %108, %117 : vector<32x1xi32>
    %cst_40 = arith.constant 0.000000e+00 : f32
    %119 = vector.shape_cast %118 : vector<32x1xi1> to vector<32x1xi1>
    %120 = vector.broadcast %119 : vector<32x1xi1> to vector<32x64xi1>
    %121 = vector.broadcast %cst_40 : f32 to vector<32x64xf32>
    %122 = arith.select %120, %116, %121 : vector<32x64xi1>, vector<32x64xf32>
    %c31_i32 = arith.constant 31 : i32
    %123 = tpu.dynamic_rotate %91 by %c31_i32 dim 0 : vector<32x64xf32>, i32 -> vector<32x64xf32>
    %c3_i32 = arith.constant 3 : i32
    %124 = vector.broadcast %c3_i32 : i32 to vector<32x1xi32>
    %125 = arith.cmpi slt, %108, %124 : vector<32x1xi32>
    %cst_41 = arith.constant 0.000000e+00 : f32
    %126 = vector.shape_cast %125 : vector<32x1xi1> to vector<32x1xi1>
    %127 = vector.broadcast %126 : vector<32x1xi1> to vector<32x64xi1>
    %128 = vector.broadcast %cst_41 : f32 to vector<32x64xf32>
    %129 = arith.select %127, %123, %128 : vector<32x64xi1>, vector<32x64xf32>
    %c30_i32 = arith.constant 30 : i32
    %130 = tpu.dynamic_rotate %91 by %c30_i32 dim 0 : vector<32x64xf32>, i32 -> vector<32x64xf32>
    %c2_i32_42 = arith.constant 2 : i32
    %131 = vector.broadcast %c2_i32_42 : i32 to vector<32x1xi32>
    %132 = arith.cmpi slt, %108, %131 : vector<32x1xi32>
    %cst_43 = arith.constant 0.000000e+00 : f32
    %133 = vector.shape_cast %132 : vector<32x1xi1> to vector<32x1xi1>
    %134 = vector.broadcast %133 : vector<32x1xi1> to vector<32x64xi1>
    %135 = vector.broadcast %cst_43 : f32 to vector<32x64xf32>
    %136 = arith.select %134, %130, %135 : vector<32x64xi1>, vector<32x64xf32>
    %137 = tpu.concatenate %115, %122, %91, %129, %136 in 1 : vector<32x64xf32>, vector<32x64xf32>, vector<32x64xf32>, vector<32x64xf32>, vector<32x64xf32> -> vector<32x320xf32>
    %138 = arith.truncf %137 : vector<32x320xf32> to vector<32x320xbf16>
    %c0_44 = arith.constant 0 : index
    %c0_45 = arith.constant 0 : index
    %139 = vector.load %arg7[%c0_44, %c0_45] : memref<320x64xbf16, #tpu.memory_space<vmem>>, vector<320x64xbf16>
    %cst_46 = arith.constant dense<0.000000e+00> : vector<32x64xf32>
    %140 = tpu.matmul %138, %139, %cst_46 {dimension_numbers = #tpu.dot_dimension_numbers<[1], [0], [0], [1], [0, 0, 1, 1], [], []>} : vector<32x320xbf16>, vector<320x64xbf16>, vector<32x64xf32> -> vector<32x64xf32>
    %c0_47 = arith.constant 0 : index
    %c0_48 = arith.constant 0 : index
    %141 = vector.load %arg8[%c0_47, %c0_48] : memref<1x64xf32, #tpu.memory_space<vmem>>, vector<1x64xf32>
    %142 = vector.broadcast %141 : vector<1x64xf32> to vector<32x64xf32>
    %143 = arith.addf %140, %142 : vector<32x64xf32>
    %144 = vector.shape_cast %143 : vector<32x64xf32> to vector<16x2x64xf32>
    %cst_49 = arith.constant dense<0xFF800000> : vector<16x64xf32>
    %145 = vector.multi_reduction <maximumf>, %144, %cst_49 [1] : vector<16x2x64xf32> to vector<16x64xf32>
    %cst_50 = arith.constant 0.000000e+00 : f32
    %146 = vector.broadcast %cst_50 : f32 to vector<16x64xf32>
    %147 = arith.maximumf %145, %146 : vector<16x64xf32>
    %148 = tpu.iota {dimensions = array<i32: 0>} : vector<16x1xi32>
    %c2_i32_51 = arith.constant 2 : i32
    %c0_i32_52 = arith.constant 0 : i32
    %149 = arith.cmpi eq, %c2_i32_51, %c0_i32_52 : i32
    %c1_i32_53 = arith.constant 1 : i32
    %150 = arith.select %149, %c1_i32_53, %c2_i32_51 : i32
    %151 = vector.broadcast %150 : i32 to vector<16x1xi32>
    %152 = arith.remsi %148, %151 : vector<16x1xi32>
    %c0_i32_54 = arith.constant 0 : i32
    %153 = vector.broadcast %c0_i32_54 : i32 to vector<16x1xi32>
    %154 = arith.cmpi ne, %152, %153 : vector<16x1xi32>
    %c0_i32_55 = arith.constant 0 : i32
    %155 = vector.broadcast %c0_i32_55 : i32 to vector<16x1xi32>
    %156 = arith.cmpi slt, %152, %155 : vector<16x1xi32>
    %c0_i32_56 = arith.constant 0 : i32
    %157 = arith.cmpi slt, %150, %c0_i32_56 : i32
    %158 = vector.broadcast %157 : i1 to vector<16x1xi1>
    %159 = vector.broadcast %158 : vector<16x1xi1> to vector<16x1xi1>
    %160 = arith.xori %156, %159 : vector<16x1xi1>
    %161 = arith.andi %160, %154 : vector<16x1xi1>
    %162 = vector.broadcast %150 : i32 to vector<16x1xi32>
    %163 = arith.addi %152, %162 : vector<16x1xi32>
    %164 = arith.select %161, %163, %152 : vector<16x1xi1>, vector<16x1xi32>
    %c1_i32_57 = arith.constant 1 : i32
    %165 = tpu.dynamic_rotate %147 by %c1_i32_57 dim 0 : vector<16x64xf32>, i32 -> vector<16x64xf32>
    %c1_i32_58 = arith.constant 1 : i32
    %166 = vector.broadcast %c1_i32_58 : i32 to vector<16x1xi32>
    %167 = arith.cmpi sge, %164, %166 : vector<16x1xi32>
    %cst_59 = arith.constant 0.000000e+00 : f32
    %168 = vector.shape_cast %167 : vector<16x1xi1> to vector<16x1xi1>
    %169 = vector.broadcast %168 : vector<16x1xi1> to vector<16x64xi1>
    %170 = vector.broadcast %cst_59 : f32 to vector<16x64xf32>
    %171 = arith.select %169, %165, %170 : vector<16x64xi1>, vector<16x64xf32>
    %c15_i32_60 = arith.constant 15 : i32
    %172 = tpu.dynamic_rotate %147 by %c15_i32_60 dim 0 : vector<16x64xf32>, i32 -> vector<16x64xf32>
    %c1_i32_61 = arith.constant 1 : i32
    %173 = vector.broadcast %c1_i32_61 : i32 to vector<16x1xi32>
    %174 = arith.cmpi slt, %164, %173 : vector<16x1xi32>
    %cst_62 = arith.constant 0.000000e+00 : f32
    %175 = vector.shape_cast %174 : vector<16x1xi1> to vector<16x1xi1>
    %176 = vector.broadcast %175 : vector<16x1xi1> to vector<16x64xi1>
    %177 = vector.broadcast %cst_62 : f32 to vector<16x64xf32>
    %178 = arith.select %176, %172, %177 : vector<16x64xi1>, vector<16x64xf32>
    %179 = tpu.concatenate %171, %147, %178 in 1 : vector<16x64xf32>, vector<16x64xf32>, vector<16x64xf32> -> vector<16x192xf32>
    %180 = arith.truncf %179 : vector<16x192xf32> to vector<16x192xbf16>
    %c0_63 = arith.constant 0 : index
    %c0_64 = arith.constant 0 : index
    %181 = vector.load %arg9[%c0_63, %c0_64] : memref<192x64xbf16, #tpu.memory_space<vmem>>, vector<192x64xbf16>
    %cst_65 = arith.constant dense<0.000000e+00> : vector<16x64xf32>
    %182 = tpu.matmul %180, %181, %cst_65 {dimension_numbers = #tpu.dot_dimension_numbers<[1], [0], [0], [1], [0, 0, 1, 1], [], []>} : vector<16x192xbf16>, vector<192x64xbf16>, vector<16x64xf32> -> vector<16x64xf32>
    %c0_66 = arith.constant 0 : index
    %c0_67 = arith.constant 0 : index
    %183 = vector.load %arg10[%c0_66, %c0_67] : memref<1x64xf32, #tpu.memory_space<vmem>>, vector<1x64xf32>
    %184 = vector.broadcast %183 : vector<1x64xf32> to vector<16x64xf32>
    %185 = arith.addf %182, %184 : vector<16x64xf32>
    %186 = vector.shape_cast %185 : vector<16x64xf32> to vector<8x2x64xf32>
    %cst_68 = arith.constant dense<0xFF800000> : vector<8x64xf32>
    %187 = vector.multi_reduction <maximumf>, %186, %cst_68 [1] : vector<8x2x64xf32> to vector<8x64xf32>
    %cst_69 = arith.constant 0.000000e+00 : f32
    %188 = vector.broadcast %cst_69 : f32 to vector<8x64xf32>
    %189 = arith.maximumf %187, %188 : vector<8x64xf32>
    %190 = arith.truncf %189 : vector<8x64xf32> to vector<8x64xbf16>
    %c0_70 = arith.constant 0 : index
    %c0_71 = arith.constant 0 : index
    %191 = vector.load %arg11[%c0_70, %c0_71] : memref<64x256xbf16, #tpu.memory_space<vmem>>, vector<64x256xbf16>
    %cst_72 = arith.constant dense<0.000000e+00> : vector<8x256xf32>
    %192 = tpu.matmul %190, %191, %cst_72 {dimension_numbers = #tpu.dot_dimension_numbers<[1], [0], [0], [1], [0, 0, 1, 1], [], []>} : vector<8x64xbf16>, vector<64x256xbf16>, vector<8x256xf32> -> vector<8x256xf32>
    %c0_73 = arith.constant 0 : index
    %c0_74 = arith.constant 0 : index
    %193 = vector.load %arg2[%c0_73, %c0_74] : memref<8x64xbf16, #tpu.memory_space<vmem>>, vector<8x64xbf16>
    %c0_75 = arith.constant 0 : index
    %c0_76 = arith.constant 0 : index
    %194 = vector.load %arg12[%c0_75, %c0_76] : memref<64x256xbf16, #tpu.memory_space<vmem>>, vector<64x256xbf16>
    %cst_77 = arith.constant dense<0.000000e+00> : vector<8x256xf32>
    %195 = tpu.matmul %193, %194, %cst_77 {dimension_numbers = #tpu.dot_dimension_numbers<[1], [0], [0], [1], [0, 0, 1, 1], [], []>} : vector<8x64xbf16>, vector<64x256xbf16>, vector<8x256xf32> -> vector<8x256xf32>
    %196 = arith.addf %192, %195 : vector<8x256xf32>
    %c0_78 = arith.constant 0 : index
    %c0_79 = arith.constant 0 : index
    %197 = vector.load %arg13[%c0_78, %c0_79] : memref<1x256xf32, #tpu.memory_space<vmem>>, vector<1x256xf32>
    %198 = vector.broadcast %197 : vector<1x256xf32> to vector<8x256xf32>
    %199 = arith.addf %196, %198 : vector<8x256xf32>
    %cst_80 = arith.constant 0.000000e+00 : f32
    %200 = vector.broadcast %cst_80 : f32 to vector<8x256xf32>
    %201 = arith.maximumf %199, %200 : vector<8x256xf32>
    %202 = arith.truncf %201 : vector<8x256xf32> to vector<8x256xbf16>
    %c0_81 = arith.constant 0 : index
    %c0_82 = arith.constant 0 : index
    %203 = vector.load %arg14[%c0_81, %c0_82] : memref<256x128xbf16, #tpu.memory_space<vmem>>, vector<256x128xbf16>
    %cst_83 = arith.constant dense<0.000000e+00> : vector<8x128xf32>
    %204 = tpu.matmul %202, %203, %cst_83 {dimension_numbers = #tpu.dot_dimension_numbers<[1], [0], [0], [1], [0, 0, 1, 1], [], []>} : vector<8x256xbf16>, vector<256x128xbf16>, vector<8x128xf32> -> vector<8x128xf32>
    %c0_84 = arith.constant 0 : index
    %c0_85 = arith.constant 0 : index
    %205 = vector.load %arg15[%c0_84, %c0_85] : memref<1x128xf32, #tpu.memory_space<vmem>>, vector<1x128xf32>
    %206 = vector.broadcast %205 : vector<1x128xf32> to vector<8x128xf32>
    %207 = arith.addf %204, %206 : vector<8x128xf32>
    %c0_86 = arith.constant 0 : index
    %c0_87 = arith.constant 0 : index
    %208 = vector.load %arg16[%c0_86, %c0_87] : memref<8x128xf32, #tpu.memory_space<vmem>>, vector<8x128xf32>
    tpu.vector_store %arg16[%c0_86, %c0_87], %207 {strides = array<i32>} : memref<8x128xf32, #tpu.memory_space<vmem>>, vector<8x128xf32>,
    return
  }
  func.func @transform_0(%arg0: i32) -> (i32, i32) {
    %c0_i32 = arith.constant 0 : i32
    %c0_i32_0 = arith.constant 0 : i32
    return %arg0, %c0_i32 : i32, i32
  }
  func.func @transform_1(%arg0: i32) -> (i32, i32) {
    %c0_i32 = arith.constant 0 : i32
    %c0_i32_0 = arith.constant 0 : i32
    return %arg0, %c0_i32 : i32, i32
  }
  func.func @transform_2(%arg0: i32) -> (i32, i32) {
    %c0_i32 = arith.constant 0 : i32
    %c0_i32_0 = arith.constant 0 : i32
    %c0_i32_1 = arith.constant 0 : i32
    return %c0_i32, %c0_i32_0 : i32, i32
  }
  func.func @transform_3(%arg0: i32) -> (i32, i32) {
    %c0_i32 = arith.constant 0 : i32
    %c0_i32_0 = arith.constant 0 : i32
    %c0_i32_1 = arith.constant 0 : i32
    return %c0_i32, %c0_i32_0 : i32, i32
  }
  func.func @transform_4(%arg0: i32) -> (i32, i32) {
    %c0_i32 = arith.constant 0 : i32
    %c0_i32_0 = arith.constant 0 : i32
    %c0_i32_1 = arith.constant 0 : i32
    return %c0_i32, %c0_i32_0 : i32, i32
  }
  func.func @transform_5(%arg0: i32) -> (i32, i32) {
    %c0_i32 = arith.constant 0 : i32
    %c0_i32_0 = arith.constant 0 : i32
    %c0_i32_1 = arith.constant 0 : i32
    return %c0_i32, %c0_i32_0 : i32, i32
  }
  func.func @transform_6(%arg0: i32) -> (i32, i32) {
    %c0_i32 = arith.constant 0 : i32
    %c0_i32_0 = arith.constant 0 : i32
    %c0_i32_1 = arith.constant 0 : i32
    return %c0_i32, %c0_i32_0 : i32, i32
  }
  func.func @transform_7(%arg0: i32) -> (i32, i32) {
    %c0_i32 = arith.constant 0 : i32
    %c0_i32_0 = arith.constant 0 : i32
    %c0_i32_1 = arith.constant 0 : i32
    return %c0_i32, %c0_i32_0 : i32, i32
  }
  func.func @transform_8(%arg0: i32) -> (i32, i32) {
    %c0_i32 = arith.constant 0 : i32
    %c0_i32_0 = arith.constant 0 : i32
    %c0_i32_1 = arith.constant 0 : i32
    return %c0_i32, %c0_i32_0 : i32, i32
  }
  func.func @transform_9(%arg0: i32) -> (i32, i32) {
    %c0_i32 = arith.constant 0 : i32
    %c0_i32_0 = arith.constant 0 : i32
    %c0_i32_1 = arith.constant 0 : i32
    return %c0_i32, %c0_i32_0 : i32, i32
  }
  func.func @transform_10(%arg0: i32) -> (i32, i32) {
    %c0_i32 = arith.constant 0 : i32
    %c0_i32_0 = arith.constant 0 : i32
    %c0_i32_1 = arith.constant 0 : i32
    return %c0_i32, %c0_i32_0 : i32, i32
  }
  func.func @transform_11(%arg0: i32) -> (i32, i32) {
    %c0_i32 = arith.constant 0 : i32
    %c0_i32_0 = arith.constant 0 : i32
    %c0_i32_1 = arith.constant 0 : i32
    return %c0_i32, %c0_i32_0 : i32, i32
  }
  func.func @transform_12(%arg0: i32) -> (i32, i32) {
    %c0_i32 = arith.constant 0 : i32
    %c0_i32_0 = arith.constant 0 : i32
    %c0_i32_1 = arith.constant 0 : i32
    return %c0_i32, %c0_i32_0 : i32, i32
  }
  func.func @transform_13(%arg0: i32) -> (i32, i32) {
    %c0_i32 = arith.constant 0 : i32
    %c0_i32_0 = arith.constant 0 : i32
    %c0_i32_1 = arith.constant 0 : i32
    return %c0_i32, %c0_i32_0 : i32, i32
  }
  func.func @transform_14(%arg0: i32) -> (i32, i32) {
    %c0_i32 = arith.constant 0 : i32
    %c0_i32_0 = arith.constant 0 : i32
    %c0_i32_1 = arith.constant 0 : i32
    return %c0_i32, %c0_i32_0 : i32, i32
  }
  func.func @transform_15(%arg0: i32) -> (i32, i32) {
    %c0_i32 = arith.constant 0 : i32
    %c0_i32_0 = arith.constant 0 : i32
    return %arg0, %c0_i32 : i32, i32
  }
}

</mosaic_0001>

<llo_original>
// kernel: tpu_custom_call.1
$region0: #{tpu_custom_call.1}
  #allocation0 [shape = 'u32[]', space=smem, size = 0x4, offset = 0x4, fixed_abs, tag = 'smem constant byte address 0x4 - core index']
  #allocation1 [shape = 'u32[144,128]{1,0:T(1,128)}', space=vmem, size = 0x12000, scoped, tag = 'internal scratch']
  %s0 = inlined_call_operand.vmem [shape: f32[128,4], index: 0, kind: input, shape index: {}]
  %s1 = inlined_call_operand.vmem [shape: bf16[8,64], index: 1, kind: input, shape index: {}]
  %s2 = inlined_call_operand.vmem [shape: bf16[12,64], index: 2, kind: input, shape index: {}]
  %s3 = inlined_call_operand.vmem [shape: f32[1,64], index: 3, kind: input, shape index: {}]
  %s4 = inlined_call_operand.vmem [shape: bf16[256,64], index: 4, kind: input, shape index: {}]
  %s5 = inlined_call_operand.vmem [shape: f32[1,64], index: 5, kind: input, shape index: {}]
  %s6 = inlined_call_operand.vmem [shape: bf16[320,64], index: 6, kind: input, shape index: {}]
  %s7 = inlined_call_operand.vmem [shape: f32[1,64], index: 7, kind: input, shape index: {}]
  %s8 = inlined_call_operand.vmem [shape: bf16[192,64], index: 8, kind: input, shape index: {}]
  %s9 = inlined_call_operand.vmem [shape: f32[1,64], index: 9, kind: input, shape index: {}]
  %s10 = inlined_call_operand.vmem [shape: bf16[64,256], index: 10, kind: input, shape index: {}]
  %s11 = inlined_call_operand.vmem [shape: bf16[64,256], index: 11, kind: input, shape index: {}]
  %s12 = inlined_call_operand.vmem [shape: f32[1,256], index: 12, kind: input, shape index: {}]
  %s13 = inlined_call_operand.vmem [shape: bf16[256,128], index: 13, kind: input, shape index: {}]
  %s14 = inlined_call_operand.vmem [shape: f32[1,128], index: 14, kind: input, shape index: {}]
  %s15 = inlined_call_operand.hbm [shape: f32[8,128], index: 15, kind: output, shape index: {}]
  %s16 = sld [smem:[#allocation0]]
  $region70: #{tpu_custom_call.1} parent=0
    _
  %s18 = ssub.s32 1, %s16
  %s19 = scalar_select 0, %s18, %s16
  $region1: #{tpu_custom_call.1} parent=0
    #allocation2 [shape = 'u8[4096]{0}', space=vmem, size = 0x1000, scoped, tag = 'output window, operand 0, single buffered']
    #allocation3 [shape = 's32[1]{0}', space=sflag, size = 0x4, scoped, tag = 'scoped memory for tpu_custom_call.1']
    %20 = vsyncpa [#allocation3], 0
    // Predicated region
    $region2: #{tpu_custom_call.1} parent=1 // pred_check
      _
    $region3: #{tpu_custom_call.1} parent=1 // pred_check_branch
      %22 = sbr.rel (0) target = $region5
    $region4: #{tpu_custom_call.1} parent=1 // pred_region
      _
    $region5: #{tpu_custom_call.1} parent=1 // pred_fallthru
      _
    // Predicated region
    $region6: #{tpu_custom_call.1} parent=1 // pred_check
      _
    $region7: #{tpu_custom_call.1} parent=1 // pred_check_branch
      %24 = sbr.rel (0) target = $region9
    $region8: #{tpu_custom_call.1} parent=1 // pred_region
      _
    $region9: #{tpu_custom_call.1} parent=1 // pred_fallthru
      _
    // Predicated region
    $region10: #{tpu_custom_call.1} parent=1 // pred_check
      _
    $region11: #{tpu_custom_call.1} parent=1 // pred_check_branch
      %26 = sbr.rel (0) target = $region13
    $region12: #{tpu_custom_call.1} parent=1 // pred_region
      _
    $region13: #{tpu_custom_call.1} parent=1 // pred_fallthru
      _
    // Predicated region
    $region14: #{tpu_custom_call.1} parent=1 // pred_check
      _
    $region15: #{tpu_custom_call.1} parent=1 // pred_check_branch
      %28 = sbr.rel (0) target = $region17
    $region16: #{tpu_custom_call.1} parent=1 // pred_region
      _
    $region17: #{tpu_custom_call.1} parent=1 // pred_fallthru
      _
    // Predicated region
    $region18: #{tpu_custom_call.1} parent=1 // pred_check
      _
    $region19: #{tpu_custom_call.1} parent=1 // pred_check_branch
      %30 = sbr.rel (0) target = $region21
    $region20: #{tpu_custom_call.1} parent=1 // pred_region
      _
    $region21: #{tpu_custom_call.1} parent=1 // pred_fallthru
      _
    // Predicated region
    $region22: #{tpu_custom_call.1} parent=1 // pred_check
      _
    $region23: #{tpu_custom_call.1} parent=1 // pred_check_branch
      %32 = sbr.rel (0) target = $region25
    $region24: #{tpu_custom_call.1} parent=1 // pred_region
      _
    $region25: #{tpu_custom_call.1} parent=1 // pred_fallthru
      _
    // Predicated region
    $region26: #{tpu_custom_call.1} parent=1 // pred_check
      _
    $region27: #{tpu_custom_call.1} parent=1 // pred_check_branch
      %34 = sbr.rel (0) target = $region29
    $region28: #{tpu_custom_call.1} parent=1 // pred_region
      _
    $region29: #{tpu_custom_call.1} parent=1 // pred_fallthru
      _
    // Predicated region
    $region30: #{tpu_custom_call.1} parent=1 // pred_check
      _
    $region31: #{tpu_custom_call.1} parent=1 // pred_check_branch
      %36 = sbr.rel (0) target = $region33
    $region32: #{tpu_custom_call.1} parent=1 // pred_region
      _
    $region33: #{tpu_custom_call.1} parent=1 // pred_fallthru
      _
    // Predicated region
    $region34: #{tpu_custom_call.1} parent=1 // pred_check
      _
    $region35: #{tpu_custom_call.1} parent=1 // pred_check_branch
      %38 = sbr.rel (0) target = $region37
    $region36: #{tpu_custom_call.1} parent=1 // pred_region
      _
    $region37: #{tpu_custom_call.1} parent=1 // pred_fallthru
      _
    // Predicated region
    $region38: #{tpu_custom_call.1} parent=1 // pred_check
      _
    $region39: #{tpu_custom_call.1} parent=1 // pred_check_branch
      %40 = sbr.rel (0) target = $region41
    $region40: #{tpu_custom_call.1} parent=1 // pred_region
      _
    $region41: #{tpu_custom_call.1} parent=1 // pred_fallthru
      _
    // Predicated region
    $region42: #{tpu_custom_call.1} parent=1 // pred_check
      _
    $region43: #{tpu_custom_call.1} parent=1 // pred_check_branch
      %42 = sbr.rel (0) target = $region45
    $region44: #{tpu_custom_call.1} parent=1 // pred_region
      _
    $region45: #{tpu_custom_call.1} parent=1 // pred_fallthru
      _
    // Predicated region
    $region46: #{tpu_custom_call.1} parent=1 // pred_check
      _
    $region47: #{tpu_custom_call.1} parent=1 // pred_check_branch
      %44 = sbr.rel (0) target = $region49
    $region48: #{tpu_custom_call.1} parent=1 // pred_region
      _
    $region49: #{tpu_custom_call.1} parent=1 // pred_fallthru
      _
    // Predicated region
    $region50: #{tpu_custom_call.1} parent=1 // pred_check
      _
    $region51: #{tpu_custom_call.1} parent=1 // pred_check_branch
      %46 = sbr.rel (0) target = $region53
    $region52: #{tpu_custom_call.1} parent=1 // pred_region
      _
    $region53: #{tpu_custom_call.1} parent=1 // pred_fallthru
      _
    // Predicated region
    $region54: #{tpu_custom_call.1} parent=1 // pred_check
      _
    $region55: #{tpu_custom_call.1} parent=1 // pred_check_branch
      %48 = sbr.rel (0) target = $region57
    $region56: #{tpu_custom_call.1} parent=1 // pred_region
      _
    $region57: #{tpu_custom_call.1} parent=1 // pred_fallthru
      _
    // Predicated region
    $region58: #{tpu_custom_call.1} parent=1 // pred_check
      _
    $region59: #{tpu_custom_call.1} parent=1 // pred_check_branch
      %50 = sbr.rel (0) target = $region61
    $region60: #{tpu_custom_call.1} parent=1 // pred_region
      _
    $region61: #{tpu_custom_call.1} parent=1 // pred_fallthru
      _
    %v52 = vld [vmem:[%s0] sm:$0xff]
    %v53 = vld [vmem:[%s0 + $0x8] sm:$0xff]
    %v54 = vld [vmem:[%s0 + $0x10] sm:$0xff]
    %v55 = vld [vmem:[%s0 + $0x18] sm:$0xff]
    %v56 = vld [vmem:[%s0 + $0x20] sm:$0xff]
    %v57 = vld [vmem:[%s0 + $0x28] sm:$0xff]
    %v58 = vld [vmem:[%s0 + $0x30] sm:$0xff]
    %v59 = vld [vmem:[%s0 + $0x38] sm:$0xff]
    %v60 = vld [vmem:[%s0 + $0x40] sm:$0xff]
    %v61 = vld [vmem:[%s0 + $0x48] sm:$0xff]
    %v62 = vld [vmem:[%s0 + $0x50] sm:$0xff]
    %v63 = vld [vmem:[%s0 + $0x58] sm:$0xff]
    %v64 = vld [vmem:[%s0 + $0x60] sm:$0xff]
    %v65 = vld [vmem:[%s0 + $0x68] sm:$0xff]
    %v66 = vld [vmem:[%s0 + $0x70] sm:$0xff]
    %v67 = vld [vmem:[%s0 + $0x78] sm:$0xff]
    %v68 = vlaneseq
    %v69 = vshrl.u32 %v68, 7
    %v70 = vadd.s32 %v69, 8
    %v71 = vadd.s32 %v69, 16
    %v72 = vadd.s32 %v69, 24
    %v73 = vadd.s32 %v69, 32
    %v74 = vadd.s32 %v69, 40
    %v75 = vadd.s32 %v69, 48
    %v76 = vadd.s32 %v69, 56
    %v77 = vadd.s32 %v69, 64
    %v78 = vadd.s32 %v69, 72
    %v79 = vadd.s32 %v69, 80
    %v80 = vadd.s32 %v69, 88
    %v81 = vadd.s32 %v69, 96
    %v82 = vadd.s32 %v69, 104
    %v83 = vadd.s32 %v69, 112
    %v84 = vadd.s32 %v69, 120
    %vm85 = vcmp.lt.s32.totalorder %v69, 0
    %v86 = vsub.s32 0, %v69
    %v87 = vsel %vm85, %v86, %v69
    %v88 = vshrl.u32 %v87, 4
    %v89 = vand.u32 %v87, 15
    %v90 = vsub.s32 0, %v89
    %v91 = vsel %vm85, %v90, %v89
    %vm92 = vcmp.lt.s32.totalorder %v70, 0
    %v93 = vsub.s32 0, %v70
    %v94 = vsel %vm92, %v93, %v70
    %v95 = vshrl.u32 %v94, 4
    %v96 = vand.u32 %v94, 15
    %v97 = vsub.s32 0, %v96
    %v98 = vsel %vm92, %v97, %v96
    %vm99 = vcmp.lt.s32.totalorder %v71, 0
    %v100 = vsub.s32 0, %v71
    %v101 = vsel %vm99, %v100, %v71
    %v102 = vshrl.u32 %v101, 4
    %v103 = vand.u32 %v101, 15
    %v104 = vsub.s32 0, %v103
    %v105 = vsel %vm99, %v104, %v103
    %vm106 = vcmp.lt.s32.totalorder %v72, 0
    %v107 = vsub.s32 0, %v72
    %v108 = vsel %vm106, %v107, %v72
    %v109 = vshrl.u32 %v108, 4
    %v110 = vand.u32 %v108, 15
    %v111 = vsub.s32 0, %v110
    %v112 = vsel %vm106, %v111, %v110
    %vm113 = vcmp.lt.s32.totalorder %v73, 0
    %v114 = vsub.s32 0, %v73
    %v115 = vsel %vm113, %v114, %v73
    %v116 = vshrl.u32 %v115, 4
    %v117 = vand.u32 %v115, 15
    %v118 = vsub.s32 0, %v117
    %v119 = vsel %vm113, %v118, %v117
    %vm120 = vcmp.lt.s32.totalorder %v74, 0
    %v121 = vsub.s32 0, %v74
    %v122 = vsel %vm120, %v121, %v74
    %v123 = vshrl.u32 %v122, 4
    %v124 = vand.u32 %v122, 15
    %v125 = vsub.s32 0, %v124
    %v126 = vsel %vm120, %v125, %v124
    %vm127 = vcmp.lt.s32.totalorder %v75, 0
    %v128 = vsub.s32 0, %v75
    %v129 = vsel %vm127, %v128, %v75
    %v130 = vshrl.u32 %v129, 4
    %v131 = vand.u32 %v129, 15
    %v132 = vsub.s32 0, %v131
    %v133 = vsel %vm127, %v132, %v131
    %vm134 = vcmp.lt.s32.totalorder %v76, 0
    %v135 = vsub.s32 0, %v76
    %v136 = vsel %vm134, %v135, %v76
    %v137 = vshrl.u32 %v136, 4
    %v138 = vand.u32 %v136, 15
    %v139 = vsub.s32 0, %v138
    %v140 = vsel %vm134, %v139, %v138
    %vm141 = vcmp.lt.s32.totalorder %v77, 0
    %v142 = vsub.s32 0, %v77
    %v143 = vsel %vm141, %v142, %v77
    %v144 = vshrl.u32 %v143, 4
    %v145 = vand.u32 %v143, 15
    %v146 = vsub.s32 0, %v145
    %v147 = vsel %vm141, %v146, %v145
    %vm148 = vcmp.lt.s32.totalorder %v78, 0
    %v149 = vsub.s32 0, %v78
    %v150 = vsel %vm148, %v149, %v78
    %v151 = vshrl.u32 %v150, 4
    %v152 = vand.u32 %v150, 15
    %v153 = vsub.s32 0, %v152
    %v154 = vsel %vm148, %v153, %v152
    %vm155 = vcmp.lt.s32.totalorder %v79, 0
    %v156 = vsub.s32 0, %v79
    %v157 = vsel %vm155, %v156, %v79
    %v158 = vshrl.u32 %v157, 4
    %v159 = vand.u32 %v157, 15
    %v160 = vsub.s32 0, %v159
    %v161 = vsel %vm155, %v160, %v159
    %vm162 = vcmp.lt.s32.totalorder %v80, 0
    %v163 = vsub.s32 0, %v80
    %v164 = vsel %vm162, %v163, %v80
    %v165 = vshrl.u32 %v164, 4
    %v166 = vand.u32 %v164, 15
    %v167 = vsub.s32 0, %v166
    %v168 = vsel %vm162, %v167, %v166
    %vm169 = vcmp.lt.s32.totalorder %v81, 0
    %v170 = vsub.s32 0, %v81
    %v171 = vsel %vm169, %v170, %v81
    %v172 = vshrl.u32 %v171, 4
    %v173 = vand.u32 %v171, 15
    %v174 = vsub.s32 0, %v173
    %v175 = vsel %vm169, %v174, %v173
    %vm176 = vcmp.lt.s32.totalorder %v82, 0
    %v177 = vsub.s32 0, %v82
    %v178 = vsel %vm176, %v177, %v82
    %v179 = vshrl.u32 %v178, 4
    %v180 = vand.u32 %v178, 15
    %v181 = vsub.s32 0, %v180
    %v182 = vsel %vm176, %v181, %v180
    %vm183 = vcmp.lt.s32.totalorder %v83, 0
    %v184 = vsub.s32 0, %v83
    %v185 = vsel %vm183, %v184, %v83
    %v186 = vshrl.u32 %v185, 4
    %v187 = vand.u32 %v185, 15
    %v188 = vsub.s32 0, %v187
    %v189 = vsel %vm183, %v188, %v187
    %vm190 = vcmp.lt.s32.totalorder %v84, 0
    %v191 = vsub.s32 0, %v84
    %v192 = vsel %vm190, %v191, %v84
    %v193 = vshrl.u32 %v192, 4
    %v194 = vand.u32 %v192, 15
    %v195 = vsub.s32 0, %v194
    %v196 = vsel %vm190, %v195, %v194
    %vm197 = vcmp.ne.s32.totalorder %v91, 0
    %vm198 = vcmp.ne.s32.totalorder %v98, 0
    %vm199 = vcmp.ne.s32.totalorder %v105, 0
    %vm200 = vcmp.ne.s32.totalorder %v112, 0
    %vm201 = vcmp.ne.s32.totalorder %v119, 0
    %vm202 = vcmp.ne.s32.totalorder %v126, 0
    %vm203 = vcmp.ne.s32.totalorder %v133, 0
    %vm204 = vcmp.ne.s32.totalorder %v140, 0
    %vm205 = vcmp.ne.s32.totalorder %v147, 0
    %vm206 = vcmp.ne.s32.totalorder %v154, 0
    %vm207 = vcmp.ne.s32.totalorder %v161, 0
    %vm208 = vcmp.ne.s32.totalorder %v168, 0
    %vm209 = vcmp.ne.s32.totalorder %v175, 0
    %vm210 = vcmp.ne.s32.totalorder %v182, 0
    %vm211 = vcmp.ne.s32.totalorder %v189, 0
    %vm212 = vcmp.ne.s32.totalorder %v196, 0
    %vm213 = vcmp.lt.s32.totalorder %v91, 0
    %vm214 = vcmp.lt.s32.totalorder %v98, 0
    %vm215 = vcmp.lt.s32.totalorder %v105, 0
    %vm216 = vcmp.lt.s32.totalorder %v112, 0
    %vm217 = vcmp.lt.s32.totalorder %v119, 0
    %vm218 = vcmp.lt.s32.totalorder %v126, 0
    %vm219 = vcmp.lt.s32.totalorder %v133, 0
    %vm220 = vcmp.lt.s32.totalorder %v140, 0
    %vm221 = vcmp.lt.s32.totalorder %v147, 0
    %vm222 = vcmp.lt.s32.totalorder %v154, 0
    %vm223 = vcmp.lt.s32.totalorder %v161, 0
    %vm224 = vcmp.lt.s32.totalorder %v168, 0
    %vm225 = vcmp.lt.s32.totalorder %v175, 0
    %vm226 = vcmp.lt.s32.totalorder %v182, 0
    %vm227 = vcmp.lt.s32.totalorder %v189, 0
    %vm228 = vcmp.lt.s32.totalorder %v196, 0
    %vm229 = vmand %vm213, %vm197
    %vm230 = vmand %vm214, %vm198
    %vm231 = vmand %vm215, %vm199
    %vm232 = vmand %vm216, %vm200
    %vm233 = vmand %vm217, %vm201
    %vm234 = vmand %vm218, %vm202
    %vm235 = vmand %vm219, %vm203
    %vm236 = vmand %vm220, %vm204
    %vm237 = vmand %vm221, %vm205
    %vm238 = vmand %vm222, %vm206
    %vm239 = vmand %vm223, %vm207
    %vm240 = vmand %vm224, %vm208
    %vm241 = vmand %vm225, %vm209
    %vm242 = vmand %vm226, %vm210
    %vm243 = vmand %vm227, %vm211
    %vm244 = vmand %vm228, %vm212
    %v245 = vadd.s32 %v91, 16
    %v246 = vadd.s32 %v98, 16
    %v247 = vadd.s32 %v105, 16
    %v248 = vadd.s32 %v112, 16
    %v249 = vadd.s32 %v119, 16
    %v250 = vadd.s32 %v126, 16
    %v251 = vadd.s32 %v133, 16
    %v252 = vadd.s32 %v140, 16
    %v253 = vadd.s32 %v147, 16
    %v254 = vadd.s32 %v154, 16
    %v255 = vadd.s32 %v161, 16
    %v256 = vadd.s32 %v168, 16
    %v257 = vadd.s32 %v175, 16
    %v258 = vadd.s32 %v182, 16
    %v259 = vadd.s32 %v189, 16
    %v260 = vadd.s32 %v196, 16
    %v261 = vsel %vm229, %v245, %v91
    %v262 = vsel %vm230, %v246, %v98
    %v263 = vsel %vm231, %v247, %v105
    %v264 = vsel %vm232, %v248, %v112
    %v265 = vsel %vm233, %v249, %v119
    %v266 = vsel %vm234, %v250, %v126
    %v267 = vsel %vm235, %v251, %v133
    %v268 = vsel %vm236, %v252, %v140
    %v269 = vsel %vm237, %v253, %v147
    %v270 = vsel %vm238, %v254, %v154
    %v271 = vsel %vm239, %v255, %v161
    %v272 = vsel %vm240, %v256, %v168
    %v273 = vsel %vm241, %v257, %v175
    %v274 = vsel %vm242, %v258, %v182
    %v275 = vsel %vm243, %v259, %v189
    %v276 = vsel %vm244, %v260, %v196
    %v277 = vrot.slane %v52, 7
    %v278 = vrot.slane %v53, 7
    %v279 = vrot.slane %v54, 7
    %v280 = vrot.slane %v55, 7
    %v281 = vrot.slane %v56, 7
    %v282 = vrot.slane %v57, 7
    %v283 = vrot.slane %v58, 7
    %v284 = vrot.slane %v59, 7
    %v285 = vrot.slane %v60, 7
    %v286 = vrot.slane %v61, 7
    %v287 = vrot.slane %v62, 7
    %v288 = vrot.slane %v63, 7
    %v289 = vrot.slane %v64, 7
    %v290 = vrot.slane %v65, 7
    %v291 = vrot.slane %v66, 7
    %v292 = vrot.slane %v67, 7
    %vm293 = vcmp.lt.s32.totalorder %v69, 1
    %v294 = vsel %vm293, %v291, %v292
    %v295 = vsel %vm293, %v290, %v291
    %v296 = vsel %vm293, %v289, %v290
    %v297 = vsel %vm293, %v288, %v289
    %v298 = vsel %vm293, %v287, %v288
    %v299 = vsel %vm293, %v286, %v287
    %v300 = vsel %vm293, %v285, %v286
    %v301 = vsel %vm293, %v284, %v285
    %v302 = vsel %vm293, %v283, %v284
    %v303 = vsel %vm293, %v282, %v283
    %v304 = vsel %vm293, %v281, %v282
    %v305 = vsel %vm293, %v280, %v281
    %v306 = vsel %vm293, %v279, %v280
    %v307 = vsel %vm293, %v278, %v279
    %v308 = vsel %vm293, %v277, %v278
    %v309 = vsel %vm293, %v292, %v277
    %vm310 = vcmp.ge.s32.totalorder %v261, 1
    %vm311 = vcmp.ge.s32.totalorder %v262, 1
    %vm312 = vcmp.ge.s32.totalorder %v263, 1
    %vm313 = vcmp.ge.s32.totalorder %v264, 1
    %vm314 = vcmp.ge.s32.totalorder %v265, 1
    %vm315 = vcmp.ge.s32.totalorder %v266, 1
    %vm316 = vcmp.ge.s32.totalorder %v267, 1
    %vm317 = vcmp.ge.s32.totalorder %v268, 1
    %vm318 = vcmp.ge.s32.totalorder %v269, 1
    %vm319 = vcmp.ge.s32.totalorder %v270, 1
    %vm320 = vcmp.ge.s32.totalorder %v271, 1
    %vm321 = vcmp.ge.s32.totalorder %v272, 1
    %vm322 = vcmp.ge.s32.totalorder %v273, 1
    %vm323 = vcmp.ge.s32.totalorder %v274, 1
    %vm324 = vcmp.ge.s32.totalorder %v275, 1
    %vm325 = vcmp.ge.s32.totalorder %v276, 1
    %v326 = vsel %vm310, 1, 0
    %v327 = vsel %vm311, 1, 0
    %v328 = vsel %vm312, 1, 0
    %v329 = vsel %vm313, 1, 0
    %v330 = vsel %vm314, 1, 0
    %v331 = vsel %vm315, 1, 0
    %v332 = vsel %vm316, 1, 0
    %v333 = vsel %vm317, 1, 0
    %v334 = vsel %vm318, 1, 0
    %v335 = vsel %vm319, 1, 0
    %v336 = vsel %vm320, 1, 0
    %v337 = vsel %vm321, 1, 0
    %v338 = vsel %vm322, 1, 0
    %v339 = vsel %vm323, 1, 0
    %v340 = vsel %vm324, 1, 0
    %v341 = vsel %vm325, 1, 0
    %vm342 = vcmp.eq.s32.totalorder %v326, 1
    %vm343 = vcmp.eq.s32.totalorder %v327, 1
    %vm344 = vcmp.eq.s32.totalorder %v328, 1
    %vm345 = vcmp.eq.s32.totalorder %v329, 1
    %vm346 = vcmp.eq.s32.totalorder %v330, 1
    %vm347 = vcmp.eq.s32.totalorder %v331, 1
    %vm348 = vcmp.eq.s32.totalorder %v332, 1
    %vm349 = vcmp.eq.s32.totalorder %v333, 1
    %vm350 = vcmp.eq.s32.totalorder %v334, 1
    %vm351 = vcmp.eq.s32.totalorder %v335, 1
    %vm352 = vcmp.eq.s32.totalorder %v336, 1
    %vm353 = vcmp.eq.s32.totalorder %v337, 1
    %vm354 = vcmp.eq.s32.totalorder %v338, 1
    %vm355 = vcmp.eq.s32.totalorder %v339, 1
    %vm356 = vcmp.eq.s32.totalorder %v340, 1
    %vm357 = vcmp.eq.s32.totalorder %v341, 1
    %v358 = vsel %vm342, %v309, 0.0
    %v359 = vsel %vm343, %v308, 0.0
    %v360 = vsel %vm344, %v307, 0.0
    %v361 = vsel %vm345, %v306, 0.0
    %v362 = vsel %vm346, %v305, 0.0
    %v363 = vsel %vm347, %v304, 0.0
    %v364 = vsel %vm348, %v303, 0.0
    %v365 = vsel %vm349, %v302, 0.0
    %v366 = vsel %vm350, %v301, 0.0
    %v367 = vsel %vm351, %v300, 0.0
    %v368 = vsel %vm352, %v299, 0.0
    %v369 = vsel %vm353, %v298, 0.0
    %v370 = vsel %vm354, %v297, 0.0
    %v371 = vsel %vm355, %v296, 0.0
    %v372 = vsel %vm356, %v295, 0.0
    %v373 = vsel %vm357, %v294, 0.0
    %v374 = vrot.slane %v52, 1
    %v375 = vrot.slane %v53, 1
    %v376 = vrot.slane %v54, 1
    %v377 = vrot.slane %v55, 1
    %v378 = vrot.slane %v56, 1
    %v379 = vrot.slane %v57, 1
    %v380 = vrot.slane %v58, 1
    %v381 = vrot.slane %v59, 1
    %v382 = vrot.slane %v60, 1
    %v383 = vrot.slane %v61, 1
    %v384 = vrot.slane %v62, 1
    %v385 = vrot.slane %v63, 1
    %v386 = vrot.slane %v64, 1
    %v387 = vrot.slane %v65, 1
    %v388 = vrot.slane %v66, 1
    %v389 = vrot.slane %v67, 1
    %vm390 = vcmp.lt.s32.totalorder %v69, 7
    %v391 = vsel %vm390, %v388, %v389
    %v392 = vsel %vm390, %v387, %v388
    %v393 = vsel %vm390, %v386, %v387
    %v394 = vsel %vm390, %v385, %v386
    %v395 = vsel %vm390, %v384, %v385
    %v396 = vsel %vm390, %v383, %v384
    %v397 = vsel %vm390, %v382, %v383
    %v398 = vsel %vm390, %v381, %v382
    %v399 = vsel %vm390, %v380, %v381
    %v400 = vsel %vm390, %v379, %v380
    %v401 = vsel %vm390, %v378, %v379
    %v402 = vsel %vm390, %v377, %v378
    %v403 = vsel %vm390, %v376, %v377
    %v404 = vsel %vm390, %v375, %v376
    %v405 = vsel %vm390, %v374, %v375
    %v406 = vsel %vm390, %v389, %v374
    %vm407 = vcmp.lt.s32.totalorder %v261, 15
    %vm408 = vcmp.lt.s32.totalorder %v262, 15
    %vm409 = vcmp.lt.s32.totalorder %v263, 15
    %vm410 = vcmp.lt.s32.totalorder %v264, 15
    %vm411 = vcmp.lt.s32.totalorder %v265, 15
    %vm412 = vcmp.lt.s32.totalorder %v266, 15
    %vm413 = vcmp.lt.s32.totalorder %v267, 15
    %vm414 = vcmp.lt.s32.totalorder %v268, 15
    %vm415 = vcmp.lt.s32.totalorder %v269, 15
    %vm416 = vcmp.lt.s32.totalorder %v270, 15
    %vm417 = vcmp.lt.s32.totalorder %v271, 15
    %vm418 = vcmp.lt.s32.totalorder %v272, 15
    %vm419 = vcmp.lt.s32.totalorder %v273, 15
    %vm420 = vcmp.lt.s32.totalorder %v274, 15
    %vm421 = vcmp.lt.s32.totalorder %v275, 15
    %vm422 = vcmp.lt.s32.totalorder %v276, 15
    %v423 = vsel %vm407, 1, 0
    %v424 = vsel %vm408, 1, 0
    %v425 = vsel %vm409, 1, 0
    %v426 = vsel %vm410, 1, 0
    %v427 = vsel %vm411, 1, 0
    %v428 = vsel %vm412, 1, 0
    %v429 = vsel %vm413, 1, 0
    %v430 = vsel %vm414, 1, 0
    %v431 = vsel %vm415, 1, 0
    %v432 = vsel %vm416, 1, 0
    %v433 = vsel %vm417, 1, 0
    %v434 = vsel %vm418, 1, 0
    %v435 = vsel %vm419, 1, 0
    %v436 = vsel %vm420, 1, 0
    %v437 = vsel %vm421, 1, 0
    %v438 = vsel %vm422, 1, 0
    %vm439 = vcmp.eq.s32.totalorder %v423, 1
    %vm440 = vcmp.eq.s32.totalorder %v424, 1
    %vm441 = vcmp.eq.s32.totalorder %v425, 1
    %vm442 = vcmp.eq.s32.totalorder %v426, 1
    %vm443 = vcmp.eq.s32.totalorder %v427, 1
    %vm444 = vcmp.eq.s32.totalorder %v428, 1
    %vm445 = vcmp.eq.s32.totalorder %v429, 1
    %vm446 = vcmp.eq.s32.totalorder %v430, 1
    %vm447 = vcmp.eq.s32.totalorder %v431, 1
    %vm448 = vcmp.eq.s32.totalorder %v432, 1
    %vm449 = vcmp.eq.s32.totalorder %v433, 1
    %vm450 = vcmp.eq.s32.totalorder %v434, 1
    %vm451 = vcmp.eq.s32.totalorder %v435, 1
    %vm452 = vcmp.eq.s32.totalorder %v436, 1
    %vm453 = vcmp.eq.s32.totalorder %v437, 1
    %vm454 = vcmp.eq.s32.totalorder %v438, 1
    %v455 = vsel %vm439, %v405, 0.0
    %v456 = vsel %vm440, %v404, 0.0
    %v457 = vsel %vm441, %v403, 0.0
    %v458 = vsel %vm442, %v402, 0.0
    %v459 = vsel %vm443, %v401, 0.0
    %v460 = vsel %vm444, %v400, 0.0
    %v461 = vsel %vm445, %v399, 0.0
    %v462 = vsel %vm446, %v398, 0.0
    %v463 = vsel %vm447, %v397, 0.0
    %v464 = vsel %vm448, %v396, 0.0
    %v465 = vsel %vm449, %v395, 0.0
    %v466 = vsel %vm450, %v394, 0.0
    %v467 = vsel %vm451, %v393, 0.0
    %v468 = vsel %vm452, %v392, 0.0
    %v469 = vsel %vm453, %v391, 0.0
    %v470 = vsel %vm454, %v406, 0.0
    %487 = vrot.lane.b32.xlu0 %v52, 4
    %v488 = vpop.permute.xlu0 %487
    %489 = vrot.lane.b32.xlu0 %v53, 4
    %v490 = vpop.permute.xlu0 %489
    %491 = vrot.lane.b32.xlu0 %v54, 4
    %v492 = vpop.permute.xlu0 %491
    %493 = vrot.lane.b32.xlu0 %v55, 4
    %v494 = vpop.permute.xlu0 %493
    %495 = vrot.lane.b32.xlu0 %v56, 4
    %v496 = vpop.permute.xlu0 %495
    %497 = vrot.lane.b32.xlu0 %v57, 4
    %v498 = vpop.permute.xlu0 %497
    %499 = vrot.lane.b32.xlu0 %v58, 4
    %v500 = vpop.permute.xlu0 %499
    %501 = vrot.lane.b32.xlu0 %v59, 4
    %v502 = vpop.permute.xlu0 %501
    %503 = vrot.lane.b32.xlu0 %v60, 4
    %v504 = vpop.permute.xlu0 %503
    %505 = vrot.lane.b32.xlu0 %v61, 4
    %v506 = vpop.permute.xlu0 %505
    %507 = vrot.lane.b32.xlu0 %v62, 4
    %v508 = vpop.permute.xlu0 %507
    %509 = vrot.lane.b32.xlu0 %v63, 4
    %v510 = vpop.permute.xlu0 %509
    %511 = vrot.lane.b32.xlu0 %v64, 4
    %v512 = vpop.permute.xlu0 %511
    %513 = vrot.lane.b32.xlu0 %v65, 4
    %v514 = vpop.permute.xlu0 %513
    %515 = vrot.lane.b32.xlu0 %v66, 4
    %v516 = vpop.permute.xlu0 %515
    %517 = vrot.lane.b32.xlu0 %v67, 4
    %v518 = vpop.permute.xlu0 %517
    %551 = vrot.lane.b32.xlu0 %v455, 8
    %v552 = vpop.permute.xlu0 %551
    %553 = vrot.lane.b32.xlu0 %v456, 8
    %v554 = vpop.permute.xlu0 %553
    %555 = vrot.lane.b32.xlu0 %v457, 8
    %v556 = vpop.permute.xlu0 %555
    %557 = vrot.lane.b32.xlu0 %v458, 8
    %v558 = vpop.permute.xlu0 %557
    %559 = vrot.lane.b32.xlu0 %v459, 8
    %v560 = vpop.permute.xlu0 %559
    %561 = vrot.lane.b32.xlu0 %v460, 8
    %v562 = vpop.permute.xlu0 %561
    %563 = vrot.lane.b32.xlu0 %v461, 8
    %v564 = vpop.permute.xlu0 %563
    %565 = vrot.lane.b32.xlu0 %v462, 8
    %v566 = vpop.permute.xlu0 %565
    %567 = vrot.lane.b32.xlu0 %v463, 8
    %v568 = vpop.permute.xlu0 %567
    %569 = vrot.lane.b32.xlu0 %v464, 8
    %v570 = vpop.permute.xlu0 %569
    %571 = vrot.lane.b32.xlu0 %v465, 8
    %v572 = vpop.permute.xlu0 %571
    %573 = vrot.lane.b32.xlu0 %v466, 8
    %v574 = vpop.permute.xlu0 %573
    %575 = vrot.lane.b32.xlu0 %v467, 8
    %v576 = vpop.permute.xlu0 %575
    %577 = vrot.lane.b32.xlu0 %v468, 8
    %v578 = vpop.permute.xlu0 %577
    %579 = vrot.lane.b32.xlu0 %v469, 8
    %v580 = vpop.permute.xlu0 %579
    %581 = vrot.lane.b32.xlu0 %v470, 8
    %v582 = vpop.permute.xlu0 %581
    %vm599 = vcmask 31744
    %v600 = vsel %vm599, %v358, %v488
    %v601 = vsel %vm599, %v359, %v490
    %v602 = vsel %vm599, %v360, %v492
    %v603 = vsel %vm599, %v361, %v494
    %v604 = vsel %vm599, %v362, %v496
    %v605 = vsel %vm599, %v363, %v498
    %v606 = vsel %vm599, %v364, %v500
    %v607 = vsel %vm599, %v365, %v502
    %v608 = vsel %vm599, %v366, %v504
    %v609 = vsel %vm599, %v367, %v506
    %v610 = vsel %vm599, %v368, %v508
    %v611 = vsel %vm599, %v369, %v510
    %v612 = vsel %vm599, %v370, %v512
    %v613 = vsel %vm599, %v371, %v514
    %v614 = vsel %vm599, %v372, %v516
    %v615 = vsel %vm599, %v373, %v518
    %vm616 = vcmask 64512
    %v617 = vsel %vm616, %v600, %v552
    %v618 = vsel %vm616, %v601, %v554
    %v619 = vsel %vm616, %v602, %v556
    %v620 = vsel %vm616, %v603, %v558
    %v621 = vsel %vm616, %v604, %v560
    %v622 = vsel %vm616, %v605, %v562
    %v623 = vsel %vm616, %v606, %v564
    %v624 = vsel %vm616, %v607, %v566
    %v625 = vsel %vm616, %v608, %v568
    %v626 = vsel %vm616, %v609, %v570
    %v627 = vsel %vm616, %v610, %v572
    %v628 = vsel %vm616, %v611, %v574
    %v629 = vsel %vm616, %v612, %v576
    %v630 = vsel %vm616, %v613, %v578
    %v631 = vsel %vm616, %v614, %v580
    %v632 = vsel %vm616, %v615, %v582
    %v633 = vpack.c.bf16 %v618, %v617
    %v634 = vpack.c.bf16 %v620, %v619
    %v635 = vpack.c.bf16 %v622, %v621
    %v636 = vpack.c.bf16 %v624, %v623
    %v637 = vpack.c.bf16 %v626, %v625
    %v638 = vpack.c.bf16 %v628, %v627
    %v639 = vpack.c.bf16 %v630, %v629
    %v640 = vpack.c.bf16 %v632, %v631
    %v641 = vld [vmem:[%s2] sm:$0xf]
    %v642 = vld [vmem:[%s2 + $0x4] sm:$0x3]
    %v643 = vld [vmem:[%s3] sm:$0x1]
    %v645 = vlaneseq
    %v646 = vshrl.u32 %v645, 7
    %v647 = vsub.s32 0, %v646
    %v648 = vrot.slane %v643, %v647
    %v652 = vunpack.c.l.b16 %v641
    %v653 = vunpack.c.l.b16 %v642
    %v654 = vpack.c.b16 %v653, %v652
    %vm655 = vcmask 97280
    %v657 = vsel %vm655, %v633, 0
    %v660 = vsel %vm655, %v634, 0
    %v663 = vsel %vm655, %v635, 0
    %v666 = vsel %vm655, %v636, 0
    %v669 = vsel %vm655, %v637, 0
    %v672 = vsel %vm655, %v638, 0
    %v675 = vsel %vm655, %v639, 0
    %v678 = vsel %vm655, %v640, 0
    %vm680 = vcmask 1045504
    %v682 = vsel %vm680, %v654, 0
    %684 = vmatprep.subr.bf16.mxu0 0
    %685 = vmatpush1.bf16.msra.mxu0 %v682
    %686 = vmatprep.subr.bf16.mxu0 0
    %687 = vmatpush1.bf16.msra.mxu0 0
    %688 = vmatprep.subr.bf16.mxu0 0
    %689 = vmatpush1.bf16.msra.mxu0 0
    %690 = vmatprep.subr.bf16.mxu0 0
    %691 = vmatpush1.bf16.msra.mxu0 0
    %692 = vmatprep.subr.bf16.mxu0 0
    %693 = vmatpush1.bf16.msra.mxu0 0
    %694 = vmatprep.subr.bf16.mxu0 0
    %695 = vmatpush1.bf16.msra.mxu0 0
    %696 = vmatprep.subr.bf16.mxu0 0
    %697 = vmatpush1.bf16.msra.mxu0 0
    %698 = vmatprep.subr.bf16.mxu0 0
    %699 = vmatpush1.bf16.msra.mxu0 0
    %700 = vmatprep.subr.bf16.mxu0 0
    %701 = vmatpush1.bf16.msra.mxu0 0
    %702 = vmatprep.subr.bf16.mxu0 0
    %703 = vmatpush1.bf16.msra.mxu0 0
    %704 = vmatprep.subr.bf16.mxu0 0
    %705 = vmatpush1.bf16.msra.mxu0 0
    %706 = vmatprep.subr.bf16.mxu0 0
    %707 = vmatpush1.bf16.msra.mxu0 0
    %708 = vmatprep.subr.bf16.mxu0 0
    %709 = vmatpush1.bf16.msra.mxu0 0
    %710 = vmatprep.subr.bf16.mxu0 0
    %711 = vmatpush1.bf16.msra.mxu0 0
    %712 = vmatprep.subr.bf16.mxu0 0
    %713 = vmatpush1.bf16.msra.mxu0 0
    %714 = vmatprep.subr.bf16.mxu0 0
    %715 = vmatpush1.bf16.msra.mxu0 0
    %716 = vmatprep.mubr.bf16.mxu0 0
    %717 = vmatmul.mubr.bf16.gmra.mrb[0].mxu0 %v657
    %v718 = vpop.f32.mrb[0].mxu0
    %v719 = vadd.f32 %v648, %v718
    %v720 = vpop.f32.mrb[0].mxu0
    %v721 = vpop.f32.mrb[0].mxu0
    %v722 = vadd.f32 %v648, %v721
    %v723 = vpop.f32.mrb[0].mxu0
    %724 = vmatprep.mubr.bf16.mxu0 0
    %725 = vmatmul.mubr.bf16.gmra.mrb[0].mxu0 %v660
    %v726 = vpop.f32.mrb[0].mxu0
    %v727 = vadd.f32 %v648, %v726
    %v728 = vpop.f32.mrb[0].mxu0
    %v729 = vpop.f32.mrb[0].mxu0
    %v730 = vadd.f32 %v648, %v729
    %v731 = vpop.f32.mrb[0].mxu0
    %732 = vmatprep.mubr.bf16.mxu0 0
    %733 = vmatmul.mubr.bf16.gmra.mrb[0].mxu0 %v663
    %v734 = vpop.f32.mrb[0].mxu0
    %v735 = vadd.f32 %v648, %v734
    %v736 = vpop.f32.mrb[0].mxu0
    %v737 = vpop.f32.mrb[0].mxu0
    %v738 = vadd.f32 %v648, %v737
    %v739 = vpop.f32.mrb[0].mxu0
    %740 = vmatprep.mubr.bf16.mxu0 0
    %741 = vmatmul.mubr.bf16.gmra.mrb[0].mxu0 %v666
    %v742 = vpop.f32.mrb[0].mxu0
    %v743 = vadd.f32 %v648, %v742
    %v744 = vpop.f32.mrb[0].mxu0
    %v745 = vpop.f32.mrb[0].mxu0
    %v746 = vadd.f32 %v648, %v745
    %v747 = vpop.f32.mrb[0].mxu0
    %748 = vmatprep.mubr.bf16.mxu0 0
    %749 = vmatmul.mubr.bf16.gmra.mrb[0].mxu0 %v669
    %v750 = vpop.f32.mrb[0].mxu0
    %v751 = vadd.f32 %v648, %v750
    %v752 = vpop.f32.mrb[0].mxu0
    %v753 = vpop.f32.mrb[0].mxu0
    %v754 = vadd.f32 %v648, %v753
    %v755 = vpop.f32.mrb[0].mxu0
    %756 = vmatprep.mubr.bf16.mxu0 0
    %757 = vmatmul.mubr.bf16.gmra.mrb[0].mxu0 %v672
    %v758 = vpop.f32.mrb[0].mxu0
    %v759 = vadd.f32 %v648, %v758
    %v760 = vpop.f32.mrb[0].mxu0
    %v761 = vpop.f32.mrb[0].mxu0
    %v762 = vadd.f32 %v648, %v761
    %v763 = vpop.f32.mrb[0].mxu0
    %764 = vmatprep.mubr.bf16.mxu0 0
    %765 = vmatmul.mubr.bf16.gmra.mrb[0].mxu0 %v675
    %v766 = vpop.f32.mrb[0].mxu0
    %v767 = vadd.f32 %v648, %v766
    %v768 = vpop.f32.mrb[0].mxu0
    %v769 = vpop.f32.mrb[0].mxu0
    %v770 = vadd.f32 %v648, %v769
    %v771 = vpop.f32.mrb[0].mxu0
    %772 = vmatprep.mubr.bf16.mxu0 0
    %773 = vmatmul.mubr.bf16.gmra.mrb[0].mxu0 %v678
    %v774 = vpop.f32.mrb[0].mxu0
    %v775 = vadd.f32 %v648, %v774
    %v776 = vpop.f32.mrb[0].mxu0
    %v777 = vpop.f32.mrb[0].mxu0
    %v778 = vadd.f32 %v648, %v777
    %v779 = vpop.f32.mrb[0].mxu0
    %780 = vdwg.mxu0
    %v797 = vcombine.high %v719, %v719
    %v799 = vunpack.c.l.s4 1983009808
    %v800 = vunpack.c.0.s8 %v799
    %v801 = vlaneseq
    %v802 = vshrl.u32 %v801, 7
    %v803 = vsub.s32 %v800, %v802
    %v804 = vrot.slane %v719, %v803
    %v806 = vunpack.c.l.s4 1983009808
    %v807 = vunpack.c.0.s8 %v806
    %v808 = vlaneseq
    %v809 = vshrl.u32 %v808, 7
    %v810 = vsub.s32 %v807, %v809
    %v811 = vrot.slane %v797, %v810
    %v812 = vcombine.high %v804, %v804
    %v813 = vcombine.high %v811, %v811
    %v814 = vcombine.high %v722, %v722
    %v816 = vunpack.c.l.s4 1983009808
    %v817 = vunpack.c.0.s8 %v816
    %v818 = vlaneseq
    %v819 = vshrl.u32 %v818, 7
    %v820 = vsub.s32 %v817, %v819
    %v821 = vrot.slane %v722, %v820
    %v823 = vunpack.c.l.s4 1983009808
    %v824 = vunpack.c.0.s8 %v823
    %v825 = vlaneseq
    %v826 = vshrl.u32 %v825, 7
    %v827 = vsub.s32 %v824, %v826
    %v828 = vrot.slane %v814, %v827
    %v829 = vcombine.high %v821, %v821
    %v830 = vcombine.high %v828, %v828
    %v831 = vcombine.high %v727, %v727
    %v833 = vunpack.c.l.s4 1983009808
    %v834 = vunpack.c.0.s8 %v833
    %v835 = vlaneseq
    %v836 = vshrl.u32 %v835, 7
    %v837 = vsub.s32 %v834, %v836
    %v838 = vrot.slane %v727, %v837
    %v840 = vunpack.c.l.s4 1983009808
    %v841 = vunpack.c.0.s8 %v840
    %v842 = vlaneseq
    %v843 = vshrl.u32 %v842, 7
    %v844 = vsub.s32 %v841, %v843
    %v845 = vrot.slane %v831, %v844
    %v846 = vcombine.high %v838, %v838
    %v847 = vcombine.high %v845, %v845
    %v848 = vcombine.high %v730, %v730
    %v850 = vunpack.c.l.s4 1983009808
    %v851 = vunpack.c.0.s8 %v850
    %v852 = vlaneseq
    %v853 = vshrl.u32 %v852, 7
    %v854 = vsub.s32 %v851, %v853
    %v855 = vrot.slane %v730, %v854
    %v857 = vunpack.c.l.s4 1983009808
    %v858 = vunpack.c.0.s8 %v857
    %v859 = vlaneseq
    %v860 = vshrl.u32 %v859, 7
    %v861 = vsub.s32 %v858, %v860
    %v862 = vrot.slane %v848, %v861
    %v863 = vcombine.high %v855, %v855
    %v864 = vcombine.high %v862, %v862
    %v865 = vcombine.high %v735, %v735
    %v867 = vunpack.c.l.s4 1983009808
    %v868 = vunpack.c.0.s8 %v867
    %v869 = vlaneseq
    %v870 = vshrl.u32 %v869, 7
    %v871 = vsub.s32 %v868, %v870
    %v872 = vrot.slane %v735, %v871
    %v874 = vunpack.c.l.s4 1983009808
    %v875 = vunpack.c.0.s8 %v874
    %v876 = vlaneseq
    %v877 = vshrl.u32 %v876, 7
    %v878 = vsub.s32 %v875, %v877
    %v879 = vrot.slane %v865, %v878
    %v880 = vcombine.high %v872, %v872
    %v881 = vcombine.high %v879, %v879
    %v882 = vcombine.high %v738, %v738
    %v884 = vunpack.c.l.s4 1983009808
    %v885 = vunpack.c.0.s8 %v884
    %v886 = vlaneseq
    %v887 = vshrl.u32 %v886, 7
    %v888 = vsub.s32 %v885, %v887
    %v889 = vrot.slane %v738, %v888
    %v891 = vunpack.c.l.s4 1983009808
    %v892 = vunpack.c.0.s8 %v891
    %v893 = vlaneseq
    %v894 = vshrl.u32 %v893, 7
    %v895 = vsub.s32 %v892, %v894
    %v896 = vrot.slane %v882, %v895
    %v897 = vcombine.high %v889, %v889
    %v898 = vcombine.high %v896, %v896
    %v899 = vcombine.high %v743, %v743
    %v901 = vunpack.c.l.s4 1983009808
    %v902 = vunpack.c.0.s8 %v901
    %v903 = vlaneseq
    %v904 = vshrl.u32 %v903, 7
    %v905 = vsub.s32 %v902, %v904
    %v906 = vrot.slane %v743, %v905
    %v908 = vunpack.c.l.s4 1983009808
    %v909 = vunpack.c.0.s8 %v908
    %v910 = vlaneseq
    %v911 = vshrl.u32 %v910, 7
    %v912 = vsub.s32 %v909, %v911
    %v913 = vrot.slane %v899, %v912
    %v914 = vcombine.high %v906, %v906
    %v915 = vcombine.high %v913, %v913
    %v916 = vcombine.high %v746, %v746
    %v918 = vunpack.c.l.s4 1983009808
    %v919 = vunpack.c.0.s8 %v918
    %v920 = vlaneseq
    %v921 = vshrl.u32 %v920, 7
    %v922 = vsub.s32 %v919, %v921
    %v923 = vrot.slane %v746, %v922
    %v925 = vunpack.c.l.s4 1983009808
    %v926 = vunpack.c.0.s8 %v925
    %v927 = vlaneseq
    %v928 = vshrl.u32 %v927, 7
    %v929 = vsub.s32 %v926, %v928
    %v930 = vrot.slane %v916, %v929
    %v931 = vcombine.high %v923, %v923
    %v932 = vcombine.high %v930, %v930
    %v933 = vcombine.high %v751, %v751
    %v935 = vunpack.c.l.s4 1983009808
    %v936 = vunpack.c.0.s8 %v935
    %v937 = vlaneseq
    %v938 = vshrl.u32 %v937, 7
    %v939 = vsub.s32 %v936, %v938
    %v940 = vrot.slane %v751, %v939
    %v942 = vunpack.c.l.s4 1983009808
    %v943 = vunpack.c.0.s8 %v942
    %v944 = vlaneseq
    %v945 = vshrl.u32 %v944, 7
    %v946 = vsub.s32 %v943, %v945
    %v947 = vrot.slane %v933, %v946
    %v948 = vcombine.high %v940, %v940
    %v949 = vcombine.high %v947, %v947
    %v950 = vcombine.high %v754, %v754
    %v952 = vunpack.c.l.s4 1983009808
    %v953 = vunpack.c.0.s8 %v952
    %v954 = vlaneseq
    %v955 = vshrl.u32 %v954, 7
    %v956 = vsub.s32 %v953, %v955
    %v957 = vrot.slane %v754, %v956
    %v959 = vunpack.c.l.s4 1983009808
    %v960 = vunpack.c.0.s8 %v959
    %v961 = vlaneseq
    %v962 = vshrl.u32 %v961, 7
    %v963 = vsub.s32 %v960, %v962
    %v964 = vrot.slane %v950, %v963
    %v965 = vcombine.high %v957, %v957
    %v966 = vcombine.high %v964, %v964
    %v967 = vcombine.high %v759, %v759
    %v969 = vunpack.c.l.s4 1983009808
    %v970 = vunpack.c.0.s8 %v969
    %v971 = vlaneseq
    %v972 = vshrl.u32 %v971, 7
    %v973 = vsub.s32 %v970, %v972
    %v974 = vrot.slane %v759, %v973
    %v976 = vunpack.c.l.s4 1983009808
    %v977 = vunpack.c.0.s8 %v976
    %v978 = vlaneseq
    %v979 = vshrl.u32 %v978, 7
    %v980 = vsub.s32 %v977, %v979
    %v981 = vrot.slane %v967, %v980
    %v982 = vcombine.high %v974, %v974
    %v983 = vcombine.high %v981, %v981
    %v984 = vcombine.high %v762, %v762
    %v986 = vunpack.c.l.s4 1983009808
    %v987 = vunpack.c.0.s8 %v986
    %v988 = vlaneseq
    %v989 = vshrl.u32 %v988, 7
    %v990 = vsub.s32 %v987, %v989
    %v991 = vrot.slane %v762, %v990
    %v993 = vunpack.c.l.s4 1983009808
    %v994 = vunpack.c.0.s8 %v993
    %v995 = vlaneseq
    %v996 = vshrl.u32 %v995, 7
    %v997 = vsub.s32 %v994, %v996
    %v998 = vrot.slane %v984, %v997
    %v999 = vcombine.high %v991, %v991
    %v1000 = vcombine.high %v998, %v998
    %v1001 = vcombine.high %v767, %v767
    %v1003 = vunpack.c.l.s4 1983009808
    %v1004 = vunpack.c.0.s8 %v1003
    %v1005 = vlaneseq
    %v1006 = vshrl.u32 %v1005, 7
    %v1007 = vsub.s32 %v1004, %v1006
    %v1008 = vrot.slane %v767, %v1007
    %v1010 = vunpack.c.l.s4 1983009808
    %v1011 = vunpack.c.0.s8 %v1010
    %v1012 = vlaneseq
    %v1013 = vshrl.u32 %v1012, 7
    %v1014 = vsub.s32 %v1011, %v1013
    %v1015 = vrot.slane %v1001, %v1014
    %v1016 = vcombine.high %v1008, %v1008
    %v1017 = vcombine.high %v1015, %v1015
    %v1018 = vcombine.high %v770, %v770
    %v1020 = vunpack.c.l.s4 1983009808
    %v1021 = vunpack.c.0.s8 %v1020
    %v1022 = vlaneseq
    %v1023 = vshrl.u32 %v1022, 7
    %v1024 = vsub.s32 %v1021, %v1023
    %v1025 = vrot.slane %v770, %v1024
    %v1027 = vunpack.c.l.s4 1983009808
    %v1028 = vunpack.c.0.s8 %v1027
    %v1029 = vlaneseq
    %v1030 = vshrl.u32 %v1029, 7
    %v1031 = vsub.s32 %v1028, %v1030
    %v1032 = vrot.slane %v1018, %v1031
    %v1033 = vcombine.high %v1025, %v1025
    %v1034 = vcombine.high %v1032, %v1032
    %v1035 = vcombine.high %v775, %v775
    %v1037 = vunpack.c.l.s4 1983009808
    %v1038 = vunpack.c.0.s8 %v1037
    %v1039 = vlaneseq
    %v1040 = vshrl.u32 %v1039, 7
    %v1041 = vsub.s32 %v1038, %v1040
    %v1042 = vrot.slane %v775, %v1041
    %v1044 = vunpack.c.l.s4 1983009808
    %v1045 = vunpack.c.0.s8 %v1044
    %v1046 = vlaneseq
    %v1047 = vshrl.u32 %v1046, 7
    %v1048 = vsub.s32 %v1045, %v1047
    %v1049 = vrot.slane %v1035, %v1048
    %v1050 = vcombine.high %v1042, %v1042
    %v1051 = vcombine.high %v1049, %v1049
    %v1052 = vcombine.high %v778, %v778
    %v1054 = vunpack.c.l.s4 1983009808
    %v1055 = vunpack.c.0.s8 %v1054
    %v1056 = vlaneseq
    %v1057 = vshrl.u32 %v1056, 7
    %v1058 = vsub.s32 %v1055, %v1057
    %v1059 = vrot.slane %v778, %v1058
    %v1061 = vunpack.c.l.s4 1983009808
    %v1062 = vunpack.c.0.s8 %v1061
    %v1063 = vlaneseq
    %v1064 = vshrl.u32 %v1063, 7
    %v1065 = vsub.s32 %v1062, %v1064
    %v1066 = vrot.slane %v1052, %v1065
    %v1067 = vcombine.high %v1059, %v1059
    %v1068 = vcombine.high %v1066, %v1066
    %vm1133 = vcmask 517120
    %v1134 = vsel %vm1133, %v804, -inf
    %v1135 = vrot.slane %v1134, 4
    %v1136 = vmax.f32 %v1134, %v1135
    %v1137 = vrot.slane %v1136, 2
    %v1138 = vmax.f32 %v1136, %v1137
    %v1139 = vrot.slane %v1138, 1
    %v1140 = vmax.f32 %v1138, %v1139
    %v1141 = vsel %vm1133, %v812, -inf
    %v1142 = vrot.slane %v1141, 4
    %v1143 = vmax.f32 %v1141, %v1142
    %v1144 = vrot.slane %v1143, 2
    %v1145 = vmax.f32 %v1143, %v1144
    %v1146 = vrot.slane %v1145, 1
    %v1147 = vmax.f32 %v1145, %v1146
    %v1148 = vsel %vm1133, %v811, -inf
    %v1149 = vrot.slane %v1148, 4
    %v1150 = vmax.f32 %v1148, %v1149
    %v1151 = vrot.slane %v1150, 2
    %v1152 = vmax.f32 %v1150, %v1151
    %v1153 = vrot.slane %v1152, 1
    %v1154 = vmax.f32 %v1152, %v1153
    %v1155 = vsel %vm1133, %v813, -inf
    %v1156 = vrot.slane %v1155, 4
    %v1157 = vmax.f32 %v1155, %v1156
    %v1158 = vrot.slane %v1157, 2
    %v1159 = vmax.f32 %v1157, %v1158
    %v1160 = vrot.slane %v1159, 1
    %v1161 = vmax.f32 %v1159, %v1160
    %v1162 = vsel %vm1133, %v821, -inf
    %v1163 = vrot.slane %v1162, 4
    %v1164 = vmax.f32 %v1162, %v1163
    %v1165 = vrot.slane %v1164, 2
    %v1166 = vmax.f32 %v1164, %v1165
    %v1167 = vrot.slane %v1166, 1
    %v1168 = vmax.f32 %v1166, %v1167
    %v1169 = vsel %vm1133, %v829, -inf
    %v1170 = vrot.slane %v1169, 4
    %v1171 = vmax.f32 %v1169, %v1170
    %v1172 = vrot.slane %v1171, 2
    %v1173 = vmax.f32 %v1171, %v1172
    %v1174 = vrot.slane %v1173, 1
    %v1175 = vmax.f32 %v1173, %v1174
    %v1176 = vsel %vm1133, %v828, -inf
    %v1177 = vrot.slane %v1176, 4
    %v1178 = vmax.f32 %v1176, %v1177
    %v1179 = vrot.slane %v1178, 2
    %v1180 = vmax.f32 %v1178, %v1179
    %v1181 = vrot.slane %v1180, 1
    %v1182 = vmax.f32 %v1180, %v1181
    %v1183 = vsel %vm1133, %v830, -inf
    %v1184 = vrot.slane %v1183, 4
    %v1185 = vmax.f32 %v1183, %v1184
    %v1186 = vrot.slane %v1185, 2
    %v1187 = vmax.f32 %v1185, %v1186
    %v1188 = vrot.slane %v1187, 1
    %v1189 = vmax.f32 %v1187, %v1188
    %v1190 = vsel %vm1133, %v838, -inf
    %v1191 = vrot.slane %v1190, 4
    %v1192 = vmax.f32 %v1190, %v1191
    %v1193 = vrot.slane %v1192, 2
    %v1194 = vmax.f32 %v1192, %v1193
    %v1195 = vrot.slane %v1194, 1
    %v1196 = vmax.f32 %v1194, %v1195
    %v1197 = vsel %vm1133, %v846, -inf
    %v1198 = vrot.slane %v1197, 4
    %v1199 = vmax.f32 %v1197, %v1198
    %v1200 = vrot.slane %v1199, 2
    %v1201 = vmax.f32 %v1199, %v1200
    %v1202 = vrot.slane %v1201, 1
    %v1203 = vmax.f32 %v1201, %v1202
    %v1204 = vsel %vm1133, %v845, -inf
    %v1205 = vrot.slane %v1204, 4
    %v1206 = vmax.f32 %v1204, %v1205
    %v1207 = vrot.slane %v1206, 2
    %v1208 = vmax.f32 %v1206, %v1207
    %v1209 = vrot.slane %v1208, 1
    %v1210 = vmax.f32 %v1208, %v1209
    %v1211 = vsel %vm1133, %v847, -inf
    %v1212 = vrot.slane %v1211, 4
    %v1213 = vmax.f32 %v1211, %v1212
    %v1214 = vrot.slane %v1213, 2
    %v1215 = vmax.f32 %v1213, %v1214
    %v1216 = vrot.slane %v1215, 1
    %v1217 = vmax.f32 %v1215, %v1216
    %v1218 = vsel %vm1133, %v855, -inf
    %v1219 = vrot.slane %v1218, 4
    %v1220 = vmax.f32 %v1218, %v1219
    %v1221 = vrot.slane %v1220, 2
    %v1222 = vmax.f32 %v1220, %v1221
    %v1223 = vrot.slane %v1222, 1
    %v1224 = vmax.f32 %v1222, %v1223
    %v1225 = vsel %vm1133, %v863, -inf
    %v1226 = vrot.slane %v1225, 4
    %v1227 = vmax.f32 %v1225, %v1226
    %v1228 = vrot.slane %v1227, 2
    %v1229 = vmax.f32 %v1227, %v1228
    %v1230 = vrot.slane %v1229, 1
    %v1231 = vmax.f32 %v1229, %v1230
    %v1232 = vsel %vm1133, %v862, -inf
    %v1233 = vrot.slane %v1232, 4
    %v1234 = vmax.f32 %v1232, %v1233
    %v1235 = vrot.slane %v1234, 2
    %v1236 = vmax.f32 %v1234, %v1235
    %v1237 = vrot.slane %v1236, 1
    %v1238 = vmax.f32 %v1236, %v1237
    %v1239 = vsel %vm1133, %v864, -inf
    %v1240 = vrot.slane %v1239, 4
    %v1241 = vmax.f32 %v1239, %v1240
    %v1242 = vrot.slane %v1241, 2
    %v1243 = vmax.f32 %v1241, %v1242
    %v1244 = vrot.slane %v1243, 1
    %v1245 = vmax.f32 %v1243, %v1244
    %v1246 = vsel %vm1133, %v872, -inf
    %v1247 = vrot.slane %v1246, 4
    %v1248 = vmax.f32 %v1246, %v1247
    %v1249 = vrot.slane %v1248, 2
    %v1250 = vmax.f32 %v1248, %v1249
    %v1251 = vrot.slane %v1250, 1
    %v1252 = vmax.f32 %v1250, %v1251
    %v1253 = vsel %vm1133, %v880, -inf
    %v1254 = vrot.slane %v1253, 4
    %v1255 = vmax.f32 %v1253, %v1254
    %v1256 = vrot.slane %v1255, 2
    %v1257 = vmax.f32 %v1255, %v1256
    %v1258 = vrot.slane %v1257, 1
    %v1259 = vmax.f32 %v1257, %v1258
    %v1260 = vsel %vm1133, %v879, -inf
    %v1261 = vrot.slane %v1260, 4
    %v1262 = vmax.f32 %v1260, %v1261
    %v1263 = vrot.slane %v1262, 2
    %v1264 = vmax.f32 %v1262, %v1263
    %v1265 = vrot.slane %v1264, 1
    %v1266 = vmax.f32 %v1264, %v1265
    %v1267 = vsel %vm1133, %v881, -inf
    %v1268 = vrot.slane %v1267, 4
    %v1269 = vmax.f32 %v1267, %v1268
    %v1270 = vrot.slane %v1269, 2
    %v1271 = vmax.f32 %v1269, %v1270
    %v1272 = vrot.slane %v1271, 1
    %v1273 = vmax.f32 %v1271, %v1272
    %v1274 = vsel %vm1133, %v889, -inf
    %v1275 = vrot.slane %v1274, 4
    %v1276 = vmax.f32 %v1274, %v1275
    %v1277 = vrot.slane %v1276, 2
    %v1278 = vmax.f32 %v1276, %v1277
    %v1279 = vrot.slane %v1278, 1
    %v1280 = vmax.f32 %v1278, %v1279
    %v1281 = vsel %vm1133, %v897, -inf
    %v1282 = vrot.slane %v1281, 4
    %v1283 = vmax.f32 %v1281, %v1282
    %v1284 = vrot.slane %v1283, 2
    %v1285 = vmax.f32 %v1283, %v1284
    %v1286 = vrot.slane %v1285, 1
    %v1287 = vmax.f32 %v1285, %v1286
    %v1288 = vsel %vm1133, %v896, -inf
    %v1289 = vrot.slane %v1288, 4
    %v1290 = vmax.f32 %v1288, %v1289
    %v1291 = vrot.slane %v1290, 2
    %v1292 = vmax.f32 %v1290, %v1291
    %v1293 = vrot.slane %v1292, 1
    %v1294 = vmax.f32 %v1292, %v1293
    %v1295 = vsel %vm1133, %v898, -inf
    %v1296 = vrot.slane %v1295, 4
    %v1297 = vmax.f32 %v1295, %v1296
    %v1298 = vrot.slane %v1297, 2
    %v1299 = vmax.f32 %v1297, %v1298
    %v1300 = vrot.slane %v1299, 1
    %v1301 = vmax.f32 %v1299, %v1300
    %v1302 = vsel %vm1133, %v906, -inf
    %v1303 = vrot.slane %v1302, 4
    %v1304 = vmax.f32 %v1302, %v1303
    %v1305 = vrot.slane %v1304, 2
    %v1306 = vmax.f32 %v1304, %v1305
    %v1307 = vrot.slane %v1306, 1
    %v1308 = vmax.f32 %v1306, %v1307
    %v1309 = vsel %vm1133, %v914, -inf
    %v1310 = vrot.slane %v1309, 4
    %v1311 = vmax.f32 %v1309, %v1310
    %v1312 = vrot.slane %v1311, 2
    %v1313 = vmax.f32 %v1311, %v1312
    %v1314 = vrot.slane %v1313, 1
    %v1315 = vmax.f32 %v1313, %v1314
    %v1316 = vsel %vm1133, %v913, -inf
    %v1317 = vrot.slane %v1316, 4
    %v1318 = vmax.f32 %v1316, %v1317
    %v1319 = vrot.slane %v1318, 2
    %v1320 = vmax.f32 %v1318, %v1319
    %v1321 = vrot.slane %v1320, 1
    %v1322 = vmax.f32 %v1320, %v1321
    %v1323 = vsel %vm1133, %v915, -inf
    %v1324 = vrot.slane %v1323, 4
    %v1325 = vmax.f32 %v1323, %v1324
    %v1326 = vrot.slane %v1325, 2
    %v1327 = vmax.f32 %v1325, %v1326
    %v1328 = vrot.slane %v1327, 1
    %v1329 = vmax.f32 %v1327, %v1328
    %v1330 = vsel %vm1133, %v923, -inf
    %v1331 = vrot.slane %v1330, 4
    %v1332 = vmax.f32 %v1330, %v1331
    %v1333 = vrot.slane %v1332, 2
    %v1334 = vmax.f32 %v1332, %v1333
    %v1335 = vrot.slane %v1334, 1
    %v1336 = vmax.f32 %v1334, %v1335
    %v1337 = vsel %vm1133, %v931, -inf
    %v1338 = vrot.slane %v1337, 4
    %v1339 = vmax.f32 %v1337, %v1338
    %v1340 = vrot.slane %v1339, 2
    %v1341 = vmax.f32 %v1339, %v1340
    %v1342 = vrot.slane %v1341, 1
    %v1343 = vmax.f32 %v1341, %v1342
    %v1344 = vsel %vm1133, %v930, -inf
    %v1345 = vrot.slane %v1344, 4
    %v1346 = vmax.f32 %v1344, %v1345
    %v1347 = vrot.slane %v1346, 2
    %v1348 = vmax.f32 %v1346, %v1347
    %v1349 = vrot.slane %v1348, 1
    %v1350 = vmax.f32 %v1348, %v1349
    %v1351 = vsel %vm1133, %v932, -inf
    %v1352 = vrot.slane %v1351, 4
    %v1353 = vmax.f32 %v1351, %v1352
    %v1354 = vrot.slane %v1353, 2
    %v1355 = vmax.f32 %v1353, %v1354
    %v1356 = vrot.slane %v1355, 1
    %v1357 = vmax.f32 %v1355, %v1356
    %v1358 = vsel %vm1133, %v940, -inf
    %v1359 = vrot.slane %v1358, 4
    %v1360 = vmax.f32 %v1358, %v1359
    %v1361 = vrot.slane %v1360, 2
    %v1362 = vmax.f32 %v1360, %v1361
    %v1363 = vrot.slane %v1362, 1
    %v1364 = vmax.f32 %v1362, %v1363
    %v1365 = vsel %vm1133, %v948, -inf
    %v1366 = vrot.slane %v1365, 4
    %v1367 = vmax.f32 %v1365, %v1366
    %v1368 = vrot.slane %v1367, 2
    %v1369 = vmax.f32 %v1367, %v1368
    %v1370 = vrot.slane %v1369, 1
    %v1371 = vmax.f32 %v1369, %v1370
    %v1372 = vsel %vm1133, %v947, -inf
    %v1373 = vrot.slane %v1372, 4
    %v1374 = vmax.f32 %v1372, %v1373
    %v1375 = vrot.slane %v1374, 2
    %v1376 = vmax.f32 %v1374, %v1375
    %v1377 = vrot.slane %v1376, 1
    %v1378 = vmax.f32 %v1376, %v1377
    %v1379 = vsel %vm1133, %v949, -inf
    %v1380 = vrot.slane %v1379, 4
    %v1381 = vmax.f32 %v1379, %v1380
    %v1382 = vrot.slane %v1381, 2
    %v1383 = vmax.f32 %v1381, %v1382
    %v1384 = vrot.slane %v1383, 1
    %v1385 = vmax.f32 %v1383, %v1384
    %v1386 = vsel %vm1133, %v957, -inf
    %v1387 = vrot.slane %v1386, 4
    %v1388 = vmax.f32 %v1386, %v1387
    %v1389 = vrot.slane %v1388, 2
    %v1390 = vmax.f32 %v1388, %v1389
    %v1391 = vrot.slane %v1390, 1
    %v1392 = vmax.f32 %v1390, %v1391
    %v1393 = vsel %vm1133, %v965, -inf
    %v1394 = vrot.slane %v1393, 4
    %v1395 = vmax.f32 %v1393, %v1394
    %v1396 = vrot.slane %v1395, 2
    %v1397 = vmax.f32 %v1395, %v1396
    %v1398 = vrot.slane %v1397, 1
    %v1399 = vmax.f32 %v1397, %v1398
    %v1400 = vsel %vm1133, %v964, -inf
    %v1401 = vrot.slane %v1400, 4
    %v1402 = vmax.f32 %v1400, %v1401
    %v1403 = vrot.slane %v1402, 2
    %v1404 = vmax.f32 %v1402, %v1403
    %v1405 = vrot.slane %v1404, 1
    %v1406 = vmax.f32 %v1404, %v1405
    %v1407 = vsel %vm1133, %v966, -inf
    %v1408 = vrot.slane %v1407, 4
    %v1409 = vmax.f32 %v1407, %v1408
    %v1410 = vrot.slane %v1409, 2
    %v1411 = vmax.f32 %v1409, %v1410
    %v1412 = vrot.slane %v1411, 1
    %v1413 = vmax.f32 %v1411, %v1412
    %v1414 = vsel %vm1133, %v974, -inf
    %v1415 = vrot.slane %v1414, 4
    %v1416 = vmax.f32 %v1414, %v1415
    %v1417 = vrot.slane %v1416, 2
    %v1418 = vmax.f32 %v1416, %v1417
    %v1419 = vrot.slane %v1418, 1
    %v1420 = vmax.f32 %v1418, %v1419
    %v1421 = vsel %vm1133, %v982, -inf
    %v1422 = vrot.slane %v1421, 4
    %v1423 = vmax.f32 %v1421, %v1422
    %v1424 = vrot.slane %v1423, 2
    %v1425 = vmax.f32 %v1423, %v1424
    %v1426 = vrot.slane %v1425, 1
    %v1427 = vmax.f32 %v1425, %v1426
    %v1428 = vsel %vm1133, %v981, -inf
    %v1429 = vrot.slane %v1428, 4
    %v1430 = vmax.f32 %v1428, %v1429
    %v1431 = vrot.slane %v1430, 2
    %v1432 = vmax.f32 %v1430, %v1431
    %v1433 = vrot.slane %v1432, 1
    %v1434 = vmax.f32 %v1432, %v1433
    %v1435 = vsel %vm1133, %v983, -inf
    %v1436 = vrot.slane %v1435, 4
    %v1437 = vmax.f32 %v1435, %v1436
    %v1438 = vrot.slane %v1437, 2
    %v1439 = vmax.f32 %v1437, %v1438
    %v1440 = vrot.slane %v1439, 1
    %v1441 = vmax.f32 %v1439, %v1440
    %v1442 = vsel %vm1133, %v991, -inf
    %v1443 = vrot.slane %v1442, 4
    %v1444 = vmax.f32 %v1442, %v1443
    %v1445 = vrot.slane %v1444, 2
    %v1446 = vmax.f32 %v1444, %v1445
    %v1447 = vrot.slane %v1446, 1
    %v1448 = vmax.f32 %v1446, %v1447
    %v1449 = vsel %vm1133, %v999, -inf
    %v1450 = vrot.slane %v1449, 4
    %v1451 = vmax.f32 %v1449, %v1450
    %v1452 = vrot.slane %v1451, 2
    %v1453 = vmax.f32 %v1451, %v1452
    %v1454 = vrot.slane %v1453, 1
    %v1455 = vmax.f32 %v1453, %v1454
    %v1456 = vsel %vm1133, %v998, -inf
    %v1457 = vrot.slane %v1456, 4
    %v1458 = vmax.f32 %v1456, %v1457
    %v1459 = vrot.slane %v1458, 2
    %v1460 = vmax.f32 %v1458, %v1459
    %v1461 = vrot.slane %v1460, 1
    %v1462 = vmax.f32 %v1460, %v1461
    %v1463 = vsel %vm1133, %v1000, -inf
    %v1464 = vrot.slane %v1463, 4
    %v1465 = vmax.f32 %v1463, %v1464
    %v1466 = vrot.slane %v1465, 2
    %v1467 = vmax.f32 %v1465, %v1466
    %v1468 = vrot.slane %v1467, 1
    %v1469 = vmax.f32 %v1467, %v1468
    %v1470 = vsel %vm1133, %v1008, -inf
    %v1471 = vrot.slane %v1470, 4
    %v1472 = vmax.f32 %v1470, %v1471
    %v1473 = vrot.slane %v1472, 2
    %v1474 = vmax.f32 %v1472, %v1473
    %v1475 = vrot.slane %v1474, 1
    %v1476 = vmax.f32 %v1474, %v1475
    %v1477 = vsel %vm1133, %v1016, -inf
    %v1478 = vrot.slane %v1477, 4
    %v1479 = vmax.f32 %v1477, %v1478
    %v1480 = vrot.slane %v1479, 2
    %v1481 = vmax.f32 %v1479, %v1480
    %v1482 = vrot.slane %v1481, 1
    %v1483 = vmax.f32 %v1481, %v1482
    %v1484 = vsel %vm1133, %v1015, -inf
    %v1485 = vrot.slane %v1484, 4
    %v1486 = vmax.f32 %v1484, %v1485
    %v1487 = vrot.slane %v1486, 2
    %v1488 = vmax.f32 %v1486, %v1487
    %v1489 = vrot.slane %v1488, 1
    %v1490 = vmax.f32 %v1488, %v1489
    %v1491 = vsel %vm1133, %v1017, -inf
    %v1492 = vrot.slane %v1491, 4
    %v1493 = vmax.f32 %v1491, %v1492
    %v1494 = vrot.slane %v1493, 2
    %v1495 = vmax.f32 %v1493, %v1494
    %v1496 = vrot.slane %v1495, 1
    %v1497 = vmax.f32 %v1495, %v1496
    %v1498 = vsel %vm1133, %v1025, -inf
    %v1499 = vrot.slane %v1498, 4
    %v1500 = vmax.f32 %v1498, %v1499
    %v1501 = vrot.slane %v1500, 2
    %v1502 = vmax.f32 %v1500, %v1501
    %v1503 = vrot.slane %v1502, 1
    %v1504 = vmax.f32 %v1502, %v1503
    %v1505 = vsel %vm1133, %v1033, -inf
    %v1506 = vrot.slane %v1505, 4
    %v1507 = vmax.f32 %v1505, %v1506
    %v1508 = vrot.slane %v1507, 2
    %v1509 = vmax.f32 %v1507, %v1508
    %v1510 = vrot.slane %v1509, 1
    %v1511 = vmax.f32 %v1509, %v1510
    %v1512 = vsel %vm1133, %v1032, -inf
    %v1513 = vrot.slane %v1512, 4
    %v1514 = vmax.f32 %v1512, %v1513
    %v1515 = vrot.slane %v1514, 2
    %v1516 = vmax.f32 %v1514, %v1515
    %v1517 = vrot.slane %v1516, 1
    %v1518 = vmax.f32 %v1516, %v1517
    %v1519 = vsel %vm1133, %v1034, -inf
    %v1520 = vrot.slane %v1519, 4
    %v1521 = vmax.f32 %v1519, %v1520
    %v1522 = vrot.slane %v1521, 2
    %v1523 = vmax.f32 %v1521, %v1522
    %v1524 = vrot.slane %v1523, 1
    %v1525 = vmax.f32 %v1523, %v1524
    %v1526 = vsel %vm1133, %v1042, -inf
    %v1527 = vrot.slane %v1526, 4
    %v1528 = vmax.f32 %v1526, %v1527
    %v1529 = vrot.slane %v1528, 2
    %v1530 = vmax.f32 %v1528, %v1529
    %v1531 = vrot.slane %v1530, 1
    %v1532 = vmax.f32 %v1530, %v1531
    %v1533 = vsel %vm1133, %v1050, -inf
    %v1534 = vrot.slane %v1533, 4
    %v1535 = vmax.f32 %v1533, %v1534
    %v1536 = vrot.slane %v1535, 2
    %v1537 = vmax.f32 %v1535, %v1536
    %v1538 = vrot.slane %v1537, 1
    %v1539 = vmax.f32 %v1537, %v1538
    %v1540 = vsel %vm1133, %v1049, -inf
    %v1541 = vrot.slane %v1540, 4
    %v1542 = vmax.f32 %v1540, %v1541
    %v1543 = vrot.slane %v1542, 2
    %v1544 = vmax.f32 %v1542, %v1543
    %v1545 = vrot.slane %v1544, 1
    %v1546 = vmax.f32 %v1544, %v1545
    %v1547 = vsel %vm1133, %v1051, -inf
    %v1548 = vrot.slane %v1547, 4
    %v1549 = vmax.f32 %v1547, %v1548
    %v1550 = vrot.slane %v1549, 2
    %v1551 = vmax.f32 %v1549, %v1550
    %v1552 = vrot.slane %v1551, 1
    %v1553 = vmax.f32 %v1551, %v1552
    %v1554 = vsel %vm1133, %v1059, -inf
    %v1555 = vrot.slane %v1554, 4
    %v1556 = vmax.f32 %v1554, %v1555
    %v1557 = vrot.slane %v1556, 2
    %v1558 = vmax.f32 %v1556, %v1557
    %v1559 = vrot.slane %v1558, 1
    %v1560 = vmax.f32 %v1558, %v1559
    %v1561 = vsel %vm1133, %v1067, -inf
    %v1562 = vrot.slane %v1561, 4
    %v1563 = vmax.f32 %v1561, %v1562
    %v1564 = vrot.slane %v1563, 2
    %v1565 = vmax.f32 %v1563, %v1564
    %v1566 = vrot.slane %v1565, 1
    %v1567 = vmax.f32 %v1565, %v1566
    %v1568 = vsel %vm1133, %v1066, -inf
    %v1569 = vrot.slane %v1568, 4
    %v1570 = vmax.f32 %v1568, %v1569
    %v1571 = vrot.slane %v1570, 2
    %v1572 = vmax.f32 %v1570, %v1571
    %v1573 = vrot.slane %v1572, 1
    %v1574 = vmax.f32 %v1572, %v1573
    %v1575 = vsel %vm1133, %v1068, -inf
    %v1576 = vrot.slane %v1575, 4
    %v1577 = vmax.f32 %v1575, %v1576
    %v1578 = vrot.slane %v1577, 2
    %v1579 = vmax.f32 %v1577, %v1578
    %v1580 = vrot.slane %v1579, 1
    %v1581 = vmax.f32 %v1579, %v1580
    %v1582 = vmax.f32 %v1140, 0.0
    %v1583 = vmax.f32 %v1147, 0.0
    %v1584 = vmax.f32 %v1154, 0.0
    %v1585 = vmax.f32 %v1161, 0.0
    %v1586 = vmax.f32 %v1168, 0.0
    %v1587 = vmax.f32 %v1175, 0.0
    %v1588 = vmax.f32 %v1182, 0.0
    %v1589 = vmax.f32 %v1189, 0.0
    %v1590 = vmax.f32 %v1196, 0.0
    %v1591 = vmax.f32 %v1203, 0.0
    %v1592 = vmax.f32 %v1210, 0.0
    %v1593 = vmax.f32 %v1217, 0.0
    %v1594 = vmax.f32 %v1224, 0.0
    %v1595 = vmax.f32 %v1231, 0.0
    %v1596 = vmax.f32 %v1238, 0.0
    %v1597 = vmax.f32 %v1245, 0.0
    %v1598 = vmax.f32 %v1252, 0.0
    %v1599 = vmax.f32 %v1259, 0.0
    %v1600 = vmax.f32 %v1266, 0.0
    %v1601 = vmax.f32 %v1273, 0.0
    %v1602 = vmax.f32 %v1280, 0.0
    %v1603 = vmax.f32 %v1287, 0.0
    %v1604 = vmax.f32 %v1294, 0.0
    %v1605 = vmax.f32 %v1301, 0.0
    %v1606 = vmax.f32 %v1308, 0.0
    %v1607 = vmax.f32 %v1315, 0.0
    %v1608 = vmax.f32 %v1322, 0.0
    %v1609 = vmax.f32 %v1329, 0.0
    %v1610 = vmax.f32 %v1336, 0.0
    %v1611 = vmax.f32 %v1343, 0.0
    %v1612 = vmax.f32 %v1350, 0.0
    %v1613 = vmax.f32 %v1357, 0.0
    %v1614 = vmax.f32 %v1364, 0.0
    %v1615 = vmax.f32 %v1371, 0.0
    %v1616 = vmax.f32 %v1378, 0.0
    %v1617 = vmax.f32 %v1385, 0.0
    %v1618 = vmax.f32 %v1392, 0.0
    %v1619 = vmax.f32 %v1399, 0.0
    %v1620 = vmax.f32 %v1406, 0.0
    %v1621 = vmax.f32 %v1413, 0.0
    %v1622 = vmax.f32 %v1420, 0.0
    %v1623 = vmax.f32 %v1427, 0.0
    %v1624 = vmax.f32 %v1434, 0.0
    %v1625 = vmax.f32 %v1441, 0.0
    %v1626 = vmax.f32 %v1448, 0.0
    %v1627 = vmax.f32 %v1455, 0.0
    %v1628 = vmax.f32 %v1462, 0.0
    %v1629 = vmax.f32 %v1469, 0.0
    %v1630 = vmax.f32 %v1476, 0.0
    %v1631 = vmax.f32 %v1483, 0.0
    %v1632 = vmax.f32 %v1490, 0.0
    %v1633 = vmax.f32 %v1497, 0.0
    %v1634 = vmax.f32 %v1504, 0.0
    %v1635 = vmax.f32 %v1511, 0.0
    %v1636 = vmax.f32 %v1518, 0.0
    %v1637 = vmax.f32 %v1525, 0.0
    %v1638 = vmax.f32 %v1532, 0.0
    %v1639 = vmax.f32 %v1539, 0.0
    %v1640 = vmax.f32 %v1546, 0.0
    %v1641 = vmax.f32 %v1553, 0.0
    %v1642 = vmax.f32 %v1560, 0.0
    %v1643 = vmax.f32 %v1567, 0.0
    %v1644 = vmax.f32 %v1574, 0.0
    %v1645 = vmax.f32 %v1581, 0.0
    %vm1646 = vcmp.lt.s32.totalorder %v69, 0
    %v1647 = vsub.s32 0, %v69
    %v1648 = vsel %vm1646, %v1647, %v69
    %v1649 = vshrl.u32 %v1648, 3
    %v1650 = vand.u32 %v1648, 7
    %v1651 = vsub.s32 0, %v1650
    %v1652 = vsel %vm1646, %v1651, %v1650
    %vm1653 = vcmp.lt.s32.totalorder %v70, 0
    %v1654 = vsub.s32 0, %v70
    %v1655 = vsel %vm1653, %v1654, %v70
    %v1656 = vshrl.u32 %v1655, 3
    %v1657 = vand.u32 %v1655, 7
    %v1658 = vsub.s32 0, %v1657
    %v1659 = vsel %vm1653, %v1658, %v1657
    %vm1660 = vcmp.lt.s32.totalorder %v71, 0
    %v1661 = vsub.s32 0, %v71
    %v1662 = vsel %vm1660, %v1661, %v71
    %v1663 = vshrl.u32 %v1662, 3
    %v1664 = vand.u32 %v1662, 7
    %v1665 = vsub.s32 0, %v1664
    %v1666 = vsel %vm1660, %v1665, %v1664
    %vm1667 = vcmp.lt.s32.totalorder %v72, 0
    %v1668 = vsub.s32 0, %v72
    %v1669 = vsel %vm1667, %v1668, %v72
    %v1670 = vshrl.u32 %v1669, 3
    %v1671 = vand.u32 %v1669, 7
    %v1672 = vsub.s32 0, %v1671
    %v1673 = vsel %vm1667, %v1672, %v1671
    %vm1674 = vcmp.lt.s32.totalorder %v73, 0
    %v1675 = vsub.s32 0, %v73
    %v1676 = vsel %vm1674, %v1675, %v73
    %v1677 = vshrl.u32 %v1676, 3
    %v1678 = vand.u32 %v1676, 7
    %v1679 = vsub.s32 0, %v1678
    %v1680 = vsel %vm1674, %v1679, %v1678
    %vm1681 = vcmp.lt.s32.totalorder %v74, 0
    %v1682 = vsub.s32 0, %v74
    %v1683 = vsel %vm1681, %v1682, %v74
    %v1684 = vshrl.u32 %v1683, 3
    %v1685 = vand.u32 %v1683, 7
    %v1686 = vsub.s32 0, %v1685
    %v1687 = vsel %vm1681, %v1686, %v1685
    %vm1688 = vcmp.lt.s32.totalorder %v75, 0
    %v1689 = vsub.s32 0, %v75
    %v1690 = vsel %vm1688, %v1689, %v75
    %v1691 = vshrl.u32 %v1690, 3
    %v1692 = vand.u32 %v1690, 7
    %v1693 = vsub.s32 0, %v1692
    %v1694 = vsel %vm1688, %v1693, %v1692
    %vm1695 = vcmp.lt.s32.totalorder %v76, 0
    %v1696 = vsub.s32 0, %v76
    %v1697 = vsel %vm1695, %v1696, %v76
    %v1698 = vshrl.u32 %v1697, 3
    %v1699 = vand.u32 %v1697, 7
    %v1700 = vsub.s32 0, %v1699
    %v1701 = vsel %vm1695, %v1700, %v1699
    %vm1702 = vcmp.ne.s32.totalorder %v1652, 0
    %vm1703 = vcmp.ne.s32.totalorder %v1659, 0
    %vm1704 = vcmp.ne.s32.totalorder %v1666, 0
    %vm1705 = vcmp.ne.s32.totalorder %v1673, 0
    %vm1706 = vcmp.ne.s32.totalorder %v1680, 0
    %vm1707 = vcmp.ne.s32.totalorder %v1687, 0
    %vm1708 = vcmp.ne.s32.totalorder %v1694, 0
    %vm1709 = vcmp.ne.s32.totalorder %v1701, 0
    %vm1710 = vcmp.lt.s32.totalorder %v1652, 0
    %vm1711 = vcmp.lt.s32.totalorder %v1659, 0
    %vm1712 = vcmp.lt.s32.totalorder %v1666, 0
    %vm1713 = vcmp.lt.s32.totalorder %v1673, 0
    %vm1714 = vcmp.lt.s32.totalorder %v1680, 0
    %vm1715 = vcmp.lt.s32.totalorder %v1687, 0
    %vm1716 = vcmp.lt.s32.totalorder %v1694, 0
    %vm1717 = vcmp.lt.s32.totalorder %v1701, 0
    %vm1718 = vmand %vm1710, %vm1702
    %vm1719 = vmand %vm1711, %vm1703
    %vm1720 = vmand %vm1712, %vm1704
    %vm1721 = vmand %vm1713, %vm1705
    %vm1722 = vmand %vm1714, %vm1706
    %vm1723 = vmand %vm1715, %vm1707
    %vm1724 = vmand %vm1716, %vm1708
    %vm1725 = vmand %vm1717, %vm1709
    %v1726 = vadd.s32 %v1652, 8
    %v1727 = vadd.s32 %v1659, 8
    %v1728 = vadd.s32 %v1666, 8
    %v1729 = vadd.s32 %v1673, 8
    %v1730 = vadd.s32 %v1680, 8
    %v1731 = vadd.s32 %v1687, 8
    %v1732 = vadd.s32 %v1694, 8
    %v1733 = vadd.s32 %v1701, 8
    %v1734 = vsel %vm1718, %v1726, %v1652
    %v1735 = vsel %vm1719, %v1727, %v1659
    %v1736 = vsel %vm1720, %v1728, %v1666
    %v1737 = vsel %vm1721, %v1729, %v1673
    %v1738 = vsel %vm1722, %v1730, %v1680
    %v1739 = vsel %vm1723, %v1731, %v1687
    %v1740 = vsel %vm1724, %v1732, %v1694
    %v1741 = vsel %vm1725, %v1733, %v1701
    %vm1806 = vcmask 1041409
    %v1807 = vsel %vm1806, %v1583, %v1582
    %vm1808 = vcmask 1042434
    %v1809 = vsel %vm1808, %v1584, %v1807
    %vm1810 = vcmask 1043459
    %v1811 = vsel %vm1810, %v1585, %v1809
    %vm1812 = vcmask 1044484
    %v1813 = vsel %vm1812, %v1586, %v1811
    %vm1814 = vcmask 1045509
    %v1815 = vsel %vm1814, %v1587, %v1813
    %vm1816 = vcmask 1046534
    %v1817 = vsel %vm1816, %v1588, %v1815
    %vm1818 = vcmask 1047559
    %v1819 = vsel %vm1818, %v1589, %v1817
    %v1820 = vsel %vm1806, %v1591, %v1590
    %v1821 = vsel %vm1808, %v1592, %v1820
    %v1822 = vsel %vm1810, %v1593, %v1821
    %v1823 = vsel %vm1812, %v1594, %v1822
    %v1824 = vsel %vm1814, %v1595, %v1823
    %v1825 = vsel %vm1816, %v1596, %v1824
    %v1826 = vsel %vm1818, %v1597, %v1825
    %v1827 = vsel %vm1806, %v1599, %v1598
    %v1828 = vsel %vm1808, %v1600, %v1827
    %v1829 = vsel %vm1810, %v1601, %v1828
    %v1830 = vsel %vm1812, %v1602, %v1829
    %v1831 = vsel %vm1814, %v1603, %v1830
    %v1832 = vsel %vm1816, %v1604, %v1831
    %v1833 = vsel %vm1818, %v1605, %v1832
    %v1834 = vsel %vm1806, %v1607, %v1606
    %v1835 = vsel %vm1808, %v1608, %v1834
    %v1836 = vsel %vm1810, %v1609, %v1835
    %v1837 = vsel %vm1812, %v1610, %v1836
    %v1838 = vsel %vm1814, %v1611, %v1837
    %v1839 = vsel %vm1816, %v1612, %v1838
    %v1840 = vsel %vm1818, %v1613, %v1839
    %v1841 = vsel %vm1806, %v1615, %v1614
    %v1842 = vsel %vm1808, %v1616, %v1841
    %v1843 = vsel %vm1810, %v1617, %v1842
    %v1844 = vsel %vm1812, %v1618, %v1843
    %v1845 = vsel %vm1814, %v1619, %v1844
    %v1846 = vsel %vm1816, %v1620, %v1845
    %v1847 = vsel %vm1818, %v1621, %v1846
    %v1848 = vsel %vm1806, %v1623, %v1622
    %v1849 = vsel %vm1808, %v1624, %v1848
    %v1850 = vsel %vm1810, %v1625, %v1849
    %v1851 = vsel %vm1812, %v1626, %v1850
    %v1852 = vsel %vm1814, %v1627, %v1851
    %v1853 = vsel %vm1816, %v1628, %v1852
    %v1854 = vsel %vm1818, %v1629, %v1853
    %v1855 = vsel %vm1806, %v1631, %v1630
    %v1856 = vsel %vm1808, %v1632, %v1855
    %v1857 = vsel %vm1810, %v1633, %v1856
    %v1858 = vsel %vm1812, %v1634, %v1857
    %v1859 = vsel %vm1814, %v1635, %v1858
    %v1860 = vsel %vm1816, %v1636, %v1859
    %v1861 = vsel %vm1818, %v1637, %v1860
    %v1862 = vsel %vm1806, %v1639, %v1638
    %v1863 = vsel %vm1808, %v1640, %v1862
    %v1864 = vsel %vm1810, %v1641, %v1863
    %v1865 = vsel %vm1812, %v1642, %v1864
    %v1866 = vsel %vm1814, %v1643, %v1865
    %v1867 = vsel %vm1816, %v1644, %v1866
    %v1868 = vsel %vm1818, %v1645, %v1867
    %v1877 = vrot.slane %v1819, 7
    %v1878 = vrot.slane %v1826, 7
    %v1879 = vrot.slane %v1833, 7
    %v1880 = vrot.slane %v1840, 7
    %v1881 = vrot.slane %v1847, 7
    %v1882 = vrot.slane %v1854, 7
    %v1883 = vrot.slane %v1861, 7
    %v1884 = vrot.slane %v1868, 7
    %v1885 = vsel %vm293, %v1883, %v1884
    %v1886 = vsel %vm293, %v1882, %v1883
    %v1887 = vsel %vm293, %v1881, %v1882
    %v1888 = vsel %vm293, %v1880, %v1881
    %v1889 = vsel %vm293, %v1879, %v1880
    %v1890 = vsel %vm293, %v1878, %v1879
    %v1891 = vsel %vm293, %v1877, %v1878
    %v1892 = vsel %vm293, %v1884, %v1877
    %vm1893 = vcmp.ge.s32.totalorder %v1734, 1
    %vm1894 = vcmp.ge.s32.totalorder %v1735, 1
    %vm1895 = vcmp.ge.s32.totalorder %v1736, 1
    %vm1896 = vcmp.ge.s32.totalorder %v1737, 1
    %vm1897 = vcmp.ge.s32.totalorder %v1738, 1
    %vm1898 = vcmp.ge.s32.totalorder %v1739, 1
    %vm1899 = vcmp.ge.s32.totalorder %v1740, 1
    %vm1900 = vcmp.ge.s32.totalorder %v1741, 1
    %v1901 = vsel %vm1893, 1, 0
    %v1902 = vsel %vm1894, 1, 0
    %v1903 = vsel %vm1895, 1, 0
    %v1904 = vsel %vm1896, 1, 0
    %v1905 = vsel %vm1897, 1, 0
    %v1906 = vsel %vm1898, 1, 0
    %v1907 = vsel %vm1899, 1, 0
    %v1908 = vsel %vm1900, 1, 0
    %vm1909 = vcmp.eq.s32.totalorder %v1901, 1
    %vm1910 = vcmp.eq.s32.totalorder %v1902, 1
    %vm1911 = vcmp.eq.s32.totalorder %v1903, 1
    %vm1912 = vcmp.eq.s32.totalorder %v1904, 1
    %vm1913 = vcmp.eq.s32.totalorder %v1905, 1
    %vm1914 = vcmp.eq.s32.totalorder %v1906, 1
    %vm1915 = vcmp.eq.s32.totalorder %v1907, 1
    %vm1916 = vcmp.eq.s32.totalorder %v1908, 1
    %v1917 = vsel %vm1909, %v1892, 0.0
    %v1918 = vsel %vm1910, %v1891, 0.0
    %v1919 = vsel %vm1911, %v1890, 0.0
    %v1920 = vsel %vm1912, %v1889, 0.0
    %v1921 = vsel %vm1913, %v1888, 0.0
    %v1922 = vsel %vm1914, %v1887, 0.0
    %v1923 = vsel %vm1915, %v1886, 0.0
    %v1924 = vsel %vm1916, %v1885, 0.0
    %v1925 = vrot.slane %v1819, 1
    %v1926 = vrot.slane %v1826, 1
    %v1927 = vrot.slane %v1833, 1
    %v1928 = vrot.slane %v1840, 1
    %v1929 = vrot.slane %v1847, 1
    %v1930 = vrot.slane %v1854, 1
    %v1931 = vrot.slane %v1861, 1
    %v1932 = vrot.slane %v1868, 1
    %v1933 = vsel %vm390, %v1931, %v1932
    %v1934 = vsel %vm390, %v1930, %v1931
    %v1935 = vsel %vm390, %v1929, %v1930
    %v1936 = vsel %vm390, %v1928, %v1929
    %v1937 = vsel %vm390, %v1927, %v1928
    %v1938 = vsel %vm390, %v1926, %v1927
    %v1939 = vsel %vm390, %v1925, %v1926
    %v1940 = vsel %vm390, %v1932, %v1925
    %vm1941 = vcmp.lt.s32.totalorder %v1734, 7
    %vm1942 = vcmp.lt.s32.totalorder %v1735, 7
    %vm1943 = vcmp.lt.s32.totalorder %v1736, 7
    %vm1944 = vcmp.lt.s32.totalorder %v1737, 7
    %vm1945 = vcmp.lt.s32.totalorder %v1738, 7
    %vm1946 = vcmp.lt.s32.totalorder %v1739, 7
    %vm1947 = vcmp.lt.s32.totalorder %v1740, 7
    %vm1948 = vcmp.lt.s32.totalorder %v1741, 7
    %v1949 = vsel %vm1941, 1, 0
    %v1950 = vsel %vm1942, 1, 0
    %v1951 = vsel %vm1943, 1, 0
    %v1952 = vsel %vm1944, 1, 0
    %v1953 = vsel %vm1945, 1, 0
    %v1954 = vsel %vm1946, 1, 0
    %v1955 = vsel %vm1947, 1, 0
    %v1956 = vsel %vm1948, 1, 0
    %vm1957 = vcmp.eq.s32.totalorder %v1949, 1
    %vm1958 = vcmp.eq.s32.totalorder %v1950, 1
    %vm1959 = vcmp.eq.s32.totalorder %v1951, 1
    %vm1960 = vcmp.eq.s32.totalorder %v1952, 1
    %vm1961 = vcmp.eq.s32.totalorder %v1953, 1
    %vm1962 = vcmp.eq.s32.totalorder %v1954, 1
    %vm1963 = vcmp.eq.s32.totalorder %v1955, 1
    %vm1964 = vcmp.eq.s32.totalorder %v1956, 1
    %v1965 = vsel %vm1957, %v1939, 0.0
    %v1966 = vsel %vm1958, %v1938, 0.0
    %v1967 = vsel %vm1959, %v1937, 0.0
    %v1968 = vsel %vm1960, %v1936, 0.0
    %v1969 = vsel %vm1961, %v1935, 0.0
    %v1970 = vsel %vm1962, %v1934, 0.0
    %v1971 = vsel %vm1963, %v1933, 0.0
    %v1972 = vsel %vm1964, %v1940, 0.0
    %v1973 = vrot.slane %v1819, 2
    %v1974 = vrot.slane %v1826, 2
    %v1975 = vrot.slane %v1833, 2
    %v1976 = vrot.slane %v1840, 2
    %v1977 = vrot.slane %v1847, 2
    %v1978 = vrot.slane %v1854, 2
    %v1979 = vrot.slane %v1861, 2
    %v1980 = vrot.slane %v1868, 2
    %vm1981 = vcmp.lt.s32.totalorder %v69, 6
    %v1982 = vsel %vm1981, %v1979, %v1980
    %v1983 = vsel %vm1981, %v1978, %v1979
    %v1984 = vsel %vm1981, %v1977, %v1978
    %v1985 = vsel %vm1981, %v1976, %v1977
    %v1986 = vsel %vm1981, %v1975, %v1976
    %v1987 = vsel %vm1981, %v1974, %v1975
    %v1988 = vsel %vm1981, %v1973, %v1974
    %v1989 = vsel %vm1981, %v1980, %v1973
    %vm1990 = vcmp.lt.s32.totalorder %v1734, 6
    %vm1991 = vcmp.lt.s32.totalorder %v1735, 6
    %vm1992 = vcmp.lt.s32.totalorder %v1736, 6
    %vm1993 = vcmp.lt.s32.totalorder %v1737, 6
    %vm1994 = vcmp.lt.s32.totalorder %v1738, 6
    %vm1995 = vcmp.lt.s32.totalorder %v1739, 6
    %vm1996 = vcmp.lt.s32.totalorder %v1740, 6
    %vm1997 = vcmp.lt.s32.totalorder %v1741, 6
    %v1998 = vsel %vm1990, 1, 0
    %v1999 = vsel %vm1991, 1, 0
    %v2000 = vsel %vm1992, 1, 0
    %v2001 = vsel %vm1993, 1, 0
    %v2002 = vsel %vm1994, 1, 0
    %v2003 = vsel %vm1995, 1, 0
    %v2004 = vsel %vm1996, 1, 0
    %v2005 = vsel %vm1997, 1, 0
    %vm2006 = vcmp.eq.s32.totalorder %v1998, 1
    %vm2007 = vcmp.eq.s32.totalorder %v1999, 1
    %vm2008 = vcmp.eq.s32.totalorder %v2000, 1
    %vm2009 = vcmp.eq.s32.totalorder %v2001, 1
    %vm2010 = vcmp.eq.s32.totalorder %v2002, 1
    %vm2011 = vcmp.eq.s32.totalorder %v2003, 1
    %vm2012 = vcmp.eq.s32.totalorder %v2004, 1
    %vm2013 = vcmp.eq.s32.totalorder %v2005, 1
    %v2014 = vsel %vm2006, %v1988, 0.0
    %v2015 = vsel %vm2007, %v1987, 0.0
    %v2016 = vsel %vm2008, %v1986, 0.0
    %v2017 = vsel %vm2009, %v1985, 0.0
    %v2018 = vsel %vm2010, %v1984, 0.0
    %v2019 = vsel %vm2011, %v1983, 0.0
    %v2020 = vsel %vm2012, %v1982, 0.0
    %v2021 = vsel %vm2013, %v1989, 0.0
    %2022 = vrot.lane.b32.xlu0 %v1819, 64
    %v2023 = vpop.permute.xlu0 %2022
    %2024 = vrot.lane.b32.xlu0 %v1826, 64
    %v2025 = vpop.permute.xlu0 %2024
    %2026 = vrot.lane.b32.xlu0 %v1833, 64
    %v2027 = vpop.permute.xlu0 %2026
    %2028 = vrot.lane.b32.xlu0 %v1840, 64
    %v2029 = vpop.permute.xlu0 %2028
    %2030 = vrot.lane.b32.xlu0 %v1847, 64
    %v2031 = vpop.permute.xlu0 %2030
    %2032 = vrot.lane.b32.xlu0 %v1854, 64
    %v2033 = vpop.permute.xlu0 %2032
    %2034 = vrot.lane.b32.xlu0 %v1861, 64
    %v2035 = vpop.permute.xlu0 %2034
    %2036 = vrot.lane.b32.xlu0 %v1868, 64
    %v2037 = vpop.permute.xlu0 %2036
    %2054 = vrot.lane.b32.xlu0 %v2014, 64
    %v2055 = vpop.permute.xlu0 %2054
    %2056 = vrot.lane.b32.xlu0 %v2015, 64
    %v2057 = vpop.permute.xlu0 %2056
    %2058 = vrot.lane.b32.xlu0 %v2016, 64
    %v2059 = vpop.permute.xlu0 %2058
    %2060 = vrot.lane.b32.xlu0 %v2017, 64
    %v2061 = vpop.permute.xlu0 %2060
    %2062 = vrot.lane.b32.xlu0 %v2018, 64
    %v2063 = vpop.permute.xlu0 %2062
    %2064 = vrot.lane.b32.xlu0 %v2019, 64
    %v2065 = vpop.permute.xlu0 %2064
    %2066 = vrot.lane.b32.xlu0 %v2020, 64
    %v2067 = vpop.permute.xlu0 %2066
    %2068 = vrot.lane.b32.xlu0 %v2021, 64
    %v2069 = vpop.permute.xlu0 %2068
    %vm2078 = vcmask 523264
    %v2079 = vsel %vm2078, %v1917, %v2023
    %v2080 = vsel %vm2078, %v1918, %v2025
    %v2081 = vsel %vm2078, %v1919, %v2027
    %v2082 = vsel %vm2078, %v1920, %v2029
    %v2083 = vsel %vm2078, %v1921, %v2031
    %v2084 = vsel %vm2078, %v1922, %v2033
    %v2085 = vsel %vm2078, %v1923, %v2035
    %v2086 = vsel %vm2078, %v1924, %v2037
    %v2087 = vsel %vm2078, %v1965, %v2055
    %v2088 = vsel %vm2078, %v1966, %v2057
    %v2089 = vsel %vm2078, %v1967, %v2059
    %v2090 = vsel %vm2078, %v1968, %v2061
    %v2091 = vsel %vm2078, %v1969, %v2063
    %v2092 = vsel %vm2078, %v1970, %v2065
    %v2093 = vsel %vm2078, %v1971, %v2067
    %v2094 = vsel %vm2078, %v1972, %v2069
    %v2095 = vpack.c.bf16 %v2080, %v2079
    %v2096 = vpack.c.bf16 %v2088, %v2087
    %v2097 = vpack.c.bf16 %v2082, %v2081
    %v2098 = vpack.c.bf16 %v2090, %v2089
    %v2099 = vpack.c.bf16 %v2084, %v2083
    %v2100 = vpack.c.bf16 %v2092, %v2091
    %v2101 = vpack.c.bf16 %v2086, %v2085
    %v2102 = vpack.c.bf16 %v2094, %v2093
    %v2103 = vld [vmem:[%s4] sm:$0xf]
    %v2104 = vld [vmem:[%s4 + $0x4] sm:$0xf]
    %v2105 = vld [vmem:[%s4 + $0x8] sm:$0xf]
    %v2106 = vld [vmem:[%s4 + $0xc] sm:$0xf]
    %v2107 = vld [vmem:[%s4 + $0x10] sm:$0xf]
    %v2108 = vld [vmem:[%s4 + $0x14] sm:$0xf]
    %v2109 = vld [vmem:[%s4 + $0x18] sm:$0xf]
    %v2110 = vld [vmem:[%s4 + $0x1c] sm:$0xf]
    %v2111 = vld [vmem:[%s4 + $0x20] sm:$0xf]
    %v2112 = vld [vmem:[%s4 + $0x24] sm:$0xf]
    %v2113 = vld [vmem:[%s4 + $0x28] sm:$0xf]
    %v2114 = vld [vmem:[%s4 + $0x2c] sm:$0xf]
    %v2115 = vld [vmem:[%s4 + $0x30] sm:$0xf]
    %v2116 = vld [vmem:[%s4 + $0x34] sm:$0xf]
    %v2117 = vld [vmem:[%s4 + $0x38] sm:$0xf]
    %v2118 = vld [vmem:[%s4 + $0x3c] sm:$0xf]
    %v2119 = vld [vmem:[%s4 + $0x40] sm:$0xf]
    %v2120 = vld [vmem:[%s4 + $0x44] sm:$0xf]
    %v2121 = vld [vmem:[%s4 + $0x48] sm:$0xf]
    %v2122 = vld [vmem:[%s4 + $0x4c] sm:$0xf]
    %v2123 = vld [vmem:[%s4 + $0x50] sm:$0xf]
    %v2124 = vld [vmem:[%s4 + $0x54] sm:$0xf]
    %v2125 = vld [vmem:[%s4 + $0x58] sm:$0xf]
    %v2126 = vld [vmem:[%s4 + $0x5c] sm:$0xf]
    %v2127 = vld [vmem:[%s4 + $0x60] sm:$0xf]
    %v2128 = vld [vmem:[%s4 + $0x64] sm:$0xf]
    %v2129 = vld [vmem:[%s4 + $0x68] sm:$0xf]
    %v2130 = vld [vmem:[%s4 + $0x6c] sm:$0xf]
    %v2131 = vld [vmem:[%s4 + $0x70] sm:$0xf]
    %v2132 = vld [vmem:[%s4 + $0x74] sm:$0xf]
    %v2133 = vld [vmem:[%s4 + $0x78] sm:$0xf]
    %v2134 = vld [vmem:[%s4 + $0x7c] sm:$0xf]
    %v2135 = vld [vmem:[%s5] sm:$0x1]
    %v2137 = vlaneseq
    %v2138 = vshrl.u32 %v2137, 7
    %v2139 = vsub.s32 0, %v2138
    %v2140 = vrot.slane %v2135, %v2139
    %v2174 = vunpack.c.l.b16 %v2103
    %v2175 = vunpack.c.l.b16 %v2104
    %v2176 = vunpack.c.l.b16 %v2105
    %v2177 = vunpack.c.l.b16 %v2106
    %v2178 = vunpack.c.l.b16 %v2107
    %v2179 = vunpack.c.l.b16 %v2108
    %v2180 = vunpack.c.l.b16 %v2109
    %v2181 = vunpack.c.l.b16 %v2110
    %v2182 = vunpack.c.l.b16 %v2111
    %v2183 = vunpack.c.l.b16 %v2112
    %v2184 = vunpack.c.l.b16 %v2113
    %v2185 = vunpack.c.l.b16 %v2114
    %v2186 = vunpack.c.l.b16 %v2115
    %v2187 = vunpack.c.l.b16 %v2116
    %v2188 = vunpack.c.l.b16 %v2117
    %v2189 = vunpack.c.l.b16 %v2118
    %v2190 = vunpack.c.l.b16 %v2119
    %v2191 = vunpack.c.l.b16 %v2120
    %v2192 = vunpack.c.l.b16 %v2121
    %v2193 = vunpack.c.l.b16 %v2122
    %v2194 = vunpack.c.l.b16 %v2123
    %v2195 = vunpack.c.l.b16 %v2124
    %v2196 = vunpack.c.l.b16 %v2125
    %v2197 = vunpack.c.l.b16 %v2126
    %v2198 = vunpack.c.l.b16 %v2127
    %v2199 = vunpack.c.l.b16 %v2128
    %v2200 = vunpack.c.l.b16 %v2129
    %v2201 = vunpack.c.l.b16 %v2130
    %v2202 = vunpack.c.l.b16 %v2131
    %v2203 = vunpack.c.l.b16 %v2132
    %v2204 = vunpack.c.l.b16 %v2133
    %v2205 = vunpack.c.l.b16 %v2134
    %v2206 = vpack.c.b16 %v2175, %v2174
    %v2207 = vpack.c.b16 %v2177, %v2176
    %v2208 = vpack.c.b16 %v2179, %v2178
    %v2209 = vpack.c.b16 %v2181, %v2180
    %v2210 = vpack.c.b16 %v2183, %v2182
    %v2211 = vpack.c.b16 %v2185, %v2184
    %v2212 = vpack.c.b16 %v2187, %v2186
    %v2213 = vpack.c.b16 %v2189, %v2188
    %v2214 = vpack.c.b16 %v2191, %v2190
    %v2215 = vpack.c.b16 %v2193, %v2192
    %v2216 = vpack.c.b16 %v2195, %v2194
    %v2217 = vpack.c.b16 %v2197, %v2196
    %v2218 = vpack.c.b16 %v2199, %v2198
    %v2219 = vpack.c.b16 %v2201, %v2200
    %v2220 = vpack.c.b16 %v2203, %v2202
    %v2221 = vpack.c.b16 %v2205, %v2204
    %2238 = vmatprep.subr.bf16.mxu0 0
    %2239 = vmatpush1.bf16.msra.mxu0 %v2206
    %2240 = vmatprep.subr.bf16.mxu0 0
    %2241 = vmatpush1.bf16.msra.mxu0 %v2207
    %2242 = vmatprep.subr.bf16.mxu0 0
    %2243 = vmatpush1.bf16.msra.mxu0 %v2208
    %2244 = vmatprep.subr.bf16.mxu0 0
    %2245 = vmatpush1.bf16.msra.mxu0 %v2209
    %2246 = vmatprep.subr.bf16.mxu0 0
    %2247 = vmatpush1.bf16.msra.mxu0 %v2210
    %2248 = vmatprep.subr.bf16.mxu0 0
    %2249 = vmatpush1.bf16.msra.mxu0 %v2211
    %2250 = vmatprep.subr.bf16.mxu0 0
    %2251 = vmatpush1.bf16.msra.mxu0 %v2212
    %2252 = vmatprep.subr.bf16.mxu0 0
    %2253 = vmatpush1.bf16.msra.mxu0 %v2213
    %2254 = vmatprep.subr.bf16.mxu0 0
    %2255 = vmatpush1.bf16.msra.mxu0 %v2214
    %2256 = vmatprep.subr.bf16.mxu0 0
    %2257 = vmatpush1.bf16.msra.mxu0 %v2215
    %2258 = vmatprep.subr.bf16.mxu0 0
    %2259 = vmatpush1.bf16.msra.mxu0 %v2216
    %2260 = vmatprep.subr.bf16.mxu0 0
    %2261 = vmatpush1.bf16.msra.mxu0 %v2217
    %2262 = vmatprep.subr.bf16.mxu0 0
    %2263 = vmatpush1.bf16.msra.mxu0 %v2218
    %2264 = vmatprep.subr.bf16.mxu0 0
    %2265 = vmatpush1.bf16.msra.mxu0 %v2219
    %2266 = vmatprep.subr.bf16.mxu0 0
    %2267 = vmatpush1.bf16.msra.mxu0 %v2220
    %2268 = vmatprep.subr.bf16.mxu0 0
    %2269 = vmatpush1.bf16.msra.mxu0 %v2221
    %2270 = vmatprep.mubr.bf16.mxu0 %v2096
    %2271 = vmatmul.mubr.bf16.gmra.mrb[0].mxu0 %v2095
    %v2272 = vpop.f32.mrb[0].mxu0
    %v2273 = vadd.f32 %v2140, %v2272
    %v2274 = vpop.f32.mrb[0].mxu0
    %v2275 = vpop.f32.mrb[0].mxu0
    %v2276 = vadd.f32 %v2140, %v2275
    %v2277 = vpop.f32.mrb[0].mxu0
    %2278 = vmatprep.mubr.bf16.mxu0 %v2098
    %2279 = vmatmul.mubr.bf16.gmra.mrb[0].mxu0 %v2097
    %v2280 = vpop.f32.mrb[0].mxu0
    %v2281 = vadd.f32 %v2140, %v2280
    %v2282 = vpop.f32.mrb[0].mxu0
    %v2283 = vpop.f32.mrb[0].mxu0
    %v2284 = vadd.f32 %v2140, %v2283
    %v2285 = vpop.f32.mrb[0].mxu0
    %2286 = vmatprep.mubr.bf16.mxu0 %v2100
    %2287 = vmatmul.mubr.bf16.gmra.mrb[0].mxu0 %v2099
    %v2288 = vpop.f32.mrb[0].mxu0
    %v2289 = vadd.f32 %v2140, %v2288
    %v2290 = vpop.f32.mrb[0].mxu0
    %v2291 = vpop.f32.mrb[0].mxu0
    %v2292 = vadd.f32 %v2140, %v2291
    %v2293 = vpop.f32.mrb[0].mxu0
    %2294 = vmatprep.mubr.bf16.mxu0 %v2102
    %2295 = vmatmul.mubr.bf16.gmra.mrb[0].mxu0 %v2101
    %v2296 = vpop.f32.mrb[0].mxu0
    %v2297 = vadd.f32 %v2140, %v2296
    %v2298 = vpop.f32.mrb[0].mxu0
    %v2299 = vpop.f32.mrb[0].mxu0
    %v2300 = vadd.f32 %v2140, %v2299
    %v2301 = vpop.f32.mrb[0].mxu0
    %2302 = vdwg.mxu0
    %v2311 = vcombine.high %v2273, %v2273
    %v2313 = vunpack.c.l.s4 1983009808
    %v2314 = vunpack.c.0.s8 %v2313
    %v2315 = vlaneseq
    %v2316 = vshrl.u32 %v2315, 7
    %v2317 = vsub.s32 %v2314, %v2316
    %v2318 = vrot.slane %v2273, %v2317
    %v2320 = vunpack.c.l.s4 1983009808
    %v2321 = vunpack.c.0.s8 %v2320
    %v2322 = vlaneseq
    %v2323 = vshrl.u32 %v2322, 7
    %v2324 = vsub.s32 %v2321, %v2323
    %v2325 = vrot.slane %v2311, %v2324
    %v2326 = vcombine.high %v2318, %v2318
    %v2327 = vcombine.high %v2325, %v2325
    %v2328 = vcombine.high %v2276, %v2276
    %v2330 = vunpack.c.l.s4 1983009808
    %v2331 = vunpack.c.0.s8 %v2330
    %v2332 = vlaneseq
    %v2333 = vshrl.u32 %v2332, 7
    %v2334 = vsub.s32 %v2331, %v2333
    %v2335 = vrot.slane %v2276, %v2334
    %v2337 = vunpack.c.l.s4 1983009808
    %v2338 = vunpack.c.0.s8 %v2337
    %v2339 = vlaneseq
    %v2340 = vshrl.u32 %v2339, 7
    %v2341 = vsub.s32 %v2338, %v2340
    %v2342 = vrot.slane %v2328, %v2341
    %v2343 = vcombine.high %v2335, %v2335
    %v2344 = vcombine.high %v2342, %v2342
    %v2345 = vcombine.high %v2281, %v2281
    %v2347 = vunpack.c.l.s4 1983009808
    %v2348 = vunpack.c.0.s8 %v2347
    %v2349 = vlaneseq
    %v2350 = vshrl.u32 %v2349, 7
    %v2351 = vsub.s32 %v2348, %v2350
    %v2352 = vrot.slane %v2281, %v2351
    %v2354 = vunpack.c.l.s4 1983009808
    %v2355 = vunpack.c.0.s8 %v2354
    %v2356 = vlaneseq
    %v2357 = vshrl.u32 %v2356, 7
    %v2358 = vsub.s32 %v2355, %v2357
    %v2359 = vrot.slane %v2345, %v2358
    %v2360 = vcombine.high %v2352, %v2352
    %v2361 = vcombine.high %v2359, %v2359
    %v2362 = vcombine.high %v2284, %v2284
    %v2364 = vunpack.c.l.s4 1983009808
    %v2365 = vunpack.c.0.s8 %v2364
    %v2366 = vlaneseq
    %v2367 = vshrl.u32 %v2366, 7
    %v2368 = vsub.s32 %v2365, %v2367
    %v2369 = vrot.slane %v2284, %v2368
    %v2371 = vunpack.c.l.s4 1983009808
    %v2372 = vunpack.c.0.s8 %v2371
    %v2373 = vlaneseq
    %v2374 = vshrl.u32 %v2373, 7
    %v2375 = vsub.s32 %v2372, %v2374
    %v2376 = vrot.slane %v2362, %v2375
    %v2377 = vcombine.high %v2369, %v2369
    %v2378 = vcombine.high %v2376, %v2376
    %v2379 = vcombine.high %v2289, %v2289
    %v2381 = vunpack.c.l.s4 1983009808
    %v2382 = vunpack.c.0.s8 %v2381
    %v2383 = vlaneseq
    %v2384 = vshrl.u32 %v2383, 7
    %v2385 = vsub.s32 %v2382, %v2384
    %v2386 = vrot.slane %v2289, %v2385
    %v2388 = vunpack.c.l.s4 1983009808
    %v2389 = vunpack.c.0.s8 %v2388
    %v2390 = vlaneseq
    %v2391 = vshrl.u32 %v2390, 7
    %v2392 = vsub.s32 %v2389, %v2391
    %v2393 = vrot.slane %v2379, %v2392
    %v2394 = vcombine.high %v2386, %v2386
    %v2395 = vcombine.high %v2393, %v2393
    %v2396 = vcombine.high %v2292, %v2292
    %v2398 = vunpack.c.l.s4 1983009808
    %v2399 = vunpack.c.0.s8 %v2398
    %v2400 = vlaneseq
    %v2401 = vshrl.u32 %v2400, 7
    %v2402 = vsub.s32 %v2399, %v2401
    %v2403 = vrot.slane %v2292, %v2402
    %v2405 = vunpack.c.l.s4 1983009808
    %v2406 = vunpack.c.0.s8 %v2405
    %v2407 = vlaneseq
    %v2408 = vshrl.u32 %v2407, 7
    %v2409 = vsub.s32 %v2406, %v2408
    %v2410 = vrot.slane %v2396, %v2409
    %v2411 = vcombine.high %v2403, %v2403
    %v2412 = vcombine.high %v2410, %v2410
    %v2413 = vcombine.high %v2297, %v2297
    %v2415 = vunpack.c.l.s4 1983009808
    %v2416 = vunpack.c.0.s8 %v2415
    %v2417 = vlaneseq
    %v2418 = vshrl.u32 %v2417, 7
    %v2419 = vsub.s32 %v2416, %v2418
    %v2420 = vrot.slane %v2297, %v2419
    %v2422 = vunpack.c.l.s4 1983009808
    %v2423 = vunpack.c.0.s8 %v2422
    %v2424 = vlaneseq
    %v2425 = vshrl.u32 %v2424, 7
    %v2426 = vsub.s32 %v2423, %v2425
    %v2427 = vrot.slane %v2413, %v2426
    %v2428 = vcombine.high %v2420, %v2420
    %v2429 = vcombine.high %v2427, %v2427
    %v2430 = vcombine.high %v2300, %v2300
    %v2432 = vunpack.c.l.s4 1983009808
    %v2433 = vunpack.c.0.s8 %v2432
    %v2434 = vlaneseq
    %v2435 = vshrl.u32 %v2434, 7
    %v2436 = vsub.s32 %v2433, %v2435
    %v2437 = vrot.slane %v2300, %v2436
    %v2439 = vunpack.c.l.s4 1983009808
    %v2440 = vunpack.c.0.s8 %v2439
    %v2441 = vlaneseq
    %v2442 = vshrl.u32 %v2441, 7
    %v2443 = vsub.s32 %v2440, %v2442
    %v2444 = vrot.slane %v2430, %v2443
    %v2445 = vcombine.high %v2437, %v2437
    %v2446 = vcombine.high %v2444, %v2444
    %v2479 = vsel %vm1133, %v2318, -inf
    %v2480 = vrot.slane %v2479, 4
    %v2481 = vmax.f32 %v2479, %v2480
    %v2482 = vrot.slane %v2481, 2
    %v2483 = vmax.f32 %v2481, %v2482
    %v2484 = vrot.slane %v2483, 1
    %v2485 = vmax.f32 %v2483, %v2484
    %v2486 = vsel %vm1133, %v2326, -inf
    %v2487 = vrot.slane %v2486, 4
    %v2488 = vmax.f32 %v2486, %v2487
    %v2489 = vrot.slane %v2488, 2
    %v2490 = vmax.f32 %v2488, %v2489
    %v2491 = vrot.slane %v2490, 1
    %v2492 = vmax.f32 %v2490, %v2491
    %v2493 = vsel %vm1133, %v2325, -inf
    %v2494 = vrot.slane %v2493, 4
    %v2495 = vmax.f32 %v2493, %v2494
    %v2496 = vrot.slane %v2495, 2
    %v2497 = vmax.f32 %v2495, %v2496
    %v2498 = vrot.slane %v2497, 1
    %v2499 = vmax.f32 %v2497, %v2498
    %v2500 = vsel %vm1133, %v2327, -inf
    %v2501 = vrot.slane %v2500, 4
    %v2502 = vmax.f32 %v2500, %v2501
    %v2503 = vrot.slane %v2502, 2
    %v2504 = vmax.f32 %v2502, %v2503
    %v2505 = vrot.slane %v2504, 1
    %v2506 = vmax.f32 %v2504, %v2505
    %v2507 = vsel %vm1133, %v2335, -inf
    %v2508 = vrot.slane %v2507, 4
    %v2509 = vmax.f32 %v2507, %v2508
    %v2510 = vrot.slane %v2509, 2
    %v2511 = vmax.f32 %v2509, %v2510
    %v2512 = vrot.slane %v2511, 1
    %v2513 = vmax.f32 %v2511, %v2512
    %v2514 = vsel %vm1133, %v2343, -inf
    %v2515 = vrot.slane %v2514, 4
    %v2516 = vmax.f32 %v2514, %v2515
    %v2517 = vrot.slane %v2516, 2
    %v2518 = vmax.f32 %v2516, %v2517
    %v2519 = vrot.slane %v2518, 1
    %v2520 = vmax.f32 %v2518, %v2519
    %v2521 = vsel %vm1133, %v2342, -inf
    %v2522 = vrot.slane %v2521, 4
    %v2523 = vmax.f32 %v2521, %v2522
    %v2524 = vrot.slane %v2523, 2
    %v2525 = vmax.f32 %v2523, %v2524
    %v2526 = vrot.slane %v2525, 1
    %v2527 = vmax.f32 %v2525, %v2526
    %v2528 = vsel %vm1133, %v2344, -inf
    %v2529 = vrot.slane %v2528, 4
    %v2530 = vmax.f32 %v2528, %v2529
    %v2531 = vrot.slane %v2530, 2
    %v2532 = vmax.f32 %v2530, %v2531
    %v2533 = vrot.slane %v2532, 1
    %v2534 = vmax.f32 %v2532, %v2533
    %v2535 = vsel %vm1133, %v2352, -inf
    %v2536 = vrot.slane %v2535, 4
    %v2537 = vmax.f32 %v2535, %v2536
    %v2538 = vrot.slane %v2537, 2
    %v2539 = vmax.f32 %v2537, %v2538
    %v2540 = vrot.slane %v2539, 1
    %v2541 = vmax.f32 %v2539, %v2540
    %v2542 = vsel %vm1133, %v2360, -inf
    %v2543 = vrot.slane %v2542, 4
    %v2544 = vmax.f32 %v2542, %v2543
    %v2545 = vrot.slane %v2544, 2
    %v2546 = vmax.f32 %v2544, %v2545
    %v2547 = vrot.slane %v2546, 1
    %v2548 = vmax.f32 %v2546, %v2547
    %v2549 = vsel %vm1133, %v2359, -inf
    %v2550 = vrot.slane %v2549, 4
    %v2551 = vmax.f32 %v2549, %v2550
    %v2552 = vrot.slane %v2551, 2
    %v2553 = vmax.f32 %v2551, %v2552
    %v2554 = vrot.slane %v2553, 1
    %v2555 = vmax.f32 %v2553, %v2554
    %v2556 = vsel %vm1133, %v2361, -inf
    %v2557 = vrot.slane %v2556, 4
    %v2558 = vmax.f32 %v2556, %v2557
    %v2559 = vrot.slane %v2558, 2
    %v2560 = vmax.f32 %v2558, %v2559
    %v2561 = vrot.slane %v2560, 1
    %v2562 = vmax.f32 %v2560, %v2561
    %v2563 = vsel %vm1133, %v2369, -inf
    %v2564 = vrot.slane %v2563, 4
    %v2565 = vmax.f32 %v2563, %v2564
    %v2566 = vrot.slane %v2565, 2
    %v2567 = vmax.f32 %v2565, %v2566
    %v2568 = vrot.slane %v2567, 1
    %v2569 = vmax.f32 %v2567, %v2568
    %v2570 = vsel %vm1133, %v2377, -inf
    %v2571 = vrot.slane %v2570, 4
    %v2572 = vmax.f32 %v2570, %v2571
    %v2573 = vrot.slane %v2572, 2
    %v2574 = vmax.f32 %v2572, %v2573
    %v2575 = vrot.slane %v2574, 1
    %v2576 = vmax.f32 %v2574, %v2575
    %v2577 = vsel %vm1133, %v2376, -inf
    %v2578 = vrot.slane %v2577, 4
    %v2579 = vmax.f32 %v2577, %v2578
    %v2580 = vrot.slane %v2579, 2
    %v2581 = vmax.f32 %v2579, %v2580
    %v2582 = vrot.slane %v2581, 1
    %v2583 = vmax.f32 %v2581, %v2582
    %v2584 = vsel %vm1133, %v2378, -inf
    %v2585 = vrot.slane %v2584, 4
    %v2586 = vmax.f32 %v2584, %v2585
    %v2587 = vrot.slane %v2586, 2
    %v2588 = vmax.f32 %v2586, %v2587
    %v2589 = vrot.slane %v2588, 1
    %v2590 = vmax.f32 %v2588, %v2589
    %v2591 = vsel %vm1133, %v2386, -inf
    %v2592 = vrot.slane %v2591, 4
    %v2593 = vmax.f32 %v2591, %v2592
    %v2594 = vrot.slane %v2593, 2
    %v2595 = vmax.f32 %v2593, %v2594
    %v2596 = vrot.slane %v2595, 1
    %v2597 = vmax.f32 %v2595, %v2596
    %v2598 = vsel %vm1133, %v2394, -inf
    %v2599 = vrot.slane %v2598, 4
    %v2600 = vmax.f32 %v2598, %v2599
    %v2601 = vrot.slane %v2600, 2
    %v2602 = vmax.f32 %v2600, %v2601
    %v2603 = vrot.slane %v2602, 1
    %v2604 = vmax.f32 %v2602, %v2603
    %v2605 = vsel %vm1133, %v2393, -inf
    %v2606 = vrot.slane %v2605, 4
    %v2607 = vmax.f32 %v2605, %v2606
    %v2608 = vrot.slane %v2607, 2
    %v2609 = vmax.f32 %v2607, %v2608
    %v2610 = vrot.slane %v2609, 1
    %v2611 = vmax.f32 %v2609, %v2610
    %v2612 = vsel %vm1133, %v2395, -inf
    %v2613 = vrot.slane %v2612, 4
    %v2614 = vmax.f32 %v2612, %v2613
    %v2615 = vrot.slane %v2614, 2
    %v2616 = vmax.f32 %v2614, %v2615
    %v2617 = vrot.slane %v2616, 1
    %v2618 = vmax.f32 %v2616, %v2617
    %v2619 = vsel %vm1133, %v2403, -inf
    %v2620 = vrot.slane %v2619, 4
    %v2621 = vmax.f32 %v2619, %v2620
    %v2622 = vrot.slane %v2621, 2
    %v2623 = vmax.f32 %v2621, %v2622
    %v2624 = vrot.slane %v2623, 1
    %v2625 = vmax.f32 %v2623, %v2624
    %v2626 = vsel %vm1133, %v2411, -inf
    %v2627 = vrot.slane %v2626, 4
    %v2628 = vmax.f32 %v2626, %v2627
    %v2629 = vrot.slane %v2628, 2
    %v2630 = vmax.f32 %v2628, %v2629
    %v2631 = vrot.slane %v2630, 1
    %v2632 = vmax.f32 %v2630, %v2631
    %v2633 = vsel %vm1133, %v2410, -inf
    %v2634 = vrot.slane %v2633, 4
    %v2635 = vmax.f32 %v2633, %v2634
    %v2636 = vrot.slane %v2635, 2
    %v2637 = vmax.f32 %v2635, %v2636
    %v2638 = vrot.slane %v2637, 1
    %v2639 = vmax.f32 %v2637, %v2638
    %v2640 = vsel %vm1133, %v2412, -inf
    %v2641 = vrot.slane %v2640, 4
    %v2642 = vmax.f32 %v2640, %v2641
    %v2643 = vrot.slane %v2642, 2
    %v2644 = vmax.f32 %v2642, %v2643
    %v2645 = vrot.slane %v2644, 1
    %v2646 = vmax.f32 %v2644, %v2645
    %v2647 = vsel %vm1133, %v2420, -inf
    %v2648 = vrot.slane %v2647, 4
    %v2649 = vmax.f32 %v2647, %v2648
    %v2650 = vrot.slane %v2649, 2
    %v2651 = vmax.f32 %v2649, %v2650
    %v2652 = vrot.slane %v2651, 1
    %v2653 = vmax.f32 %v2651, %v2652
    %v2654 = vsel %vm1133, %v2428, -inf
    %v2655 = vrot.slane %v2654, 4
    %v2656 = vmax.f32 %v2654, %v2655
    %v2657 = vrot.slane %v2656, 2
    %v2658 = vmax.f32 %v2656, %v2657
    %v2659 = vrot.slane %v2658, 1
    %v2660 = vmax.f32 %v2658, %v2659
    %v2661 = vsel %vm1133, %v2427, -inf
    %v2662 = vrot.slane %v2661, 4
    %v2663 = vmax.f32 %v2661, %v2662
    %v2664 = vrot.slane %v2663, 2
    %v2665 = vmax.f32 %v2663, %v2664
    %v2666 = vrot.slane %v2665, 1
    %v2667 = vmax.f32 %v2665, %v2666
    %v2668 = vsel %vm1133, %v2429, -inf
    %v2669 = vrot.slane %v2668, 4
    %v2670 = vmax.f32 %v2668, %v2669
    %v2671 = vrot.slane %v2670, 2
    %v2672 = vmax.f32 %v2670, %v2671
    %v2673 = vrot.slane %v2672, 1
    %v2674 = vmax.f32 %v2672, %v2673
    %v2675 = vsel %vm1133, %v2437, -inf
    %v2676 = vrot.slane %v2675, 4
    %v2677 = vmax.f32 %v2675, %v2676
    %v2678 = vrot.slane %v2677, 2
    %v2679 = vmax.f32 %v2677, %v2678
    %v2680 = vrot.slane %v2679, 1
    %v2681 = vmax.f32 %v2679, %v2680
    %v2682 = vsel %vm1133, %v2445, -inf
    %v2683 = vrot.slane %v2682, 4
    %v2684 = vmax.f32 %v2682, %v2683
    %v2685 = vrot.slane %v2684, 2
    %v2686 = vmax.f32 %v2684, %v2685
    %v2687 = vrot.slane %v2686, 1
    %v2688 = vmax.f32 %v2686, %v2687
    %v2689 = vsel %vm1133, %v2444, -inf
    %v2690 = vrot.slane %v2689, 4
    %v2691 = vmax.f32 %v2689, %v2690
    %v2692 = vrot.slane %v2691, 2
    %v2693 = vmax.f32 %v2691, %v2692
    %v2694 = vrot.slane %v2693, 1
    %v2695 = vmax.f32 %v2693, %v2694
    %v2696 = vsel %vm1133, %v2446, -inf
    %v2697 = vrot.slane %v2696, 4
    %v2698 = vmax.f32 %v2696, %v2697
    %v2699 = vrot.slane %v2698, 2
    %v2700 = vmax.f32 %v2698, %v2699
    %v2701 = vrot.slane %v2700, 1
    %v2702 = vmax.f32 %v2700, %v2701
    %v2703 = vmax.f32 %v2485, 0.0
    %v2704 = vmax.f32 %v2492, 0.0
    %v2705 = vmax.f32 %v2499, 0.0
    %v2706 = vmax.f32 %v2506, 0.0
    %v2707 = vmax.f32 %v2513, 0.0
    %v2708 = vmax.f32 %v2520, 0.0
    %v2709 = vmax.f32 %v2527, 0.0
    %v2710 = vmax.f32 %v2534, 0.0
    %v2711 = vmax.f32 %v2541, 0.0
    %v2712 = vmax.f32 %v2548, 0.0
    %v2713 = vmax.f32 %v2555, 0.0
    %v2714 = vmax.f32 %v2562, 0.0
    %v2715 = vmax.f32 %v2569, 0.0
    %v2716 = vmax.f32 %v2576, 0.0
    %v2717 = vmax.f32 %v2583, 0.0
    %v2718 = vmax.f32 %v2590, 0.0
    %v2719 = vmax.f32 %v2597, 0.0
    %v2720 = vmax.f32 %v2604, 0.0
    %v2721 = vmax.f32 %v2611, 0.0
    %v2722 = vmax.f32 %v2618, 0.0
    %v2723 = vmax.f32 %v2625, 0.0
    %v2724 = vmax.f32 %v2632, 0.0
    %v2725 = vmax.f32 %v2639, 0.0
    %v2726 = vmax.f32 %v2646, 0.0
    %v2727 = vmax.f32 %v2653, 0.0
    %v2728 = vmax.f32 %v2660, 0.0
    %v2729 = vmax.f32 %v2667, 0.0
    %v2730 = vmax.f32 %v2674, 0.0
    %v2731 = vmax.f32 %v2681, 0.0
    %v2732 = vmax.f32 %v2688, 0.0
    %v2733 = vmax.f32 %v2695, 0.0
    %v2734 = vmax.f32 %v2702, 0.0
    %vm2735 = vcmp.lt.s32.totalorder %v69, 0
    %v2736 = vsub.s32 0, %v69
    %v2737 = vsel %vm2735, %v2736, %v69
    %v2738 = vshrl.u32 %v2737, 2
    %v2739 = vand.u32 %v2737, 3
    %v2740 = vsub.s32 0, %v2739
    %v2741 = vsel %vm2735, %v2740, %v2739
    %vm2742 = vcmp.lt.s32.totalorder %v70, 0
    %v2743 = vsub.s32 0, %v70
    %v2744 = vsel %vm2742, %v2743, %v70
    %v2745 = vshrl.u32 %v2744, 2
    %v2746 = vand.u32 %v2744, 3
    %v2747 = vsub.s32 0, %v2746
    %v2748 = vsel %vm2742, %v2747, %v2746
    %vm2749 = vcmp.lt.s32.totalorder %v71, 0
    %v2750 = vsub.s32 0, %v71
    %v2751 = vsel %vm2749, %v2750, %v71
    %v2752 = vshrl.u32 %v2751, 2
    %v2753 = vand.u32 %v2751, 3
    %v2754 = vsub.s32 0, %v2753
    %v2755 = vsel %vm2749, %v2754, %v2753
    %vm2756 = vcmp.lt.s32.totalorder %v72, 0
    %v2757 = vsub.s32 0, %v72
    %v2758 = vsel %vm2756, %v2757, %v72
    %v2759 = vshrl.u32 %v2758, 2
    %v2760 = vand.u32 %v2758, 3
    %v2761 = vsub.s32 0, %v2760
    %v2762 = vsel %vm2756, %v2761, %v2760
    %vm2763 = vcmp.ne.s32.totalorder %v2741, 0
    %vm2764 = vcmp.ne.s32.totalorder %v2748, 0
    %vm2765 = vcmp.ne.s32.totalorder %v2755, 0
    %vm2766 = vcmp.ne.s32.totalorder %v2762, 0
    %vm2767 = vcmp.lt.s32.totalorder %v2741, 0
    %vm2768 = vcmp.lt.s32.totalorder %v2748, 0
    %vm2769 = vcmp.lt.s32.totalorder %v2755, 0
    %vm2770 = vcmp.lt.s32.totalorder %v2762, 0
    %vm2771 = vmand %vm2767, %vm2763
    %vm2772 = vmand %vm2768, %vm2764
    %vm2773 = vmand %vm2769, %vm2765
    %vm2774 = vmand %vm2770, %vm2766
    %v2775 = vadd.s32 %v2741, 4
    %v2776 = vadd.s32 %v2748, 4
    %v2777 = vadd.s32 %v2755, 4
    %v2778 = vadd.s32 %v2762, 4
    %v2779 = vsel %vm2771, %v2775, %v2741
    %v2780 = vsel %vm2772, %v2776, %v2748
    %v2781 = vsel %vm2773, %v2777, %v2755
    %v2782 = vsel %vm2774, %v2778, %v2762
    %v2815 = vsel %vm1806, %v2704, %v2703
    %v2816 = vsel %vm1808, %v2705, %v2815
    %v2817 = vsel %vm1810, %v2706, %v2816
    %v2818 = vsel %vm1812, %v2707, %v2817
    %v2819 = vsel %vm1814, %v2708, %v2818
    %v2820 = vsel %vm1816, %v2709, %v2819
    %v2821 = vsel %vm1818, %v2710, %v2820
    %v2822 = vsel %vm1806, %v2712, %v2711
    %v2823 = vsel %vm1808, %v2713, %v2822
    %v2824 = vsel %vm1810, %v2714, %v2823
    %v2825 = vsel %vm1812, %v2715, %v2824
    %v2826 = vsel %vm1814, %v2716, %v2825
    %v2827 = vsel %vm1816, %v2717, %v2826
    %v2828 = vsel %vm1818, %v2718, %v2827
    %v2829 = vsel %vm1806, %v2720, %v2719
    %v2830 = vsel %vm1808, %v2721, %v2829
    %v2831 = vsel %vm1810, %v2722, %v2830
    %v2832 = vsel %vm1812, %v2723, %v2831
    %v2833 = vsel %vm1814, %v2724, %v2832
    %v2834 = vsel %vm1816, %v2725, %v2833
    %v2835 = vsel %vm1818, %v2726, %v2834
    %v2836 = vsel %vm1806, %v2728, %v2727
    %v2837 = vsel %vm1808, %v2729, %v2836
    %v2838 = vsel %vm1810, %v2730, %v2837
    %v2839 = vsel %vm1812, %v2731, %v2838
    %v2840 = vsel %vm1814, %v2732, %v2839
    %v2841 = vsel %vm1816, %v2733, %v2840
    %v2842 = vsel %vm1818, %v2734, %v2841
    %v2847 = vrot.slane %v2821, 6
    %v2848 = vrot.slane %v2828, 6
    %v2849 = vrot.slane %v2835, 6
    %v2850 = vrot.slane %v2842, 6
    %vm2851 = vcmp.lt.s32.totalorder %v69, 2
    %v2852 = vsel %vm2851, %v2849, %v2850
    %v2853 = vsel %vm2851, %v2848, %v2849
    %v2854 = vsel %vm2851, %v2847, %v2848
    %v2855 = vsel %vm2851, %v2850, %v2847
    %vm2856 = vcmp.ge.s32.totalorder %v2779, 2
    %vm2857 = vcmp.ge.s32.totalorder %v2780, 2
    %vm2858 = vcmp.ge.s32.totalorder %v2781, 2
    %vm2859 = vcmp.ge.s32.totalorder %v2782, 2
    %v2860 = vsel %vm2856, 1, 0
    %v2861 = vsel %vm2857, 1, 0
    %v2862 = vsel %vm2858, 1, 0
    %v2863 = vsel %vm2859, 1, 0
    %vm2864 = vcmp.eq.s32.totalorder %v2860, 1
    %vm2865 = vcmp.eq.s32.totalorder %v2861, 1
    %vm2866 = vcmp.eq.s32.totalorder %v2862, 1
    %vm2867 = vcmp.eq.s32.totalorder %v2863, 1
    %v2868 = vsel %vm2864, %v2855, 0.0
    %v2869 = vsel %vm2865, %v2854, 0.0
    %v2870 = vsel %vm2866, %v2853, 0.0
    %v2871 = vsel %vm2867, %v2852, 0.0
    %v2872 = vrot.slane %v2821, 7
    %v2873 = vrot.slane %v2828, 7
    %v2874 = vrot.slane %v2835, 7
    %v2875 = vrot.slane %v2842, 7
    %v2876 = vsel %vm293, %v2874, %v2875
    %v2877 = vsel %vm293, %v2873, %v2874
    %v2878 = vsel %vm293, %v2872, %v2873
    %v2879 = vsel %vm293, %v2875, %v2872
    %vm2880 = vcmp.ge.s32.totalorder %v2779, 1
    %vm2881 = vcmp.ge.s32.totalorder %v2780, 1
    %vm2882 = vcmp.ge.s32.totalorder %v2781, 1
    %vm2883 = vcmp.ge.s32.totalorder %v2782, 1
    %v2884 = vsel %vm2880, 1, 0
    %v2885 = vsel %vm2881, 1, 0
    %v2886 = vsel %vm2882, 1, 0
    %v2887 = vsel %vm2883, 1, 0
    %vm2888 = vcmp.eq.s32.totalorder %v2884, 1
    %vm2889 = vcmp.eq.s32.totalorder %v2885, 1
    %vm2890 = vcmp.eq.s32.totalorder %v2886, 1
    %vm2891 = vcmp.eq.s32.totalorder %v2887, 1
    %v2892 = vsel %vm2888, %v2879, 0.0
    %v2893 = vsel %vm2889, %v2878, 0.0
    %v2894 = vsel %vm2890, %v2877, 0.0
    %v2895 = vsel %vm2891, %v2876, 0.0
    %v2896 = vrot.slane %v2821, 1
    %v2897 = vrot.slane %v2828, 1
    %v2898 = vrot.slane %v2835, 1
    %v2899 = vrot.slane %v2842, 1
    %v2900 = vsel %vm390, %v2898, %v2899
    %v2901 = vsel %vm390, %v2897, %v2898
    %v2902 = vsel %vm390, %v2896, %v2897
    %v2903 = vsel %vm390, %v2899, %v2896
    %vm2904 = vcmp.lt.s32.totalorder %v2779, 3
    %vm2905 = vcmp.lt.s32.totalorder %v2780, 3
    %vm2906 = vcmp.lt.s32.totalorder %v2781, 3
    %vm2907 = vcmp.lt.s32.totalorder %v2782, 3
    %v2908 = vsel %vm2904, 1, 0
    %v2909 = vsel %vm2905, 1, 0
    %v2910 = vsel %vm2906, 1, 0
    %v2911 = vsel %vm2907, 1, 0
    %vm2912 = vcmp.eq.s32.totalorder %v2908, 1
    %vm2913 = vcmp.eq.s32.totalorder %v2909, 1
    %vm2914 = vcmp.eq.s32.totalorder %v2910, 1
    %vm2915 = vcmp.eq.s32.totalorder %v2911, 1
    %v2916 = vsel %vm2912, %v2902, 0.0
    %v2917 = vsel %vm2913, %v2901, 0.0
    %v2918 = vsel %vm2914, %v2900, 0.0
    %v2919 = vsel %vm2915, %v2903, 0.0
    %v2920 = vrot.slane %v2821, 2
    %v2921 = vrot.slane %v2828, 2
    %v2922 = vrot.slane %v2835, 2
    %v2923 = vrot.slane %v2842, 2
    %v2924 = vsel %vm1981, %v2922, %v2923
    %v2925 = vsel %vm1981, %v2921, %v2922
    %v2926 = vsel %vm1981, %v2920, %v2921
    %v2927 = vsel %vm1981, %v2923, %v2920
    %vm2928 = vcmp.lt.s32.totalorder %v2779, 2
    %vm2929 = vcmp.lt.s32.totalorder %v2780, 2
    %vm2930 = vcmp.lt.s32.totalorder %v2781, 2
    %vm2931 = vcmp.lt.s32.totalorder %v2782, 2
    %v2932 = vsel %vm2928, 1, 0
    %v2933 = vsel %vm2929, 1, 0
    %v2934 = vsel %vm2930, 1, 0
    %v2935 = vsel %vm2931, 1, 0
    %vm2936 = vcmp.eq.s32.totalorder %v2932, 1
    %vm2937 = vcmp.eq.s32.totalorder %v2933, 1
    %vm2938 = vcmp.eq.s32.totalorder %v2934, 1
    %vm2939 = vcmp.eq.s32.totalorder %v2935, 1
    %v2940 = vsel %vm2936, %v2926, 0.0
    %v2941 = vsel %vm2937, %v2925, 0.0
    %v2942 = vsel %vm2938, %v2924, 0.0
    %v2943 = vsel %vm2939, %v2927, 0.0
    %2948 = vrot.lane.b32.xlu0 %v2892, 64
    %v2949 = vpop.permute.xlu0 %2948
    %2950 = vrot.lane.b32.xlu0 %v2893, 64
    %v2951 = vpop.permute.xlu0 %2950
    %2952 = vrot.lane.b32.xlu0 %v2894, 64
    %v2953 = vpop.permute.xlu0 %2952
    %2954 = vrot.lane.b32.xlu0 %v2895, 64
    %v2955 = vpop.permute.xlu0 %2954
    %2964 = vrot.lane.b32.xlu0 %v2916, 64
    %v2965 = vpop.permute.xlu0 %2964
    %2966 = vrot.lane.b32.xlu0 %v2917, 64
    %v2967 = vpop.permute.xlu0 %2966
    %2968 = vrot.lane.b32.xlu0 %v2918, 64
    %v2969 = vpop.permute.xlu0 %2968
    %2970 = vrot.lane.b32.xlu0 %v2919, 64
    %v2971 = vpop.permute.xlu0 %2970
    %v2976 = vsel %vm2078, %v2868, %v2949
    %v2977 = vsel %vm2078, %v2869, %v2951
    %v2978 = vsel %vm2078, %v2870, %v2953
    %v2979 = vsel %vm2078, %v2871, %v2955
    %v2980 = vsel %vm2078, %v2821, %v2965
    %v2981 = vsel %vm2078, %v2828, %v2967
    %v2982 = vsel %vm2078, %v2835, %v2969
    %v2983 = vsel %vm2078, %v2842, %v2971
    %v2984 = vpack.c.bf16 %v2977, %v2976
    %v2985 = vpack.c.bf16 %v2981, %v2980
    %v2986 = vpack.c.bf16 %v2941, %v2940
    %v2987 = vpack.c.bf16 %v2979, %v2978
    %v2988 = vpack.c.bf16 %v2983, %v2982
    %v2989 = vpack.c.bf16 %v2943, %v2942
    %v2990 = vld [vmem:[%s6] sm:$0xf]
    %v2991 = vld [vmem:[%s6 + $0x4] sm:$0xf]
    %v2992 = vld [vmem:[%s6 + $0x8] sm:$0xf]
    %v2993 = vld [vmem:[%s6 + $0xc] sm:$0xf]
    %v2994 = vld [vmem:[%s6 + $0x10] sm:$0xf]
    %v2995 = vld [vmem:[%s6 + $0x14] sm:$0xf]
    %v2996 = vld [vmem:[%s6 + $0x18] sm:$0xf]
    %v2997 = vld [vmem:[%s6 + $0x1c] sm:$0xf]
    %v2998 = vld [vmem:[%s6 + $0x20] sm:$0xf]
    %v2999 = vld [vmem:[%s6 + $0x24] sm:$0xf]
    %v3000 = vld [vmem:[%s6 + $0x28] sm:$0xf]
    %v3001 = vld [vmem:[%s6 + $0x2c] sm:$0xf]
    %v3002 = vld [vmem:[%s6 + $0x30] sm:$0xf]
    %v3003 = vld [vmem:[%s6 + $0x34] sm:$0xf]
    %v3004 = vld [vmem:[%s6 + $0x38] sm:$0xf]
    %v3005 = vld [vmem:[%s6 + $0x3c] sm:$0xf]
    %v3006 = vld [vmem:[%s6 + $0x40] sm:$0xf]
    %v3007 = vld [vmem:[%s6 + $0x44] sm:$0xf]
    %v3008 = vld [vmem:[%s6 + $0x48] sm:$0xf]
    %v3009 = vld [vmem:[%s6 + $0x4c] sm:$0xf]
    %v3010 = vld [vmem:[%s6 + $0x50] sm:$0xf]
    %v3011 = vld [vmem:[%s6 + $0x54] sm:$0xf]
    %v3012 = vld [vmem:[%s6 + $0x58] sm:$0xf]
    %v3013 = vld [vmem:[%s6 + $0x5c] sm:$0xf]
    %v3014 = vld [vmem:[%s6 + $0x60] sm:$0xf]
    %v3015 = vld [vmem:[%s6 + $0x64] sm:$0xf]
    %v3016 = vld [vmem:[%s6 + $0x68] sm:$0xf]
    %v3017 = vld [vmem:[%s6 + $0x6c] sm:$0xf]
    %v3018 = vld [vmem:[%s6 + $0x70] sm:$0xf]
    %v3019 = vld [vmem:[%s6 + $0x74] sm:$0xf]
    %v3020 = vld [vmem:[%s6 + $0x78] sm:$0xf]
    %v3021 = vld [vmem:[%s6 + $0x7c] sm:$0xf]
    %v3022 = vld [vmem:[%s6 + $0x80] sm:$0xf]
    %v3023 = vld [vmem:[%s6 + $0x84] sm:$0xf]
    %v3024 = vld [vmem:[%s6 + $0x88] sm:$0xf]
    %v3025 = vld [vmem:[%s6 + $0x8c] sm:$0xf]
    %v3026 = vld [vmem:[%s6 + $0x90] sm:$0xf]
    %v3027 = vld [vmem:[%s6 + $0x94] sm:$0xf]
    %v3028 = vld [vmem:[%s6 + $0x98] sm:$0xf]
    %v3029 = vld [vmem:[%s6 + $0x9c] sm:$0xf]
    %v3030 = vld [vmem:[%s7] sm:$0x1]
    %v3032 = vlaneseq
    %v3033 = vshrl.u32 %v3032, 7
    %v3034 = vsub.s32 0, %v3033
    %v3035 = vrot.slane %v3030, %v3034
    %v3077 = vunpack.c.l.b16 %v2990
    %v3078 = vunpack.c.l.b16 %v2991
    %v3079 = vunpack.c.l.b16 %v2992
    %v3080 = vunpack.c.l.b16 %v2993
    %v3081 = vunpack.c.l.b16 %v2994
    %v3082 = vunpack.c.l.b16 %v2995
    %v3083 = vunpack.c.l.b16 %v2996
    %v3084 = vunpack.c.l.b16 %v2997
    %v3085 = vunpack.c.l.b16 %v2998
    %v3086 = vunpack.c.l.b16 %v2999
    %v3087 = vunpack.c.l.b16 %v3000
    %v3088 = vunpack.c.l.b16 %v3001
    %v3089 = vunpack.c.l.b16 %v3002
    %v3090 = vunpack.c.l.b16 %v3003
    %v3091 = vunpack.c.l.b16 %v3004
    %v3092 = vunpack.c.l.b16 %v3005
    %v3093 = vunpack.c.l.b16 %v3006
    %v3094 = vunpack.c.l.b16 %v3007
    %v3095 = vunpack.c.l.b16 %v3008
    %v3096 = vunpack.c.l.b16 %v3009
    %v3097 = vunpack.c.l.b16 %v3010
    %v3098 = vunpack.c.l.b16 %v3011
    %v3099 = vunpack.c.l.b16 %v3012
    %v3100 = vunpack.c.l.b16 %v3013
    %v3101 = vunpack.c.l.b16 %v3014
    %v3102 = vunpack.c.l.b16 %v3015
    %v3103 = vunpack.c.l.b16 %v3016
    %v3104 = vunpack.c.l.b16 %v3017
    %v3105 = vunpack.c.l.b16 %v3018
    %v3106 = vunpack.c.l.b16 %v3019
    %v3107 = vunpack.c.l.b16 %v3020
    %v3108 = vunpack.c.l.b16 %v3021
    %v3109 = vunpack.c.l.b16 %v3022
    %v3110 = vunpack.c.l.b16 %v3023
    %v3111 = vunpack.c.l.b16 %v3024
    %v3112 = vunpack.c.l.b16 %v3025
    %v3113 = vunpack.c.l.b16 %v3026
    %v3114 = vunpack.c.l.b16 %v3027
    %v3115 = vunpack.c.l.b16 %v3028
    %v3116 = vunpack.c.l.b16 %v3029
    %v3117 = vpack.c.b16 %v3078, %v3077
    %v3118 = vpack.c.b16 %v3080, %v3079
    %v3119 = vpack.c.b16 %v3082, %v3081
    %v3120 = vpack.c.b16 %v3084, %v3083
    %v3121 = vpack.c.b16 %v3086, %v3085
    %v3122 = vpack.c.b16 %v3088, %v3087
    %v3123 = vpack.c.b16 %v3090, %v3089
    %v3124 = vpack.c.b16 %v3092, %v3091
    %v3125 = vpack.c.b16 %v3094, %v3093
    %v3126 = vpack.c.b16 %v3096, %v3095
    %v3127 = vpack.c.b16 %v3098, %v3097
    %v3128 = vpack.c.b16 %v3100, %v3099
    %v3129 = vpack.c.b16 %v3102, %v3101
    %v3130 = vpack.c.b16 %v3104, %v3103
    %v3131 = vpack.c.b16 %v3106, %v3105
    %v3132 = vpack.c.b16 %v3108, %v3107
    %v3133 = vpack.c.b16 %v3110, %v3109
    %v3134 = vpack.c.b16 %v3112, %v3111
    %v3135 = vpack.c.b16 %v3114, %v3113
    %v3136 = vpack.c.b16 %v3116, %v3115
    %v3158 = vsel %vm2078, %v2986, 0
    %v3161 = vsel %vm2078, %v2989, 0
    %3163 = vmatprep.subr.bf16.mxu0 0
    %3164 = vmatpush1.bf16.msra.mxu0 %v3117
    %3165 = vmatprep.subr.bf16.mxu0 0
    %3166 = vmatpush1.bf16.msra.mxu0 %v3118
    %3167 = vmatprep.subr.bf16.mxu0 0
    %3168 = vmatpush1.bf16.msra.mxu0 %v3119
    %3169 = vmatprep.subr.bf16.mxu0 0
    %3170 = vmatpush1.bf16.msra.mxu0 %v3120
    %3171 = vmatprep.subr.bf16.mxu0 0
    %3172 = vmatpush1.bf16.msra.mxu0 %v3121
    %3173 = vmatprep.subr.bf16.mxu0 0
    %3174 = vmatpush1.bf16.msra.mxu0 %v3122
    %3175 = vmatprep.subr.bf16.mxu0 0
    %3176 = vmatpush1.bf16.msra.mxu0 %v3123
    %3177 = vmatprep.subr.bf16.mxu0 0
    %3178 = vmatpush1.bf16.msra.mxu0 %v3124
    %3179 = vmatprep.subr.bf16.mxu0 0
    %3180 = vmatpush1.bf16.msra.mxu0 %v3125
    %3181 = vmatprep.subr.bf16.mxu0 0
    %3182 = vmatpush1.bf16.msra.mxu0 %v3126
    %3183 = vmatprep.subr.bf16.mxu0 0
    %3184 = vmatpush1.bf16.msra.mxu0 %v3127
    %3185 = vmatprep.subr.bf16.mxu0 0
    %3186 = vmatpush1.bf16.msra.mxu0 %v3128
    %3187 = vmatprep.subr.bf16.mxu0 0
    %3188 = vmatpush1.bf16.msra.mxu0 %v3129
    %3189 = vmatprep.subr.bf16.mxu0 0
    %3190 = vmatpush1.bf16.msra.mxu0 %v3130
    %3191 = vmatprep.subr.bf16.mxu0 0
    %3192 = vmatpush1.bf16.msra.mxu0 %v3131
    %3193 = vmatprep.subr.bf16.mxu0 0
    %3194 = vmatpush1.bf16.msra.mxu0 %v3132
    %3195 = vmatprep.mubr.bf16.mxu0 %v2985
    %3196 = vmatmul.mubr.bf16.gmra.mrb[0].mxu0 %v2984
    %v3197 = vpop.f32.mrb[0].mxu0
    %v3198 = vadd.f32 %v3035, %v3197
    %v3199 = vpop.f32.mrb[0].mxu0
    %v3200 = vpop.f32.mrb[0].mxu0
    %v3201 = vadd.f32 %v3035, %v3200
    %v3202 = vpop.f32.mrb[0].mxu0
    %3203 = vmatprep.mubr.bf16.mxu0 %v2988
    %3204 = vmatmul.mubr.bf16.gmra.mrb[0].mxu0 %v2987
    %v3205 = vpop.f32.mrb[0].mxu0
    %v3206 = vadd.f32 %v3035, %v3205
    %v3207 = vpop.f32.mrb[0].mxu0
    %v3208 = vpop.f32.mrb[0].mxu0
    %v3209 = vadd.f32 %v3035, %v3208
    %v3210 = vpop.f32.mrb[0].mxu0
    %3211 = vdwg.mxu0
    %3212 = vmatprep.subr.bf16.mxu0 0
    %3213 = vmatpush1.bf16.msra.mxu0 %v3133
    %3214 = vmatprep.subr.bf16.mxu0 0
    %3215 = vmatpush1.bf16.msra.mxu0 %v3134
    %3216 = vmatprep.subr.bf16.mxu0 0
    %3217 = vmatpush1.bf16.msra.mxu0 %v3135
    %3218 = vmatprep.subr.bf16.mxu0 0
    %3219 = vmatpush1.bf16.msra.mxu0 %v3136
    %3220 = vmatprep.subr.bf16.mxu0 0
    %3221 = vmatpush1.bf16.msra.mxu0 0
    %3222 = vmatprep.subr.bf16.mxu0 0
    %3223 = vmatpush1.bf16.msra.mxu0 0
    %3224 = vmatprep.subr.bf16.mxu0 0
    %3225 = vmatpush1.bf16.msra.mxu0 0
    %3226 = vmatprep.subr.bf16.mxu0 0
    %3227 = vmatpush1.bf16.msra.mxu0 0
    %3228 = vmatprep.subr.bf16.mxu0 0
    %3229 = vmatpush1.bf16.msra.mxu0 0
    %3230 = vmatprep.subr.bf16.mxu0 0
    %3231 = vmatpush1.bf16.msra.mxu0 0
    %3232 = vmatprep.subr.bf16.mxu0 0
    %3233 = vmatpush1.bf16.msra.mxu0 0
    %3234 = vmatprep.subr.bf16.mxu0 0
    %3235 = vmatpush1.bf16.msra.mxu0 0
    %3236 = vmatprep.subr.bf16.mxu0 0
    %3237 = vmatpush1.bf16.msra.mxu0 0
    %3238 = vmatprep.subr.bf16.mxu0 0
    %3239 = vmatpush1.bf16.msra.mxu0 0
    %3240 = vmatprep.subr.bf16.mxu0 0
    %3241 = vmatpush1.bf16.msra.mxu0 0
    %3242 = vmatprep.subr.bf16.mxu0 0
    %3243 = vmatpush1.bf16.msra.mxu0 0
    %3244 = vmatprep.mubr.bf16.mxu0 0
    %3245 = vmatmul.mubr.bf16.gmra.mrb[0].mxu0 %v3158
    %v3246 = vpop.f32.mrb[0].mxu0
    %v3247 = vadd.f32 %v3198, %v3246
    %v3248 = vpop.f32.mrb[0].mxu0
    %v3249 = vpop.f32.mrb[0].mxu0
    %v3250 = vadd.f32 %v3201, %v3249
    %v3251 = vpop.f32.mrb[0].mxu0
    %3252 = vmatprep.mubr.bf16.mxu0 0
    %3253 = vmatmul.mubr.bf16.gmra.mrb[0].mxu0 %v3161
    %v3254 = vpop.f32.mrb[0].mxu0
    %v3255 = vadd.f32 %v3206, %v3254
    %v3256 = vpop.f32.mrb[0].mxu0
    %v3257 = vpop.f32.mrb[0].mxu0
    %v3258 = vadd.f32 %v3209, %v3257
    %v3259 = vpop.f32.mrb[0].mxu0
    %3260 = vdwg.mxu0
    %v3265 = vcombine.high %v3247, %v3247
    %v3267 = vunpack.c.l.s4 1983009808
    %v3268 = vunpack.c.0.s8 %v3267
    %v3269 = vlaneseq
    %v3270 = vshrl.u32 %v3269, 7
    %v3271 = vsub.s32 %v3268, %v3270
    %v3272 = vrot.slane %v3247, %v3271
    %v3274 = vunpack.c.l.s4 1983009808
    %v3275 = vunpack.c.0.s8 %v3274
    %v3276 = vlaneseq
    %v3277 = vshrl.u32 %v3276, 7
    %v3278 = vsub.s32 %v3275, %v3277
    %v3279 = vrot.slane %v3265, %v3278
    %v3280 = vcombine.high %v3272, %v3272
    %v3281 = vcombine.high %v3279, %v3279
    %v3282 = vcombine.high %v3250, %v3250
    %v3284 = vunpack.c.l.s4 1983009808
    %v3285 = vunpack.c.0.s8 %v3284
    %v3286 = vlaneseq
    %v3287 = vshrl.u32 %v3286, 7
    %v3288 = vsub.s32 %v3285, %v3287
    %v3289 = vrot.slane %v3250, %v3288
    %v3291 = vunpack.c.l.s4 1983009808
    %v3292 = vunpack.c.0.s8 %v3291
    %v3293 = vlaneseq
    %v3294 = vshrl.u32 %v3293, 7
    %v3295 = vsub.s32 %v3292, %v3294
    %v3296 = vrot.slane %v3282, %v3295
    %v3297 = vcombine.high %v3289, %v3289
    %v3298 = vcombine.high %v3296, %v3296
    %v3299 = vcombine.high %v3255, %v3255
    %v3301 = vunpack.c.l.s4 1983009808
    %v3302 = vunpack.c.0.s8 %v3301
    %v3303 = vlaneseq
    %v3304 = vshrl.u32 %v3303, 7
    %v3305 = vsub.s32 %v3302, %v3304
    %v3306 = vrot.slane %v3255, %v3305
    %v3308 = vunpack.c.l.s4 1983009808
    %v3309 = vunpack.c.0.s8 %v3308
    %v3310 = vlaneseq
    %v3311 = vshrl.u32 %v3310, 7
    %v3312 = vsub.s32 %v3309, %v3311
    %v3313 = vrot.slane %v3299, %v3312
    %v3314 = vcombine.high %v3306, %v3306
    %v3315 = vcombine.high %v3313, %v3313
    %v3316 = vcombine.high %v3258, %v3258
    %v3318 = vunpack.c.l.s4 1983009808
    %v3319 = vunpack.c.0.s8 %v3318
    %v3320 = vlaneseq
    %v3321 = vshrl.u32 %v3320, 7
    %v3322 = vsub.s32 %v3319, %v3321
    %v3323 = vrot.slane %v3258, %v3322
    %v3325 = vunpack.c.l.s4 1983009808
    %v3326 = vunpack.c.0.s8 %v3325
    %v3327 = vlaneseq
    %v3328 = vshrl.u32 %v3327, 7
    %v3329 = vsub.s32 %v3326, %v3328
    %v3330 = vrot.slane %v3316, %v3329
    %v3331 = vcombine.high %v3323, %v3323
    %v3332 = vcombine.high %v3330, %v3330
    %v3349 = vsel %vm1133, %v3272, -inf
    %v3350 = vrot.slane %v3349, 4
    %v3351 = vmax.f32 %v3349, %v3350
    %v3352 = vrot.slane %v3351, 2
    %v3353 = vmax.f32 %v3351, %v3352
    %v3354 = vrot.slane %v3353, 1
    %v3355 = vmax.f32 %v3353, %v3354
    %v3356 = vsel %vm1133, %v3280, -inf
    %v3357 = vrot.slane %v3356, 4
    %v3358 = vmax.f32 %v3356, %v3357
    %v3359 = vrot.slane %v3358, 2
    %v3360 = vmax.f32 %v3358, %v3359
    %v3361 = vrot.slane %v3360, 1
    %v3362 = vmax.f32 %v3360, %v3361
    %v3363 = vsel %vm1133, %v3279, -inf
    %v3364 = vrot.slane %v3363, 4
    %v3365 = vmax.f32 %v3363, %v3364
    %v3366 = vrot.slane %v3365, 2
    %v3367 = vmax.f32 %v3365, %v3366
    %v3368 = vrot.slane %v3367, 1
    %v3369 = vmax.f32 %v3367, %v3368
    %v3370 = vsel %vm1133, %v3281, -inf
    %v3371 = vrot.slane %v3370, 4
    %v3372 = vmax.f32 %v3370, %v3371
    %v3373 = vrot.slane %v3372, 2
    %v3374 = vmax.f32 %v3372, %v3373
    %v3375 = vrot.slane %v3374, 1
    %v3376 = vmax.f32 %v3374, %v3375
    %v3377 = vsel %vm1133, %v3289, -inf
    %v3378 = vrot.slane %v3377, 4
    %v3379 = vmax.f32 %v3377, %v3378
    %v3380 = vrot.slane %v3379, 2
    %v3381 = vmax.f32 %v3379, %v3380
    %v3382 = vrot.slane %v3381, 1
    %v3383 = vmax.f32 %v3381, %v3382
    %v3384 = vsel %vm1133, %v3297, -inf
    %v3385 = vrot.slane %v3384, 4
    %v3386 = vmax.f32 %v3384, %v3385
    %v3387 = vrot.slane %v3386, 2
    %v3388 = vmax.f32 %v3386, %v3387
    %v3389 = vrot.slane %v3388, 1
    %v3390 = vmax.f32 %v3388, %v3389
    %v3391 = vsel %vm1133, %v3296, -inf
    %v3392 = vrot.slane %v3391, 4
    %v3393 = vmax.f32 %v3391, %v3392
    %v3394 = vrot.slane %v3393, 2
    %v3395 = vmax.f32 %v3393, %v3394
    %v3396 = vrot.slane %v3395, 1
    %v3397 = vmax.f32 %v3395, %v3396
    %v3398 = vsel %vm1133, %v3298, -inf
    %v3399 = vrot.slane %v3398, 4
    %v3400 = vmax.f32 %v3398, %v3399
    %v3401 = vrot.slane %v3400, 2
    %v3402 = vmax.f32 %v3400, %v3401
    %v3403 = vrot.slane %v3402, 1
    %v3404 = vmax.f32 %v3402, %v3403
    %v3405 = vsel %vm1133, %v3306, -inf
    %v3406 = vrot.slane %v3405, 4
    %v3407 = vmax.f32 %v3405, %v3406
    %v3408 = vrot.slane %v3407, 2
    %v3409 = vmax.f32 %v3407, %v3408
    %v3410 = vrot.slane %v3409, 1
    %v3411 = vmax.f32 %v3409, %v3410
    %v3412 = vsel %vm1133, %v3314, -inf
    %v3413 = vrot.slane %v3412, 4
    %v3414 = vmax.f32 %v3412, %v3413
    %v3415 = vrot.slane %v3414, 2
    %v3416 = vmax.f32 %v3414, %v3415
    %v3417 = vrot.slane %v3416, 1
    %v3418 = vmax.f32 %v3416, %v3417
    %v3419 = vsel %vm1133, %v3313, -inf
    %v3420 = vrot.slane %v3419, 4
    %v3421 = vmax.f32 %v3419, %v3420
    %v3422 = vrot.slane %v3421, 2
    %v3423 = vmax.f32 %v3421, %v3422
    %v3424 = vrot.slane %v3423, 1
    %v3425 = vmax.f32 %v3423, %v3424
    %v3426 = vsel %vm1133, %v3315, -inf
    %v3427 = vrot.slane %v3426, 4
    %v3428 = vmax.f32 %v3426, %v3427
    %v3429 = vrot.slane %v3428, 2
    %v3430 = vmax.f32 %v3428, %v3429
    %v3431 = vrot.slane %v3430, 1
    %v3432 = vmax.f32 %v3430, %v3431
    %v3433 = vsel %vm1133, %v3323, -inf
    %v3434 = vrot.slane %v3433, 4
    %v3435 = vmax.f32 %v3433, %v3434
    %v3436 = vrot.slane %v3435, 2
    %v3437 = vmax.f32 %v3435, %v3436
    %v3438 = vrot.slane %v3437, 1
    %v3439 = vmax.f32 %v3437, %v3438
    %v3440 = vsel %vm1133, %v3331, -inf
    %v3441 = vrot.slane %v3440, 4
    %v3442 = vmax.f32 %v3440, %v3441
    %v3443 = vrot.slane %v3442, 2
    %v3444 = vmax.f32 %v3442, %v3443
    %v3445 = vrot.slane %v3444, 1
    %v3446 = vmax.f32 %v3444, %v3445
    %v3447 = vsel %vm1133, %v3330, -inf
    %v3448 = vrot.slane %v3447, 4
    %v3449 = vmax.f32 %v3447, %v3448
    %v3450 = vrot.slane %v3449, 2
    %v3451 = vmax.f32 %v3449, %v3450
    %v3452 = vrot.slane %v3451, 1
    %v3453 = vmax.f32 %v3451, %v3452
    %v3454 = vsel %vm1133, %v3332, -inf
    %v3455 = vrot.slane %v3454, 4
    %v3456 = vmax.f32 %v3454, %v3455
    %v3457 = vrot.slane %v3456, 2
    %v3458 = vmax.f32 %v3456, %v3457
    %v3459 = vrot.slane %v3458, 1
    %v3460 = vmax.f32 %v3458, %v3459
    %v3461 = vmax.f32 %v3355, 0.0
    %v3462 = vmax.f32 %v3362, 0.0
    %v3463 = vmax.f32 %v3369, 0.0
    %v3464 = vmax.f32 %v3376, 0.0
    %v3465 = vmax.f32 %v3383, 0.0
    %v3466 = vmax.f32 %v3390, 0.0
    %v3467 = vmax.f32 %v3397, 0.0
    %v3468 = vmax.f32 %v3404, 0.0
    %v3469 = vmax.f32 %v3411, 0.0
    %v3470 = vmax.f32 %v3418, 0.0
    %v3471 = vmax.f32 %v3425, 0.0
    %v3472 = vmax.f32 %v3432, 0.0
    %v3473 = vmax.f32 %v3439, 0.0
    %v3474 = vmax.f32 %v3446, 0.0
    %v3475 = vmax.f32 %v3453, 0.0
    %v3476 = vmax.f32 %v3460, 0.0
    %vm3477 = vcmp.lt.s32.totalorder %v69, 0
    %v3478 = vsub.s32 0, %v69
    %v3479 = vsel %vm3477, %v3478, %v69
    %v3480 = vshrl.u32 %v3479, 1
    %v3481 = vand.u32 %v3479, 1
    %v3482 = vsub.s32 0, %v3481
    %v3483 = vsel %vm3477, %v3482, %v3481
    %vm3484 = vcmp.lt.s32.totalorder %v70, 0
    %v3485 = vsub.s32 0, %v70
    %v3486 = vsel %vm3484, %v3485, %v70
    %v3487 = vshrl.u32 %v3486, 1
    %v3488 = vand.u32 %v3486, 1
    %v3489 = vsub.s32 0, %v3488
    %v3490 = vsel %vm3484, %v3489, %v3488
    %vm3491 = vcmp.ne.s32.totalorder %v3483, 0
    %vm3492 = vcmp.ne.s32.totalorder %v3490, 0
    %vm3493 = vcmp.lt.s32.totalorder %v3483, 0
    %vm3494 = vcmp.lt.s32.totalorder %v3490, 0
    %vm3495 = vmand %vm3493, %vm3491
    %vm3496 = vmand %vm3494, %vm3492
    %v3497 = vadd.s32 %v3483, 2
    %v3498 = vadd.s32 %v3490, 2
    %v3499 = vsel %vm3495, %v3497, %v3483
    %v3500 = vsel %vm3496, %v3498, %v3490
    %v3517 = vsel %vm1806, %v3462, %v3461
    %v3518 = vsel %vm1808, %v3463, %v3517
    %v3519 = vsel %vm1810, %v3464, %v3518
    %v3520 = vsel %vm1812, %v3465, %v3519
    %v3521 = vsel %vm1814, %v3466, %v3520
    %v3522 = vsel %vm1816, %v3467, %v3521
    %v3523 = vsel %vm1818, %v3468, %v3522
    %v3524 = vsel %vm1806, %v3470, %v3469
    %v3525 = vsel %vm1808, %v3471, %v3524
    %v3526 = vsel %vm1810, %v3472, %v3525
    %v3527 = vsel %vm1812, %v3473, %v3526
    %v3528 = vsel %vm1814, %v3474, %v3527
    %v3529 = vsel %vm1816, %v3475, %v3528
    %v3530 = vsel %vm1818, %v3476, %v3529
    %v3533 = vrot.slane %v3523, 7
    %v3534 = vrot.slane %v3530, 7
    %v3535 = vsel %vm293, %v3533, %v3534
    %v3536 = vsel %vm293, %v3534, %v3533
    %vm3537 = vcmp.ge.s32.totalorder %v3499, 1
    %vm3538 = vcmp.ge.s32.totalorder %v3500, 1
    %v3539 = vsel %vm3537, 1, 0
    %v3540 = vsel %vm3538, 1, 0
    %vm3541 = vcmp.eq.s32.totalorder %v3539, 1
    %vm3542 = vcmp.eq.s32.totalorder %v3540, 1
    %v3543 = vsel %vm3541, %v3536, 0.0
    %v3544 = vsel %vm3542, %v3535, 0.0
    %v3545 = vrot.slane %v3523, 1
    %v3546 = vrot.slane %v3530, 1
    %v3547 = vsel %vm390, %v3545, %v3546
    %v3548 = vsel %vm390, %v3546, %v3545
    %vm3549 = vcmp.lt.s32.totalorder %v3499, 1
    %vm3550 = vcmp.lt.s32.totalorder %v3500, 1
    %v3551 = vsel %vm3549, 1, 0
    %v3552 = vsel %vm3550, 1, 0
    %vm3553 = vcmp.eq.s32.totalorder %v3551, 1
    %vm3554 = vcmp.eq.s32.totalorder %v3552, 1
    %v3555 = vsel %vm3553, %v3547, 0.0
    %v3556 = vsel %vm3554, %v3548, 0.0
    %3557 = vrot.lane.b32.xlu0 %v3523, 64
    %v3558 = vpop.permute.xlu0 %3557
    %3559 = vrot.lane.b32.xlu0 %v3530, 64
    %v3560 = vpop.permute.xlu0 %3559
    %v3563 = vsel %vm2078, %v3543, %v3558
    %v3564 = vsel %vm2078, %v3544, %v3560
    %v3565 = vpack.c.bf16 %v3564, %v3563
    %v3566 = vpack.c.bf16 %v3556, %v3555
    %v3567 = vld [vmem:[%s8] sm:$0xf]
    %v3568 = vld [vmem:[%s8 + $0x4] sm:$0xf]
    %v3569 = vld [vmem:[%s8 + $0x8] sm:$0xf]
    %v3570 = vld [vmem:[%s8 + $0xc] sm:$0xf]
    %v3571 = vld [vmem:[%s8 + $0x10] sm:$0xf]
    %v3572 = vld [vmem:[%s8 + $0x14] sm:$0xf]
    %v3573 = vld [vmem:[%s8 + $0x18] sm:$0xf]
    %v3574 = vld [vmem:[%s8 + $0x1c] sm:$0xf]
    %v3575 = vld [vmem:[%s8 + $0x20] sm:$0xf]
    %v3576 = vld [vmem:[%s8 + $0x24] sm:$0xf]
    %v3577 = vld [vmem:[%s8 + $0x28] sm:$0xf]
    %v3578 = vld [vmem:[%s8 + $0x2c] sm:$0xf]
    %v3579 = vld [vmem:[%s8 + $0x30] sm:$0xf]
    %v3580 = vld [vmem:[%s8 + $0x34] sm:$0xf]
    %v3581 = vld [vmem:[%s8 + $0x38] sm:$0xf]
    %v3582 = vld [vmem:[%s8 + $0x3c] sm:$0xf]
    %v3583 = vld [vmem:[%s8 + $0x40] sm:$0xf]
    %v3584 = vld [vmem:[%s8 + $0x44] sm:$0xf]
    %v3585 = vld [vmem:[%s8 + $0x48] sm:$0xf]
    %v3586 = vld [vmem:[%s8 + $0x4c] sm:$0xf]
    %v3587 = vld [vmem:[%s8 + $0x50] sm:$0xf]
    %v3588 = vld [vmem:[%s8 + $0x54] sm:$0xf]
    %v3589 = vld [vmem:[%s8 + $0x58] sm:$0xf]
    %v3590 = vld [vmem:[%s8 + $0x5c] sm:$0xf]
    %v3591 = vld [vmem:[%s9] sm:$0x1]
    %v3593 = vlaneseq
    %v3594 = vshrl.u32 %v3593, 7
    %v3595 = vsub.s32 0, %v3594
    %v3596 = vrot.slane %v3591, %v3595
    %v3622 = vunpack.c.l.b16 %v3567
    %v3623 = vunpack.c.l.b16 %v3568
    %v3624 = vunpack.c.l.b16 %v3569
    %v3625 = vunpack.c.l.b16 %v3570
    %v3626 = vunpack.c.l.b16 %v3571
    %v3627 = vunpack.c.l.b16 %v3572
    %v3628 = vunpack.c.l.b16 %v3573
    %v3629 = vunpack.c.l.b16 %v3574
    %v3630 = vunpack.c.l.b16 %v3575
    %v3631 = vunpack.c.l.b16 %v3576
    %v3632 = vunpack.c.l.b16 %v3577
    %v3633 = vunpack.c.l.b16 %v3578
    %v3634 = vunpack.c.l.b16 %v3579
    %v3635 = vunpack.c.l.b16 %v3580
    %v3636 = vunpack.c.l.b16 %v3581
    %v3637 = vunpack.c.l.b16 %v3582
    %v3638 = vunpack.c.l.b16 %v3583
    %v3639 = vunpack.c.l.b16 %v3584
    %v3640 = vunpack.c.l.b16 %v3585
    %v3641 = vunpack.c.l.b16 %v3586
    %v3642 = vunpack.c.l.b16 %v3587
    %v3643 = vunpack.c.l.b16 %v3588
    %v3644 = vunpack.c.l.b16 %v3589
    %v3645 = vunpack.c.l.b16 %v3590
    %v3646 = vpack.c.b16 %v3623, %v3622
    %v3647 = vpack.c.b16 %v3625, %v3624
    %v3648 = vpack.c.b16 %v3627, %v3626
    %v3649 = vpack.c.b16 %v3629, %v3628
    %v3650 = vpack.c.b16 %v3631, %v3630
    %v3651 = vpack.c.b16 %v3633, %v3632
    %v3652 = vpack.c.b16 %v3635, %v3634
    %v3653 = vpack.c.b16 %v3637, %v3636
    %v3654 = vpack.c.b16 %v3639, %v3638
    %v3655 = vpack.c.b16 %v3641, %v3640
    %v3656 = vpack.c.b16 %v3643, %v3642
    %v3657 = vpack.c.b16 %v3645, %v3644
    %v3671 = vsel %vm2078, %v3566, 0
    %3673 = vmatprep.subr.bf16.mxu0 0
    %3674 = vmatpush1.bf16.msra.mxu0 %v3646
    %3675 = vmatprep.subr.bf16.mxu0 0
    %3676 = vmatpush1.bf16.msra.mxu0 %v3647
    %3677 = vmatprep.subr.bf16.mxu0 0
    %3678 = vmatpush1.bf16.msra.mxu0 %v3648
    %3679 = vmatprep.subr.bf16.mxu0 0
    %3680 = vmatpush1.bf16.msra.mxu0 %v3649
    %3681 = vmatprep.subr.bf16.mxu0 0
    %3682 = vmatpush1.bf16.msra.mxu0 %v3650
    %3683 = vmatprep.subr.bf16.mxu0 0
    %3684 = vmatpush1.bf16.msra.mxu0 %v3651
    %3685 = vmatprep.subr.bf16.mxu0 0
    %3686 = vmatpush1.bf16.msra.mxu0 %v3652
    %3687 = vmatprep.subr.bf16.mxu0 0
    %3688 = vmatpush1.bf16.msra.mxu0 %v3653
    %3689 = vmatprep.subr.bf16.mxu0 0
    %3690 = vmatpush1.bf16.msra.mxu0 %v3654
    %3691 = vmatprep.subr.bf16.mxu0 0
    %3692 = vmatpush1.bf16.msra.mxu0 %v3655
    %3693 = vmatprep.subr.bf16.mxu0 0
    %3694 = vmatpush1.bf16.msra.mxu0 %v3656
    %3695 = vmatprep.subr.bf16.mxu0 0
    %3696 = vmatpush1.bf16.msra.mxu0 %v3657
    %3697 = vmatprep.subr.bf16.mxu0 0
    %3698 = vmatpush1.bf16.msra.mxu0 0
    %3699 = vmatprep.subr.bf16.mxu0 0
    %3700 = vmatpush1.bf16.msra.mxu0 0
    %3701 = vmatprep.subr.bf16.mxu0 0
    %3702 = vmatpush1.bf16.msra.mxu0 0
    %3703 = vmatprep.subr.bf16.mxu0 0
    %3704 = vmatpush1.bf16.msra.mxu0 0
    %3705 = vmatprep.mubr.bf16.mxu0 %v3671
    %3706 = vmatmul.mubr.bf16.gmra.mrb[0].mxu0 %v3565
    %v3707 = vpop.f32.mrb[0].mxu0
    %v3708 = vadd.f32 %v3596, %v3707
    %v3709 = vpop.f32.mrb[0].mxu0
    %v3710 = vpop.f32.mrb[0].mxu0
    %v3711 = vadd.f32 %v3596, %v3710
    %v3712 = vpop.f32.mrb[0].mxu0
    %3713 = vdwg.mxu0
    %v3716 = vcombine.high %v3708, %v3708
    %v3718 = vunpack.c.l.s4 1983009808
    %v3719 = vunpack.c.0.s8 %v3718
    %v3720 = vlaneseq
    %v3721 = vshrl.u32 %v3720, 7
    %v3722 = vsub.s32 %v3719, %v3721
    %v3723 = vrot.slane %v3708, %v3722
    %v3725 = vunpack.c.l.s4 1983009808
    %v3726 = vunpack.c.0.s8 %v3725
    %v3727 = vlaneseq
    %v3728 = vshrl.u32 %v3727, 7
    %v3729 = vsub.s32 %v3726, %v3728
    %v3730 = vrot.slane %v3716, %v3729
    %v3731 = vcombine.high %v3723, %v3723
    %v3732 = vcombine.high %v3730, %v3730
    %v3733 = vcombine.high %v3711, %v3711
    %v3735 = vunpack.c.l.s4 1983009808
    %v3736 = vunpack.c.0.s8 %v3735
    %v3737 = vlaneseq
    %v3738 = vshrl.u32 %v3737, 7
    %v3739 = vsub.s32 %v3736, %v3738
    %v3740 = vrot.slane %v3711, %v3739
    %v3742 = vunpack.c.l.s4 1983009808
    %v3743 = vunpack.c.0.s8 %v3742
    %v3744 = vlaneseq
    %v3745 = vshrl.u32 %v3744, 7
    %v3746 = vsub.s32 %v3743, %v3745
    %v3747 = vrot.slane %v3733, %v3746
    %v3748 = vcombine.high %v3740, %v3740
    %v3749 = vcombine.high %v3747, %v3747
    %v3758 = vsel %vm1133, %v3723, -inf
    %v3759 = vrot.slane %v3758, 4
    %v3760 = vmax.f32 %v3758, %v3759
    %v3761 = vrot.slane %v3760, 2
    %v3762 = vmax.f32 %v3760, %v3761
    %v3763 = vrot.slane %v3762, 1
    %v3764 = vmax.f32 %v3762, %v3763
    %v3765 = vsel %vm1133, %v3731, -inf
    %v3766 = vrot.slane %v3765, 4
    %v3767 = vmax.f32 %v3765, %v3766
    %v3768 = vrot.slane %v3767, 2
    %v3769 = vmax.f32 %v3767, %v3768
    %v3770 = vrot.slane %v3769, 1
    %v3771 = vmax.f32 %v3769, %v3770
    %v3772 = vsel %vm1133, %v3730, -inf
    %v3773 = vrot.slane %v3772, 4
    %v3774 = vmax.f32 %v3772, %v3773
    %v3775 = vrot.slane %v3774, 2
    %v3776 = vmax.f32 %v3774, %v3775
    %v3777 = vrot.slane %v3776, 1
    %v3778 = vmax.f32 %v3776, %v3777
    %v3779 = vsel %vm1133, %v3732, -inf
    %v3780 = vrot.slane %v3779, 4
    %v3781 = vmax.f32 %v3779, %v3780
    %v3782 = vrot.slane %v3781, 2
    %v3783 = vmax.f32 %v3781, %v3782
    %v3784 = vrot.slane %v3783, 1
    %v3785 = vmax.f32 %v3783, %v3784
    %v3786 = vsel %vm1133, %v3740, -inf
    %v3787 = vrot.slane %v3786, 4
    %v3788 = vmax.f32 %v3786, %v3787
    %v3789 = vrot.slane %v3788, 2
    %v3790 = vmax.f32 %v3788, %v3789
    %v3791 = vrot.slane %v3790, 1
    %v3792 = vmax.f32 %v3790, %v3791
    %v3793 = vsel %vm1133, %v3748, -inf
    %v3794 = vrot.slane %v3793, 4
    %v3795 = vmax.f32 %v3793, %v3794
    %v3796 = vrot.slane %v3795, 2
    %v3797 = vmax.f32 %v3795, %v3796
    %v3798 = vrot.slane %v3797, 1
    %v3799 = vmax.f32 %v3797, %v3798
    %v3800 = vsel %vm1133, %v3747, -inf
    %v3801 = vrot.slane %v3800, 4
    %v3802 = vmax.f32 %v3800, %v3801
    %v3803 = vrot.slane %v3802, 2
    %v3804 = vmax.f32 %v3802, %v3803
    %v3805 = vrot.slane %v3804, 1
    %v3806 = vmax.f32 %v3804, %v3805
    %v3807 = vsel %vm1133, %v3749, -inf
    %v3808 = vrot.slane %v3807, 4
    %v3809 = vmax.f32 %v3807, %v3808
    %v3810 = vrot.slane %v3809, 2
    %v3811 = vmax.f32 %v3809, %v3810
    %v3812 = vrot.slane %v3811, 1
    %v3813 = vmax.f32 %v3811, %v3812
    %v3814 = vmax.f32 %v3764, 0.0
    %v3815 = vmax.f32 %v3771, 0.0
    %v3816 = vmax.f32 %v3778, 0.0
    %v3817 = vmax.f32 %v3785, 0.0
    %v3818 = vmax.f32 %v3792, 0.0
    %v3819 = vmax.f32 %v3799, 0.0
    %v3820 = vmax.f32 %v3806, 0.0
    %v3821 = vmax.f32 %v3813, 0.0
    %v3822 = vpack.c.bf16 %v3814, %v3814
    %v3823 = vpack.c.bf16 %v3815, %v3815
    %v3824 = vpack.c.bf16 %v3816, %v3816
    %v3825 = vpack.c.bf16 %v3817, %v3817
    %v3826 = vpack.c.bf16 %v3818, %v3818
    %v3827 = vpack.c.bf16 %v3819, %v3819
    %v3828 = vpack.c.bf16 %v3820, %v3820
    %v3829 = vpack.c.bf16 %v3821, %v3821
    %v3830 = vld [vmem:[%s10] sm:$0xff]
    %v3831 = vld [vmem:[%s10 + $0x8] sm:$0xff]
    %v3832 = vld [vmem:[%s10 + $0x10] sm:$0xff]
    %v3833 = vld [vmem:[%s10 + $0x18] sm:$0xff]
    %v3834 = vld [vmem:[%s10 + $0x20] sm:$0xff]
    %v3835 = vld [vmem:[%s10 + $0x28] sm:$0xff]
    %v3836 = vld [vmem:[%s10 + $0x30] sm:$0xff]
    %v3837 = vld [vmem:[%s10 + $0x38] sm:$0xff]
    %v3838 = vld [vmem:[%s1] sm:$0xf]
    %v3839 = vld [vmem:[%s11] sm:$0xff]
    %v3840 = vld [vmem:[%s11 + $0x8] sm:$0xff]
    %v3841 = vld [vmem:[%s11 + $0x10] sm:$0xff]
    %v3842 = vld [vmem:[%s11 + $0x18] sm:$0xff]
    %v3843 = vld [vmem:[%s11 + $0x20] sm:$0xff]
    %v3844 = vld [vmem:[%s11 + $0x28] sm:$0xff]
    %v3845 = vld [vmem:[%s11 + $0x30] sm:$0xff]
    %v3846 = vld [vmem:[%s11 + $0x38] sm:$0xff]
    %v3855 = vunpack.c.l.b16 %v3839
    %v3856 = vunpack.c.h.b16 %v3839
    %v3857 = vunpack.c.l.b16 %v3840
    %v3858 = vunpack.c.h.b16 %v3840
    %v3859 = vunpack.c.l.b16 %v3841
    %v3860 = vunpack.c.h.b16 %v3841
    %v3861 = vunpack.c.l.b16 %v3842
    %v3862 = vunpack.c.h.b16 %v3842
    %v3863 = vunpack.c.l.b16 %v3843
    %v3864 = vunpack.c.h.b16 %v3843
    %v3865 = vunpack.c.l.b16 %v3844
    %v3866 = vunpack.c.h.b16 %v3844
    %v3867 = vunpack.c.l.b16 %v3845
    %v3868 = vunpack.c.h.b16 %v3845
    %v3869 = vunpack.c.l.b16 %v3846
    %v3870 = vunpack.c.h.b16 %v3846
    %v3871 = vpack.c.b16 %v3857, %v3855
    %v3872 = vpack.c.b16 %v3858, %v3856
    %v3873 = vpack.c.b16 %v3861, %v3859
    %v3874 = vpack.c.b16 %v3862, %v3860
    %v3875 = vpack.c.b16 %v3865, %v3863
    %v3876 = vpack.c.b16 %v3866, %v3864
    %v3877 = vpack.c.b16 %v3869, %v3867
    %v3878 = vpack.c.b16 %v3870, %v3868
    %v3888 = vsel %vm2078, %v3838, 0
    %3890 = vmatprep.subr.bf16.mxu0 %v3872
    %3891 = vmatpush1.bf16.msra.mxu0 %v3871
    %3892 = vmatprep.subr.bf16.mxu0 %v3874
    %3893 = vmatpush1.bf16.msra.mxu0 %v3873
    %3894 = vmatprep.subr.bf16.mxu0 %v3876
    %3895 = vmatpush1.bf16.msra.mxu0 %v3875
    %3896 = vmatprep.subr.bf16.mxu0 %v3878
    %3897 = vmatpush1.bf16.msra.mxu0 %v3877
    %3898 = vmatprep.subr.bf16.mxu0 0
    %3899 = vmatpush1.bf16.msra.mxu0 0
    %3900 = vmatprep.subr.bf16.mxu0 0
    %3901 = vmatpush1.bf16.msra.mxu0 0
    %3902 = vmatprep.subr.bf16.mxu0 0
    %3903 = vmatpush1.bf16.msra.mxu0 0
    %3904 = vmatprep.subr.bf16.mxu0 0
    %3905 = vmatpush1.bf16.msra.mxu0 0
    %3906 = vmatprep.subr.bf16.mxu0 0
    %3907 = vmatpush1.bf16.msra.mxu0 0
    %3908 = vmatprep.subr.bf16.mxu0 0
    %3909 = vmatpush1.bf16.msra.mxu0 0
    %3910 = vmatprep.subr.bf16.mxu0 0
    %3911 = vmatpush1.bf16.msra.mxu0 0
    %3912 = vmatprep.subr.bf16.mxu0 0
    %3913 = vmatpush1.bf16.msra.mxu0 0
    %3914 = vmatprep.subr.bf16.mxu0 0
    %3915 = vmatpush1.bf16.msra.mxu0 0
    %3916 = vmatprep.subr.bf16.mxu0 0
    %3917 = vmatpush1.bf16.msra.mxu0 0
    %3918 = vmatprep.subr.bf16.mxu0 0
    %3919 = vmatpush1.bf16.msra.mxu0 0
    %3920 = vmatprep.subr.bf16.mxu0 0
    %3921 = vmatpush1.bf16.msra.mxu0 0
    %3922 = vmatprep.mubr.bf16.mxu0 0
    %3923 = vmatmul.mubr.bf16.gmra.mrb[0].mxu0 %v3888
    %v3924 = vpop.f32.mrb[0].mxu0
    %v3925 = vadd.f32 0.0, %v3924
    %v3926 = vpop.f32.mrb[0].mxu0
    %v3927 = vadd.f32 0.0, %v3926
    %v3928 = vpop.f32.mrb[0].mxu0
    %v3929 = vpop.f32.mrb[0].mxu0
    %3930 = vdwg.mxu0
    %v3939 = vunpack.c.l.b16 %v3822
    %v3940 = vunpack.c.l.b16 %v3823
    %v3941 = vunpack.c.l.b16 %v3824
    %v3942 = vunpack.c.l.b16 %v3825
    %v3943 = vunpack.c.l.b16 %v3826
    %v3944 = vunpack.c.l.b16 %v3827
    %v3945 = vunpack.c.l.b16 %v3828
    %v3946 = vunpack.c.l.b16 %v3829
    %v3947 = vsel %vm1806, %v3940, %v3939
    %v3948 = vsel %vm1808, %v3941, %v3947
    %v3949 = vsel %vm1810, %v3942, %v3948
    %v3950 = vsel %vm1812, %v3943, %v3949
    %v3951 = vsel %vm1814, %v3944, %v3950
    %v3952 = vsel %vm1816, %v3945, %v3951
    %v3953 = vsel %vm1818, %v3946, %v3952
    %v3954 = vpack.c.b16 %v3953, %v3953
    %v3963 = vunpack.c.l.b16 %v3830
    %v3964 = vunpack.c.h.b16 %v3830
    %v3965 = vunpack.c.l.b16 %v3831
    %v3966 = vunpack.c.h.b16 %v3831
    %v3967 = vunpack.c.l.b16 %v3832
    %v3968 = vunpack.c.h.b16 %v3832
    %v3969 = vunpack.c.l.b16 %v3833
    %v3970 = vunpack.c.h.b16 %v3833
    %v3971 = vunpack.c.l.b16 %v3834
    %v3972 = vunpack.c.h.b16 %v3834
    %v3973 = vunpack.c.l.b16 %v3835
    %v3974 = vunpack.c.h.b16 %v3835
    %v3975 = vunpack.c.l.b16 %v3836
    %v3976 = vunpack.c.h.b16 %v3836
    %v3977 = vunpack.c.l.b16 %v3837
    %v3978 = vunpack.c.h.b16 %v3837
    %v3979 = vpack.c.b16 %v3965, %v3963
    %v3980 = vpack.c.b16 %v3966, %v3964
    %v3981 = vpack.c.b16 %v3969, %v3967
    %v3982 = vpack.c.b16 %v3970, %v3968
    %v3983 = vpack.c.b16 %v3973, %v3971
    %v3984 = vpack.c.b16 %v3974, %v3972
    %v3985 = vpack.c.b16 %v3977, %v3975
    %v3986 = vpack.c.b16 %v3978, %v3976
    %v3996 = vsel %vm2078, %v3954, 0
    %3998 = vmatprep.subr.bf16.mxu0 %v3980
    %3999 = vmatpush1.bf16.msra.mxu0 %v3979
    %4000 = vmatprep.subr.bf16.mxu0 %v3982
    %4001 = vmatpush1.bf16.msra.mxu0 %v3981
    %4002 = vmatprep.subr.bf16.mxu0 %v3984
    %4003 = vmatpush1.bf16.msra.mxu0 %v3983
    %4004 = vmatprep.subr.bf16.mxu0 %v3986
    %4005 = vmatpush1.bf16.msra.mxu0 %v3985
    %4006 = vmatprep.subr.bf16.mxu0 0
    %4007 = vmatpush1.bf16.msra.mxu0 0
    %4008 = vmatprep.subr.bf16.mxu0 0
    %4009 = vmatpush1.bf16.msra.mxu0 0
    %4010 = vmatprep.subr.bf16.mxu0 0
    %4011 = vmatpush1.bf16.msra.mxu0 0
    %4012 = vmatprep.subr.bf16.mxu0 0
    %4013 = vmatpush1.bf16.msra.mxu0 0
    %4014 = vmatprep.subr.bf16.mxu0 0
    %4015 = vmatpush1.bf16.msra.mxu0 0
    %4016 = vmatprep.subr.bf16.mxu0 0
    %4017 = vmatpush1.bf16.msra.mxu0 0
    %4018 = vmatprep.subr.bf16.mxu0 0
    %4019 = vmatpush1.bf16.msra.mxu0 0
    %4020 = vmatprep.subr.bf16.mxu0 0
    %4021 = vmatpush1.bf16.msra.mxu0 0
    %4022 = vmatprep.subr.bf16.mxu0 0
    %4023 = vmatpush1.bf16.msra.mxu0 0
    %4024 = vmatprep.subr.bf16.mxu0 0
    %4025 = vmatpush1.bf16.msra.mxu0 0
    %4026 = vmatprep.subr.bf16.mxu0 0
    %4027 = vmatpush1.bf16.msra.mxu0 0
    %4028 = vmatprep.subr.bf16.mxu0 0
    %4029 = vmatpush1.bf16.msra.mxu0 0
    %4030 = vmatprep.mubr.bf16.mxu0 0
    %4031 = vmatmul.mubr.bf16.gmra.mrb[0].mxu0 %v3996
    %v4032 = vpop.f32.mrb[0].mxu0
    %v4033 = vadd.f32 %v3925, %v4032
    %v4034 = vpop.f32.mrb[0].mxu0
    %v4035 = vadd.f32 %v3927, %v4034
    %v4036 = vpop.f32.mrb[0].mxu0
    %v4037 = vpop.f32.mrb[0].mxu0
    %4038 = vdwg.mxu0
    %v4039 = vld [vmem:[%s12] sm:$0x3]
    %v4041 = vlaneseq
    %v4042 = vshrl.u32 %v4041, 7
    %v4043 = vsub.s32 0, %v4042
    %v4044 = vrot.slane %v4039, %v4043
    %v4045 = vlaneseq
    %v4046 = vshrl.u32 %v4045, 7
    %v4047 = vsub.s32 1, %v4046
    %v4048 = vrot.slane %v4039, %v4047
    %v4051 = vadd.f32 %v4033, %v4044
    %v4052 = vadd.f32 %v4035, %v4048
    %v4053 = vmax.f32 %v4051, 0.0
    %v4054 = vmax.f32 %v4052, 0.0
    %v4055 = vpack.c.bf16 %v4053, %v4053
    %v4056 = vpack.c.bf16 %v4054, %v4054
    %v4057 = vld [vmem:[%s13] sm:$0xf]
    %v4058 = vld [vmem:[%s13 + $0x4] sm:$0xf]
    %v4059 = vld [vmem:[%s13 + $0x8] sm:$0xf]
    %v4060 = vld [vmem:[%s13 + $0xc] sm:$0xf]
    %v4061 = vld [vmem:[%s13 + $0x10] sm:$0xf]
    %v4062 = vld [vmem:[%s13 + $0x14] sm:$0xf]
    %v4063 = vld [vmem:[%s13 + $0x18] sm:$0xf]
    %v4064 = vld [vmem:[%s13 + $0x1c] sm:$0xf]
    %v4065 = vld [vmem:[%s13 + $0x20] sm:$0xf]
    %v4066 = vld [vmem:[%s13 + $0x24] sm:$0xf]
    %v4067 = vld [vmem:[%s13 + $0x28] sm:$0xf]
    %v4068 = vld [vmem:[%s13 + $0x2c] sm:$0xf]
    %v4069 = vld [vmem:[%s13 + $0x30] sm:$0xf]
    %v4070 = vld [vmem:[%s13 + $0x34] sm:$0xf]
    %v4071 = vld [vmem:[%s13 + $0x38] sm:$0xf]
    %v4072 = vld [vmem:[%s13 + $0x3c] sm:$0xf]
    %v4073 = vld [vmem:[%s13 + $0x40] sm:$0xf]
    %v4074 = vld [vmem:[%s13 + $0x44] sm:$0xf]
    %v4075 = vld [vmem:[%s13 + $0x48] sm:$0xf]
    %v4076 = vld [vmem:[%s13 + $0x4c] sm:$0xf]
    %v4077 = vld [vmem:[%s13 + $0x50] sm:$0xf]
    %v4078 = vld [vmem:[%s13 + $0x54] sm:$0xf]
    %v4079 = vld [vmem:[%s13 + $0x58] sm:$0xf]
    %v4080 = vld [vmem:[%s13 + $0x5c] sm:$0xf]
    %v4081 = vld [vmem:[%s13 + $0x60] sm:$0xf]
    %v4082 = vld [vmem:[%s13 + $0x64] sm:$0xf]
    %v4083 = vld [vmem:[%s13 + $0x68] sm:$0xf]
    %v4084 = vld [vmem:[%s13 + $0x6c] sm:$0xf]
    %v4085 = vld [vmem:[%s13 + $0x70] sm:$0xf]
    %v4086 = vld [vmem:[%s13 + $0x74] sm:$0xf]
    %v4087 = vld [vmem:[%s13 + $0x78] sm:$0xf]
    %v4088 = vld [vmem:[%s13 + $0x7c] sm:$0xf]
    %v4089 = vld [vmem:[%s14] sm:$0x1]
    %v4091 = vlaneseq
    %v4092 = vshrl.u32 %v4091, 7
    %v4093 = vsub.s32 0, %v4092
    %v4094 = vrot.slane %v4089, %v4093
    %v4128 = vunpack.c.l.b16 %v4057
    %v4129 = vunpack.c.l.b16 %v4058
    %v4130 = vunpack.c.l.b16 %v4059
    %v4131 = vunpack.c.l.b16 %v4060
    %v4132 = vunpack.c.l.b16 %v4061
    %v4133 = vunpack.c.l.b16 %v4062
    %v4134 = vunpack.c.l.b16 %v4063
    %v4135 = vunpack.c.l.b16 %v4064
    %v4136 = vunpack.c.l.b16 %v4065
    %v4137 = vunpack.c.l.b16 %v4066
    %v4138 = vunpack.c.l.b16 %v4067
    %v4139 = vunpack.c.l.b16 %v4068
    %v4140 = vunpack.c.l.b16 %v4069
    %v4141 = vunpack.c.l.b16 %v4070
    %v4142 = vunpack.c.l.b16 %v4071
    %v4143 = vunpack.c.l.b16 %v4072
    %v4144 = vunpack.c.l.b16 %v4073
    %v4145 = vunpack.c.l.b16 %v4074
    %v4146 = vunpack.c.l.b16 %v4075
    %v4147 = vunpack.c.l.b16 %v4076
    %v4148 = vunpack.c.l.b16 %v4077
    %v4149 = vunpack.c.l.b16 %v4078
    %v4150 = vunpack.c.l.b16 %v4079
    %v4151 = vunpack.c.l.b16 %v4080
    %v4152 = vunpack.c.l.b16 %v4081
    %v4153 = vunpack.c.l.b16 %v4082
    %v4154 = vunpack.c.l.b16 %v4083
    %v4155 = vunpack.c.l.b16 %v4084
    %v4156 = vunpack.c.l.b16 %v4085
    %v4157 = vunpack.c.l.b16 %v4086
    %v4158 = vunpack.c.l.b16 %v4087
    %v4159 = vunpack.c.l.b16 %v4088
    %v4160 = vpack.c.b16 %v4129, %v4128
    %v4161 = vpack.c.b16 %v4131, %v4130
    %v4162 = vpack.c.b16 %v4133, %v4132
    %v4163 = vpack.c.b16 %v4135, %v4134
    %v4164 = vpack.c.b16 %v4137, %v4136
    %v4165 = vpack.c.b16 %v4139, %v4138
    %v4166 = vpack.c.b16 %v4141, %v4140
    %v4167 = vpack.c.b16 %v4143, %v4142
    %v4168 = vpack.c.b16 %v4145, %v4144
    %v4169 = vpack.c.b16 %v4147, %v4146
    %v4170 = vpack.c.b16 %v4149, %v4148
    %v4171 = vpack.c.b16 %v4151, %v4150
    %v4172 = vpack.c.b16 %v4153, %v4152
    %v4173 = vpack.c.b16 %v4155, %v4154
    %v4174 = vpack.c.b16 %v4157, %v4156
    %v4175 = vpack.c.b16 %v4159, %v4158
    %4192 = vmatprep.subr.bf16.mxu0 0
    %4193 = vmatpush1.bf16.msra.mxu0 %v4160
    %4194 = vmatprep.subr.bf16.mxu0 0
    %4195 = vmatpush1.bf16.msra.mxu0 %v4161
    %4196 = vmatprep.subr.bf16.mxu0 0
    %4197 = vmatpush1.bf16.msra.mxu0 %v4162
    %4198 = vmatprep.subr.bf16.mxu0 0
    %4199 = vmatpush1.bf16.msra.mxu0 %v4163
    %4200 = vmatprep.subr.bf16.mxu0 0
    %4201 = vmatpush1.bf16.msra.mxu0 %v4164
    %4202 = vmatprep.subr.bf16.mxu0 0
    %4203 = vmatpush1.bf16.msra.mxu0 %v4165
    %4204 = vmatprep.subr.bf16.mxu0 0
    %4205 = vmatpush1.bf16.msra.mxu0 %v4166
    %4206 = vmatprep.subr.bf16.mxu0 0
    %4207 = vmatpush1.bf16.msra.mxu0 %v4167
    %4208 = vmatprep.subr.bf16.mxu0 0
    %4209 = vmatpush1.bf16.msra.mxu0 %v4168
    %4210 = vmatprep.subr.bf16.mxu0 0
    %4211 = vmatpush1.bf16.msra.mxu0 %v4169
    %4212 = vmatprep.subr.bf16.mxu0 0
    %4213 = vmatpush1.bf16.msra.mxu0 %v4170
    %4214 = vmatprep.subr.bf16.mxu0 0
    %4215 = vmatpush1.bf16.msra.mxu0 %v4171
    %4216 = vmatprep.subr.bf16.mxu0 0
    %4217 = vmatpush1.bf16.msra.mxu0 %v4172
    %4218 = vmatprep.subr.bf16.mxu0 0
    %4219 = vmatpush1.bf16.msra.mxu0 %v4173
    %4220 = vmatprep.subr.bf16.mxu0 0
    %4221 = vmatpush1.bf16.msra.mxu0 %v4174
    %4222 = vmatprep.subr.bf16.mxu0 0
    %4223 = vmatpush1.bf16.msra.mxu0 %v4175
    %4224 = vmatprep.mubr.bf16.mxu0 %v4056
    %4225 = vmatmul.mubr.bf16.gmra.mrb[0].mxu0 %v4055
    %v4226 = vpop.f32.mrb[0].mxu0
    %v4227 = vadd.f32 %v4094, %v4226
    %v4228 = vpop.f32.mrb[0].mxu0
    %v4229 = vpop.f32.mrb[0].mxu0
    %v4230 = vpop.f32.mrb[0].mxu0
    %4231 = vdwg.mxu0
    %4232 = vst [vmem:[#allocation2] sm:$0xff] %v4227
    // Predicated region
    $region62: #{tpu_custom_call.1} parent=1 // pred_check
      _
    $region63: #{tpu_custom_call.1} parent=1 // pred_check_branch
      %4234 = sbr.rel (0) target = $region65
    $region64: #{tpu_custom_call.1} parent=1 // pred_region
      %s4236 = ssub.s32 128, 128
      %4237 = vsyncadd [#allocation3], %s4236
      %s4239 = sshll.u32 [#allocation2], 4
      %s4240 = int_to_ptr.vmem [resolvable:$true] %s4239
      %4242 = dma.vmem_to_hbm [thread:$0]  %s4240, 128, %s15, [#allocation3]
    $region65: #{tpu_custom_call.1} parent=1 // pred_fallthru
      _
    // Predicated region
    $region66: #{tpu_custom_call.1} parent=1 // pred_check
      _
    $region67: #{tpu_custom_call.1} parent=1 // pred_check_branch
      %4244 = sbr.rel (0) target = $region69
    $region68: #{tpu_custom_call.1} parent=1 // pred_region
      %4245 = dma.done [#allocation3], 128
    $region69: #{tpu_custom_call.1} parent=1 // pred_fallthru
      _
    %4246 = vsyncpa [#allocation3], 1

</llo_original>
